<compile_context>
chip_gen: v5e
topology: v5e:2x2
jax: 0.10.0
libtpu: 0.0.40
codegen_flags: <defaults>
</compile_context>

<pallas_src>
import functools

import jax
import jax.numpy as jnp
from jax.experimental import pallas as pl
from jax.experimental.pallas import tpu as pltpu


def _vmem_limit_bytes():
    """Generation-aware scoped-VMEM cap: ~75% of physical, clamped to [32, 96] MiB."""
    try:
        cap = int(pltpu.get_tpu_info().vmem_capacity_bytes)
    except Exception:
        cap = 64 * 1024 * 1024  # conservative fallback (v7x physical size)
    return max(32 * 1024 * 1024, min((cap * 3) // 4, 96 * 1024 * 1024))


VMEM_LIMIT = _vmem_limit_bytes()
C_PAD = 128  # each classifier head padded to one 128-lane block


# ----------------------------------------------------------------------------
# Tiling helpers
# ----------------------------------------------------------------------------

def _choose_tm(m, target=512):
    """Row tile: full extent when small (always legal), else the largest
    divisor of m that is a multiple of 8 and <= target."""
    if m <= target:
        return m
    t = (target // 8) * 8
    while t >= 8:
        if m % t == 0:
            return t
        t -= 8
    # TODO(synk): pad M / masked edge tile for awkward M values instead of a
    # full-extent fallback block.
    return m


# ----------------------------------------------------------------------------
# Pallas kernels
# ----------------------------------------------------------------------------

def _linear_kernel(x_ref, w_ref, b_ref, o_ref, *, activation):
    # Resident full-K / full-N weight, no k-loop, no VMEM accumulator.
    y = jnp.dot(x_ref[...], w_ref[...], preferred_element_type=jnp.float32)
    y = y + b_ref[...].astype(jnp.float32)
    if activation == "gelu":
        # TODO(synk): HF BERT default is exact erf-GELU; tanh-approx used here.
        y = jax.nn.gelu(y, approximate=True)
    o_ref[...] = y.astype(o_ref.dtype)


def _linear_ln_res_kernel(x_ref, w_ref, b_ref, r_ref, g_ref, beta_ref, o_ref):
    # Linear + residual add + LayerNorm fused in the epilogue (tn == H so the
    # output tile covers full rows).  LN math stays f32.
    y = jnp.dot(x_ref[...], w_ref[...], preferred_element_type=jnp.float32)
    y = y + b_ref[...].astype(jnp.float32) + r_ref[...].astype(jnp.float32)
    mu = jnp.mean(y, axis=-1, keepdims=True)
    var = jnp.mean(jnp.square(y - mu), axis=-1, keepdims=True)
    yn = (y - mu) * jax.lax.rsqrt(var + 1e-12)
    o_ref[...] = (yn * g_ref[...].astype(jnp.float32)
                  + beta_ref[...].astype(jnp.float32)).astype(o_ref.dtype)


def _layernorm_kernel(x_ref, g_ref, b_ref, o_ref):
    x = x_ref[...].astype(jnp.float32)
    mu = jnp.mean(x, axis=-1, keepdims=True)
    var = jnp.mean(jnp.square(x - mu), axis=-1, keepdims=True)
    xn = (x - mu) * jax.lax.rsqrt(var + 1e-12)
    o_ref[...] = (xn * g_ref[...].astype(jnp.float32)
                  + b_ref[...].astype(jnp.float32)).astype(o_ref.dtype)


def _attention_kernel(qkv_ref, bias_ref, o_ref, *, nh, dh, hidden):
    # One batch element per grid step.  q/k/v are sliced per head straight out
    # of the [1, S, 3H] QKV block (1/sqrt(dh) already folded into wq); heads
    # are merged in-kernel so the HBM writeback is a lane-dense [S, H] block.
    bias = bias_ref[0].astype(jnp.float32)                    # [1, S] additive mask
    # TODO(synk): for S >= ~512 switch to an online-softmax KV-tile loop so the
    # [S, S] f32 score block stays VMEM-bounded (matters most on v7x 64 MiB).
    for h in range(nh):
        c0 = h * dh
        q = qkv_ref[0, :, pl.ds(c0, dh)]                      # [S, dh] bf16
        k = qkv_ref[0, :, pl.ds(hidden + c0, dh)]             # [S, dh] bf16
        v = qkv_ref[0, :, pl.ds(2 * hidden + c0, dh)]         # [S, dh] bf16
        s = jnp.einsum('qd,kd->qk', q, k,
                       preferred_element_type=jnp.float32)    # [S, S] f32
        s = s + bias                                          # padding mask
        s = s - jnp.max(s, axis=-1, keepdims=True)
        p = jnp.exp(s)
        l = jnp.sum(p, axis=-1, keepdims=True)                # [S, 1]
        ctx = jnp.dot(p.astype(v.dtype), v,
                      preferred_element_type=jnp.float32)     # [S, dh] f32
        ctx = ctx * pl.reciprocal(l, approx=True)
        o_ref[0, :, pl.ds(c0, dh)] = ctx.astype(o_ref.dtype)


def _masked_ce_kernel(logits_ref, tgt_ref, msk_ref, out_ref,
                      sum_ref, cnt_ref, *, num_classes):
    # CrossEntropyLoss averaged over active tokens (mask == 1); pad columns
    # of the 128-wide logits block are ignored.
    @pl.when(pl.program_id(0) == 0)
    def _():
        sum_ref[...] = jnp.zeros_like(sum_ref)
        cnt_ref[...] = jnp.zeros_like(cnt_ref)

    logits = logits_ref[...].astype(jnp.float32)              # [tm, C_PAD]
    col = jax.lax.broadcasted_iota(jnp.int32, logits.shape, 1)
    logits = jnp.where(col < num_classes, logits, -1e30)
    mx = jnp.max(logits, axis=-1, keepdims=True)
    lse = mx + jnp.log(jnp.sum(jnp.exp(logits - mx), axis=-1, keepdims=True))
    tgt = tgt_ref[...]                                        # [tm, 1]
    onehot = (col == tgt).astype(jnp.float32)
    tgt_logit = jnp.sum(logits * onehot, axis=-1, keepdims=True)
    per_tok = lse - tgt_logit                                 # [tm, 1]
    active = (msk_ref[...] == 1).astype(jnp.float32)          # [tm, 1]

    sum_ref[...] += jnp.sum(per_tok * active, axis=0, keepdims=True)
    cnt_ref[...] += jnp.sum(active, axis=0, keepdims=True)

    @pl.when(pl.program_id(0) == pl.num_programs(0) - 1)
    def _():
        # Guard the all-masked case (PyTorch would return NaN there).
        out_ref[...] = sum_ref[...] / jnp.maximum(cnt_ref[...], 1.0)


# ----------------------------------------------------------------------------
# Wrappers around pallas_call
# ----------------------------------------------------------------------------

def linear(x, w, b, *, activation=None, out_dtype=jnp.bfloat16):
    m, k_dim = x.shape
    n = w.shape[1]
    tm = _choose_tm(m)
    grid = (m // tm,)
    kernel = functools.partial(_linear_kernel, activation=activation)
    return pl.pallas_call(
        kernel,
        out_shape=jax.ShapeDtypeStruct((m, n), out_dtype),
        grid=grid,
        in_specs=[
            pl.BlockSpec((tm, k_dim), lambda i: (i, 0)),
            pl.BlockSpec((k_dim, n), lambda i: (0, 0)),   # resident weight
            pl.BlockSpec((1, n), lambda i: (0, 0)),
        ],
        out_specs=pl.BlockSpec((tm, n), lambda i: (i, 0)),
        compiler_params=pltpu.CompilerParams(
            dimension_semantics=("parallel",),
            vmem_limit_bytes=VMEM_LIMIT),
    )(x.astype(jnp.bfloat16), w.astype(jnp.bfloat16), b)


def linear_ln_residual(x, w, b, residual, gamma, beta, *, out_dtype=jnp.bfloat16):
    m, k_dim = x.shape
    n = w.shape[1]
    assert residual.shape == (m, n)
    tm = _choose_tm(m)
    grid = (m // tm,)
    return pl.pallas_call(
        _linear_ln_res_kernel,
        out_shape=jax.ShapeDtypeStruct((m, n), out_dtype),
        grid=grid,
        in_specs=[
            pl.BlockSpec((tm, k_dim), lambda i: (i, 0)),
            pl.BlockSpec((k_dim, n), lambda i: (0, 0)),   # resident weight
            pl.BlockSpec((1, n), lambda i: (0, 0)),
            pl.BlockSpec((tm, n), lambda i: (i, 0)),
            pl.BlockSpec((1, n), lambda i: (0, 0)),
            pl.BlockSpec((1, n), lambda i: (0, 0)),
        ],
        out_specs=pl.BlockSpec((tm, n), lambda i: (i, 0)),
        compiler_params=pltpu.CompilerParams(
            dimension_semantics=("parallel",),
            vmem_limit_bytes=VMEM_LIMIT),
    )(x.astype(jnp.bfloat16), w.astype(jnp.bfloat16), b, residual, gamma, beta)


def layernorm(x, g, b, *, out_dtype=jnp.bfloat16):
    m, h = x.shape
    tm = _choose_tm(m)
    grid = (m // tm,)
    return pl.pallas_call(
        _layernorm_kernel,
        out_shape=jax.ShapeDtypeStruct((m, h), out_dtype),
        grid=grid,
        in_specs=[pl.BlockSpec((tm, h), lambda i: (i, 0)),
                  pl.BlockSpec((1, h), lambda i: (0, 0)),
                  pl.BlockSpec((1, h), lambda i: (0, 0))],
        out_specs=pl.BlockSpec((tm, h), lambda i: (i, 0)),
        compiler_params=pltpu.CompilerParams(
            dimension_semantics=("parallel",),
            vmem_limit_bytes=VMEM_LIMIT),
    )(x, g, b)


def attention(qkv_bsd, att_bias, *, nh, dh):
    # qkv_bsd: [B, S, 3H] bf16 (scale pre-folded); att_bias: [B, 1, S] f32.
    batch, s, three_h = qkv_bsd.shape
    hidden = nh * dh
    kernel = functools.partial(_attention_kernel, nh=nh, dh=dh, hidden=hidden)
    return pl.pallas_call(
        kernel,
        out_shape=jax.ShapeDtypeStruct((batch, s, hidden), jnp.bfloat16),
        grid=(batch,),
        in_specs=[pl.BlockSpec((1, s, three_h), lambda b: (b, 0, 0)),
                  pl.BlockSpec((1, 1, s), lambda b: (b, 0, 0))],
        out_specs=pl.BlockSpec((1, s, hidden), lambda b: (b, 0, 0)),
        compiler_params=pltpu.CompilerParams(
            dimension_semantics=("parallel",),
            vmem_limit_bytes=VMEM_LIMIT),
    )(qkv_bsd, att_bias)


def masked_cross_entropy(logits, targets, mask, *, num_classes, col_block):
    # logits: [M, 2*C_PAD] f32; the CE kernel only reads its 128-column block.
    m = logits.shape[0]
    tm = _choose_tm(m)
    grid = (m // tm,)
    kernel = functools.partial(_masked_ce_kernel, num_classes=num_classes)
    out = pl.pallas_call(
        kernel,
        out_shape=jax.ShapeDtypeStruct((1, 1), jnp.float32),
        grid=grid,
        in_specs=[
            pl.BlockSpec((tm, C_PAD), lambda i: (i, col_block)),
            pl.BlockSpec((tm, 1), lambda i: (i, 0)),
            pl.BlockSpec((tm, 1), lambda i: (i, 0)),
        ],
        out_specs=pl.BlockSpec((1, 1), lambda i: (0, 0)),
        scratch_shapes=[pltpu.VMEM((1, 1), jnp.float32),
                        pltpu.VMEM((1, 1), jnp.float32)],
        compiler_params=pltpu.CompilerParams(
            dimension_semantics=("arbitrary",),
            vmem_limit_bytes=VMEM_LIMIT),
    )(logits, targets.astype(jnp.int32), mask.astype(jnp.int32))
    return out[0, 0]


# ----------------------------------------------------------------------------
# Deterministic parameter init (synthetic "BERT" weights)
# ----------------------------------------------------------------------------

def init_params(key, cfg):
    H, I = cfg["hidden"], cfg["intermediate"]
    nh = cfg["heads"]
    dh = H // nh

    def nrm(k, shape):
        return 0.02 * jax.random.normal(k, shape, jnp.float32)

    keys = iter(jax.random.split(key, 8 + 8 * cfg["layers"]))

    # Fused classifier heads, each padded to a 128-lane block.
    w_tag = nrm(next(keys), (H, cfg["num_tag"]))
    w_pos = nrm(next(keys), (H, cfg["num_pos"]))
    w_cls = jnp.concatenate(
        [jnp.pad(w_tag, ((0, 0), (0, C_PAD - cfg["num_tag"]))),
         jnp.pad(w_pos, ((0, 0), (0, C_PAD - cfg["num_pos"])))], axis=1)

    params = {
        "word_emb": nrm(next(keys), (cfg["vocab"], H)),
        "pos_emb": nrm(next(keys), (cfg["max_pos"], H)),
        "type_emb": nrm(next(keys), (cfg["type_vocab"], H)),
        "emb_ln_g": jnp.ones((1, H), jnp.float32),
        "emb_ln_b": jnp.zeros((1, H), jnp.float32),
        "w_cls": w_cls.astype(jnp.bfloat16),
        "b_cls": jnp.zeros((1, 2 * C_PAD), jnp.float32),
        "layers": [],
    }

    scale = 1.0 / float(dh) ** 0.5
    for _ in range(cfg["layers"]):
        # 1/sqrt(dh) folded into the Q projection (weights AND bias would be
        # scaled; bias is zero here).
        wq = nrm(next(keys), (H, H)) * scale
        wk = nrm(next(keys), (H, H))
        wv = nrm(next(keys), (H, H))
        layer = {
            "wqkv": jnp.concatenate([wq, wk, wv], axis=1).astype(jnp.bfloat16),
            "bqkv": jnp.zeros((1, 3 * H), jnp.float32),
            "wo": nrm(next(keys), (H, H)).astype(jnp.bfloat16),
            "bo": jnp.zeros((1, H), jnp.float32),
            "ln1_g": jnp.ones((1, H), jnp.float32),
            "ln1_b": jnp.zeros((1, H), jnp.float32),
            "wi": nrm(next(keys), (H, I)).astype(jnp.bfloat16),
            "bi": jnp.zeros((1, I), jnp.float32),
            "wf": nrm(next(keys), (I, H)).astype(jnp.bfloat16),
            "bf": jnp.zeros((1, H), jnp.float32),
            "ln2_g": jnp.ones((1, H), jnp.float32),
            "ln2_b": jnp.zeros((1, H), jnp.float32),
        }
        params["layers"].append(layer)
    return params


# ----------------------------------------------------------------------------
# Forward pass (mirrors BERTEntityModel.forward semantics)
# ----------------------------------------------------------------------------

def bert_entity_forward(params, input_ids, attention_mask, token_type_ids,
                        target_pos, target_tag, *, cfg):
    B, S = input_ids.shape
    H, nh = cfg["hidden"], cfg["heads"]
    dh = H // nh
    M = B * S

    # Embedding gathers are XLA glue; the embedding LayerNorm is Pallas.
    x = (params["word_emb"][input_ids]
         + params["pos_emb"][:S][None, :, :]
         + params["type_emb"][token_type_ids])                 # [B,S,H] f32
    x = layernorm(x.reshape(M, H), params["emb_ln_g"], params["emb_ln_b"])

    # Additive attention bias: 0 visible, -10000 padding; shared across heads.
    att_bias = ((1.0 - attention_mask.astype(jnp.float32)) * -10000.0)[:, None, :]

    for layer in params["layers"]:
        qkv = linear(x, layer["wqkv"], layer["bqkv"])          # [M, 3H] bf16
        # [M,3H] -> [B,S,3H] is a metadata-only reshape (row-major); the
        # attention kernel slices heads from the slab, so no XLA transposes.
        ctx = attention(qkv.reshape(B, S, 3 * H), att_bias, nh=nh, dh=dh)
        ctx = ctx.reshape(M, H)                                # metadata only
        x = linear_ln_residual(ctx, layer["wo"], layer["bo"], x,
                               layer["ln1_g"], layer["ln1_b"])
        inter = linear(x, layer["wi"], layer["bi"], activation="gelu")
        x = linear_ln_residual(inter, layer["wf"], layer["bf"], x,
                               layer["ln2_g"], layer["ln2_b"])

    # bert_drop_1 / bert_drop_2 are identity at inference (eval mode).
    # Fused classifier heads: one [H, 256] matmul -> [M, 256] f32 logits.
    logits = linear(x, params["w_cls"], params["b_cls"], out_dtype=jnp.float32)

    flat_mask = attention_mask.reshape(M, 1)
    loss_tag = masked_cross_entropy(logits, target_tag.reshape(M, 1), flat_mask,
                                    num_classes=cfg["num_tag"], col_block=0)
    loss_pos = masked_cross_entropy(logits, target_pos.reshape(M, 1), flat_mask,
                                    num_classes=cfg["num_pos"], col_block=1)
    loss = (loss_tag + loss_pos) / 2.0

    tag_logits = logits[:, :cfg["num_tag"]].reshape(B, S, cfg["num_tag"])
    pos_logits = logits[:, C_PAD:C_PAD + cfg["num_pos"]].reshape(B, S, cfg["num_pos"])
    return tag_logits, pos_logits, loss


# ----------------------------------------------------------------------------
# Main
# ----------------------------------------------------------------------------

if __name__ == "__main__":
    cfg = dict(vocab=100, hidden=64, heads=4, intermediate=128, layers=2,
               max_pos=32, type_vocab=2, num_tag=5, num_pos=7)

    key = jax.random.PRNGKey(0)
    k_par, k_ids, k_tag, k_pos = jax.random.split(key, 4)
    params = init_params(k_par, cfg)

    B, S = 2, 8
    input_ids = jax.random.randint(k_ids, (B, S), 0, cfg["vocab"], dtype=jnp.int32)
    attention_mask = jnp.concatenate(
        [jnp.ones((B, 6), jnp.int32), jnp.zeros((B, 2), jnp.int32)], axis=1)
    token_type_ids = jnp.zeros((B, S), jnp.int32)
    target_tag = jax.random.randint(k_tag, (B, S), 0, cfg["num_tag"], dtype=jnp.int32)
    target_pos = jax.random.randint(k_pos, (B, S), 0, cfg["num_pos"], dtype=jnp.int32)

    fwd = jax.jit(functools.partial(bert_entity_forward, cfg=cfg))
    tag, pos, loss = fwd(params, input_ids, attention_mask, token_type_ids,
                         target_pos, target_tag)
    jax.block_until_ready((tag, pos, loss))

    assert tag.shape == (B, S, cfg["num_tag"])
    assert pos.shape == (B, S, cfg["num_pos"])
    assert loss.shape == ()
    assert bool(jnp.isfinite(loss))
    print("KERNEL_OK")
</pallas_src>

<mosaic_0001>
module attributes {stable_mosaic.version = 11 : i64} {
  func.func @_layernorm_kernel(%arg0: i32, %arg1: memref<16x64xf32, #tpu.memory_space<vmem>>, %arg2: memref<1x64xf32, #tpu.memory_space<vmem>>, %arg3: memref<1x64xf32, #tpu.memory_space<vmem>>, %arg4: memref<16x64xbf16, #tpu.memory_space<vmem>>) attributes {dimension_semantics = [#tpu.dimension_semantics<parallel>], iteration_bounds = array<i64: 1>, scalar_prefetch = 0 : i64, scratch_operands = 0 : i64, tpu.core_type = #tpu.core_type<tc>, window_params = [{transform_indices = @transform_0, window_bounds = array<i64: 16, 64>}, {pipeline_mode = #tpu.pipeline_mode<synchronous>, transform_indices = @transform_1, window_bounds = array<i64: 1, 64>}, {pipeline_mode = #tpu.pipeline_mode<synchronous>, transform_indices = @transform_2, window_bounds = array<i64: 1, 64>}, {transform_indices = @transform_3, window_bounds = array<i64: 16, 64>}]} {
    %c0 = arith.constant 0 : index
    %c0_0 = arith.constant 0 : index
    %0 = vector.load %arg1[%c0, %c0_0] : memref<16x64xf32, #tpu.memory_space<vmem>>, vector<16x64xf32>
    %cst = arith.constant dense<0.000000e+00> : vector<16xf32>
    %1 = vector.multi_reduction <add>, %0, %cst [1] : vector<16x64xf32> to vector<16xf32>
    %2 = vector.shape_cast %1 : vector<16xf32> to vector<16x1xf32>
    %cst_1 = arith.constant 6.400000e+01 : f32
    %3 = vector.broadcast %cst_1 : f32 to vector<16x1xf32>
    %4 = arith.divf %2, %3 : vector<16x1xf32>
    %5 = vector.broadcast %4 : vector<16x1xf32> to vector<16x64xf32>
    %6 = arith.subf %0, %5 : vector<16x64xf32>
    %7 = arith.mulf %6, %6 : vector<16x64xf32>
    %cst_2 = arith.constant dense<0.000000e+00> : vector<16xf32>
    %8 = vector.multi_reduction <add>, %7, %cst_2 [1] : vector<16x64xf32> to vector<16xf32>
    %9 = vector.shape_cast %8 : vector<16xf32> to vector<16x1xf32>
    %cst_3 = arith.constant 6.400000e+01 : f32
    %10 = vector.broadcast %cst_3 : f32 to vector<16x1xf32>
    %11 = arith.divf %9, %10 : vector<16x1xf32>
    %12 = vector.broadcast %4 : vector<16x1xf32> to vector<16x64xf32>
    %13 = arith.subf %0, %12 : vector<16x64xf32>
    %cst_4 = arith.constant 9.99999996E-13 : f32
    %14 = vector.broadcast %cst_4 : f32 to vector<16x1xf32>
    %15 = arith.addf %11, %14 : vector<16x1xf32>
    %16 = math.rsqrt %15 : vector<16x1xf32>
    %17 = vector.broadcast %16 : vector<16x1xf32> to vector<16x64xf32>
    %18 = arith.mulf %13, %17 : vector<16x64xf32>
    %c0_5 = arith.constant 0 : index
    %c0_6 = arith.constant 0 : index
    %19 = vector.load %arg2[%c0_5, %c0_6] : memref<1x64xf32, #tpu.memory_space<vmem>>, vector<1x64xf32>
    %20 = vector.broadcast %19 : vector<1x64xf32> to vector<16x64xf32>
    %21 = arith.mulf %18, %20 : vector<16x64xf32>
    %c0_7 = arith.constant 0 : index
    %c0_8 = arith.constant 0 : index
    %22 = vector.load %arg3[%c0_7, %c0_8] : memref<1x64xf32, #tpu.memory_space<vmem>>, vector<1x64xf32>
    %23 = vector.broadcast %22 : vector<1x64xf32> to vector<16x64xf32>
    %24 = arith.addf %21, %23 : vector<16x64xf32>
    %25 = arith.truncf %24 : vector<16x64xf32> to vector<16x64xbf16>
    %c0_9 = arith.constant 0 : index
    %c0_10 = arith.constant 0 : index
    %26 = vector.load %arg4[%c0_9, %c0_10] : memref<16x64xbf16, #tpu.memory_space<vmem>>, vector<16x64xbf16>
    tpu.vector_store %arg4[%c0_9, %c0_10], %25 {strides = array<i32>} : memref<16x64xbf16, #tpu.memory_space<vmem>>, vector<16x64xbf16>,
    return
  }
  func.func @transform_0(%arg0: i32) -> (i32, i32) {
    %c0_i32 = arith.constant 0 : i32
    %c0_i32_0 = arith.constant 0 : i32
    return %arg0, %c0_i32 : i32, i32
  }
  func.func @transform_1(%arg0: i32) -> (i32, i32) {
    %c0_i32 = arith.constant 0 : i32
    %c0_i32_0 = arith.constant 0 : i32
    %c0_i32_1 = arith.constant 0 : i32
    return %c0_i32, %c0_i32_0 : i32, i32
  }
  func.func @transform_2(%arg0: i32) -> (i32, i32) {
    %c0_i32 = arith.constant 0 : i32
    %c0_i32_0 = arith.constant 0 : i32
    %c0_i32_1 = arith.constant 0 : i32
    return %c0_i32, %c0_i32_0 : i32, i32
  }
  func.func @transform_3(%arg0: i32) -> (i32, i32) {
    %c0_i32 = arith.constant 0 : i32
    %c0_i32_0 = arith.constant 0 : i32
    return %arg0, %c0_i32 : i32, i32
  }
}

module attributes {stable_mosaic.version = 11 : i64} {
  func.func @_linear_kernel(%arg0: i32, %arg1: memref<16x64xbf16, #tpu.memory_space<vmem>>, %arg2: memref<64x192xbf16, #tpu.memory_space<vmem>>, %arg3: memref<1x192xf32, #tpu.memory_space<vmem>>, %arg4: memref<16x192xbf16, #tpu.memory_space<vmem>>) attributes {dimension_semantics = [#tpu.dimension_semantics<parallel>], iteration_bounds = array<i64: 1>, scalar_prefetch = 0 : i64, scratch_operands = 0 : i64, tpu.core_type = #tpu.core_type<tc>, window_params = [{transform_indices = @transform_0, window_bounds = array<i64: 16, 64>}, {pipeline_mode = #tpu.pipeline_mode<synchronous>, transform_indices = @transform_1, window_bounds = array<i64: 64, 192>}, {pipeline_mode = #tpu.pipeline_mode<synchronous>, transform_indices = @transform_2, window_bounds = array<i64: 1, 192>}, {transform_indices = @transform_3, window_bounds = array<i64: 16, 192>}]} {
    %c0 = arith.constant 0 : index
    %c0_0 = arith.constant 0 : index
    %0 = vector.load %arg1[%c0, %c0_0] : memref<16x64xbf16, #tpu.memory_space<vmem>>, vector<16x64xbf16>
    %c0_1 = arith.constant 0 : index
    %c0_2 = arith.constant 0 : index
    %1 = vector.load %arg2[%c0_1, %c0_2] : memref<64x192xbf16, #tpu.memory_space<vmem>>, vector<64x192xbf16>
    %cst = arith.constant dense<0.000000e+00> : vector<16x192xf32>
    %2 = tpu.matmul %0, %1, %cst {dimension_numbers = #tpu.dot_dimension_numbers<[1], [0], [0], [1], [0, 0, 1, 1], [], []>} : vector<16x64xbf16>, vector<64x192xbf16>, vector<16x192xf32> -> vector<16x192xf32>
    %c0_3 = arith.constant 0 : index
    %c0_4 = arith.constant 0 : index
    %3 = vector.load %arg3[%c0_3, %c0_4] : memref<1x192xf32, #tpu.memory_space<vmem>>, vector<1x192xf32>
    %4 = vector.broadcast %3 : vector<1x192xf32> to vector<16x192xf32>
    %5 = arith.addf %2, %4 : vector<16x192xf32>
    %6 = arith.truncf %5 : vector<16x192xf32> to vector<16x192xbf16>
    %c0_5 = arith.constant 0 : index
    %c0_6 = arith.constant 0 : index
    %7 = vector.load %arg4[%c0_5, %c0_6] : memref<16x192xbf16, #tpu.memory_space<vmem>>, vector<16x192xbf16>
    tpu.vector_store %arg4[%c0_5, %c0_6], %6 {strides = array<i32>} : memref<16x192xbf16, #tpu.memory_space<vmem>>, vector<16x192xbf16>,
    return
  }
  func.func @transform_0(%arg0: i32) -> (i32, i32) {
    %c0_i32 = arith.constant 0 : i32
    %c0_i32_0 = arith.constant 0 : i32
    return %arg0, %c0_i32 : i32, i32
  }
  func.func @transform_1(%arg0: i32) -> (i32, i32) {
    %c0_i32 = arith.constant 0 : i32
    %c0_i32_0 = arith.constant 0 : i32
    %c0_i32_1 = arith.constant 0 : i32
    return %c0_i32, %c0_i32_0 : i32, i32
  }
  func.func @transform_2(%arg0: i32) -> (i32, i32) {
    %c0_i32 = arith.constant 0 : i32
    %c0_i32_0 = arith.constant 0 : i32
    %c0_i32_1 = arith.constant 0 : i32
    return %c0_i32, %c0_i32_0 : i32, i32
  }
  func.func @transform_3(%arg0: i32) -> (i32, i32) {
    %c0_i32 = arith.constant 0 : i32
    %c0_i32_0 = arith.constant 0 : i32
    return %arg0, %c0_i32 : i32, i32
  }
}

module attributes {stable_mosaic.version = 11 : i64} {
  func.func @_attention_kernel(%arg0: i32, %arg1: memref<1x8x192xbf16, #tpu.memory_space<vmem>>, %arg2: memref<1x1x8xf32, #tpu.memory_space<vmem>>, %arg3: memref<1x8x64xbf16, #tpu.memory_space<vmem>>) attributes {dimension_semantics = [#tpu.dimension_semantics<parallel>], iteration_bounds = array<i64: 2>, scalar_prefetch = 0 : i64, scratch_operands = 0 : i64, tpu.core_type = #tpu.core_type<tc>, window_params = [{transform_indices = @transform_0, window_bounds = array<i64: 1, 8, 192>}, {transform_indices = @transform_1, window_bounds = array<i64: 1, 1, 8>}, {transform_indices = @transform_2, window_bounds = array<i64: 1, 8, 64>}]} {
    %c0 = arith.constant 0 : index
    %c0_0 = arith.constant 0 : index
    %c0_1 = arith.constant 0 : index
    %0 = vector.load %arg2[%c0, %c0_0, %c0_1] : memref<1x1x8xf32, #tpu.memory_space<vmem>>, vector<1x1x8xf32>
    %1 = vector.shape_cast %0 : vector<1x1x8xf32> to vector<1x8xf32>
    %c0_2 = arith.constant 0 : index
    %c0_3 = arith.constant 0 : index
    %c0_4 = arith.constant 0 : index
    %2 = vector.load %arg1[%c0_2, %c0_3, %c0_4] : memref<1x8x192xbf16, #tpu.memory_space<vmem>>, vector<1x8x16xbf16>
    %3 = vector.shape_cast %2 : vector<1x8x16xbf16> to vector<8x16xbf16>
    %c0_5 = arith.constant 0 : index
    %c0_6 = arith.constant 0 : index
    %c64 = arith.constant 64 : index
    %4 = vector.load %arg1[%c0_5, %c0_6, %c64] : memref<1x8x192xbf16, #tpu.memory_space<vmem>>, vector<1x8x16xbf16>
    %5 = vector.shape_cast %4 : vector<1x8x16xbf16> to vector<8x16xbf16>
    %c0_7 = arith.constant 0 : index
    %c0_8 = arith.constant 0 : index
    %c128 = arith.constant 128 : index
    %6 = vector.load %arg1[%c0_7, %c0_8, %c128] : memref<1x8x192xbf16, #tpu.memory_space<vmem>>, vector<1x8x16xbf16>
    %7 = vector.shape_cast %6 : vector<1x8x16xbf16> to vector<8x16xbf16>
    "tpu.trace_start"() <{level = 10 : i32, message = "qd,kd->qk"}> : () -> ()
    %cst = arith.constant dense<0.000000e+00> : vector<8x8xf32>
    %8 = tpu.matmul %3, %5, %cst {dimension_numbers = #tpu.dot_dimension_numbers<[1], [1], [0], [0], [0, 0, 1, 0], [], []>} : vector<8x16xbf16>, vector<8x16xbf16>, vector<8x8xf32> -> vector<8x8xf32>
    "tpu.trace_stop"() : () -> ()
    %9 = vector.broadcast %1 : vector<1x8xf32> to vector<8x8xf32>
    %10 = arith.addf %8, %9 : vector<8x8xf32>
    %cst_9 = arith.constant dense<0xFF800000> : vector<8xf32>
    %11 = vector.multi_reduction <maximumf>, %10, %cst_9 [1] : vector<8x8xf32> to vector<8xf32>
    %12 = vector.shape_cast %11 : vector<8xf32> to vector<8x1xf32>
    %13 = vector.broadcast %12 : vector<8x1xf32> to vector<8x8xf32>
    %14 = arith.subf %10, %13 : vector<8x8xf32>
    %15 = math.exp %14 : vector<8x8xf32>
    %cst_10 = arith.constant dense<0.000000e+00> : vector<8xf32>
    %16 = vector.multi_reduction <add>, %15, %cst_10 [1] : vector<8x8xf32> to vector<8xf32>
    %17 = vector.shape_cast %16 : vector<8xf32> to vector<8x1xf32>
    %18 = arith.truncf %15 : vector<8x8xf32> to vector<8x8xbf16>
    %cst_11 = arith.constant dense<0.000000e+00> : vector<8x16xf32>
    %19 = tpu.matmul %18, %7, %cst_11 {dimension_numbers = #tpu.dot_dimension_numbers<[1], [0], [0], [1], [0, 0, 1, 1], [], []>} : vector<8x8xbf16>, vector<8x16xbf16>, vector<8x16xf32> -> vector<8x16xf32>
    %20 = tpu.reciprocal %17 {approx = true} : vector<8x1xf32> -> vector<8x1xf32>
    %21 = vector.broadcast %20 : vector<8x1xf32> to vector<8x16xf32>
    %22 = arith.mulf %19, %21 : vector<8x16xf32>
    %23 = arith.truncf %22 : vector<8x16xf32> to vector<8x16xbf16>
    %c0_12 = arith.constant 0 : index
    %c0_13 = arith.constant 0 : index
    %c0_14 = arith.constant 0 : index
    %24 = vector.load %arg3[%c0_12, %c0_13, %c0_14] : memref<1x8x64xbf16, #tpu.memory_space<vmem>>, vector<1x8x16xbf16>
    %25 = vector.shape_cast %24 : vector<1x8x16xbf16> to vector<8x16xbf16>
    %26 = vector.shape_cast %23 : vector<8x16xbf16> to vector<1x8x16xbf16>
    tpu.vector_store %arg3[%c0_12, %c0_13, %c0_14], %26 {strides = array<i32>} : memref<1x8x64xbf16, #tpu.memory_space<vmem>>, vector<1x8x16xbf16>,
    %c0_15 = arith.constant 0 : index
    %c0_16 = arith.constant 0 : index
    %c16 = arith.constant 16 : index
    %27 = vector.load %arg1[%c0_15, %c0_16, %c16] : memref<1x8x192xbf16, #tpu.memory_space<vmem>>, vector<1x8x16xbf16>
    %28 = vector.shape_cast %27 : vector<1x8x16xbf16> to vector<8x16xbf16>
    %c0_17 = arith.constant 0 : index
    %c0_18 = arith.constant 0 : index
    %c80 = arith.constant 80 : index
    %29 = vector.load %arg1[%c0_17, %c0_18, %c80] : memref<1x8x192xbf16, #tpu.memory_space<vmem>>, vector<1x8x16xbf16>
    %30 = vector.shape_cast %29 : vector<1x8x16xbf16> to vector<8x16xbf16>
    %c0_19 = arith.constant 0 : index
    %c0_20 = arith.constant 0 : index
    %c144 = arith.constant 144 : index
    %31 = vector.load %arg1[%c0_19, %c0_20, %c144] : memref<1x8x192xbf16, #tpu.memory_space<vmem>>, vector<1x8x16xbf16>
    %32 = vector.shape_cast %31 : vector<1x8x16xbf16> to vector<8x16xbf16>
    "tpu.trace_start"() <{level = 10 : i32, message = "qd,kd->qk"}> : () -> ()
    %cst_21 = arith.constant dense<0.000000e+00> : vector<8x8xf32>
    %33 = tpu.matmul %28, %30, %cst_21 {dimension_numbers = #tpu.dot_dimension_numbers<[1], [1], [0], [0], [0, 0, 1, 0], [], []>} : vector<8x16xbf16>, vector<8x16xbf16>, vector<8x8xf32> -> vector<8x8xf32>
    "tpu.trace_stop"() : () -> ()
    %34 = vector.broadcast %1 : vector<1x8xf32> to vector<8x8xf32>
    %35 = arith.addf %33, %34 : vector<8x8xf32>
    %cst_22 = arith.constant dense<0xFF800000> : vector<8xf32>
    %36 = vector.multi_reduction <maximumf>, %35, %cst_22 [1] : vector<8x8xf32> to vector<8xf32>
    %37 = vector.shape_cast %36 : vector<8xf32> to vector<8x1xf32>
    %38 = vector.broadcast %37 : vector<8x1xf32> to vector<8x8xf32>
    %39 = arith.subf %35, %38 : vector<8x8xf32>
    %40 = math.exp %39 : vector<8x8xf32>
    %cst_23 = arith.constant dense<0.000000e+00> : vector<8xf32>
    %41 = vector.multi_reduction <add>, %40, %cst_23 [1] : vector<8x8xf32> to vector<8xf32>
    %42 = vector.shape_cast %41 : vector<8xf32> to vector<8x1xf32>
    %43 = arith.truncf %40 : vector<8x8xf32> to vector<8x8xbf16>
    %cst_24 = arith.constant dense<0.000000e+00> : vector<8x16xf32>
    %44 = tpu.matmul %43, %32, %cst_24 {dimension_numbers = #tpu.dot_dimension_numbers<[1], [0], [0], [1], [0, 0, 1, 1], [], []>} : vector<8x8xbf16>, vector<8x16xbf16>, vector<8x16xf32> -> vector<8x16xf32>
    %45 = tpu.reciprocal %42 {approx = true} : vector<8x1xf32> -> vector<8x1xf32>
    %46 = vector.broadcast %45 : vector<8x1xf32> to vector<8x16xf32>
    %47 = arith.mulf %44, %46 : vector<8x16xf32>
    %48 = arith.truncf %47 : vector<8x16xf32> to vector<8x16xbf16>
    %c0_25 = arith.constant 0 : index
    %c0_26 = arith.constant 0 : index
    %c16_27 = arith.constant 16 : index
    %49 = vector.load %arg3[%c0_25, %c0_26, %c16_27] : memref<1x8x64xbf16, #tpu.memory_space<vmem>>, vector<1x8x16xbf16>
    %50 = vector.shape_cast %49 : vector<1x8x16xbf16> to vector<8x16xbf16>
    %51 = vector.shape_cast %48 : vector<8x16xbf16> to vector<1x8x16xbf16>
    tpu.vector_store %arg3[%c0_25, %c0_26, %c16_27], %51 {strides = array<i32>} : memref<1x8x64xbf16, #tpu.memory_space<vmem>>, vector<1x8x16xbf16>,
    %c0_28 = arith.constant 0 : index
    %c0_29 = arith.constant 0 : index
    %c32 = arith.constant 32 : index
    %52 = vector.load %arg1[%c0_28, %c0_29, %c32] : memref<1x8x192xbf16, #tpu.memory_space<vmem>>, vector<1x8x16xbf16>
    %53 = vector.shape_cast %52 : vector<1x8x16xbf16> to vector<8x16xbf16>
    %c0_30 = arith.constant 0 : index
    %c0_31 = arith.constant 0 : index
    %c96 = arith.constant 96 : index
    %54 = vector.load %arg1[%c0_30, %c0_31, %c96] : memref<1x8x192xbf16, #tpu.memory_space<vmem>>, vector<1x8x16xbf16>
    %55 = vector.shape_cast %54 : vector<1x8x16xbf16> to vector<8x16xbf16>
    %c0_32 = arith.constant 0 : index
    %c0_33 = arith.constant 0 : index
    %c160 = arith.constant 160 : index
    %56 = vector.load %arg1[%c0_32, %c0_33, %c160] : memref<1x8x192xbf16, #tpu.memory_space<vmem>>, vector<1x8x16xbf16>
    %57 = vector.shape_cast %56 : vector<1x8x16xbf16> to vector<8x16xbf16>
    "tpu.trace_start"() <{level = 10 : i32, message = "qd,kd->qk"}> : () -> ()
    %cst_34 = arith.constant dense<0.000000e+00> : vector<8x8xf32>
    %58 = tpu.matmul %53, %55, %cst_34 {dimension_numbers = #tpu.dot_dimension_numbers<[1], [1], [0], [0], [0, 0, 1, 0], [], []>} : vector<8x16xbf16>, vector<8x16xbf16>, vector<8x8xf32> -> vector<8x8xf32>
    "tpu.trace_stop"() : () -> ()
    %59 = vector.broadcast %1 : vector<1x8xf32> to vector<8x8xf32>
    %60 = arith.addf %58, %59 : vector<8x8xf32>
    %cst_35 = arith.constant dense<0xFF800000> : vector<8xf32>
    %61 = vector.multi_reduction <maximumf>, %60, %cst_35 [1] : vector<8x8xf32> to vector<8xf32>
    %62 = vector.shape_cast %61 : vector<8xf32> to vector<8x1xf32>
    %63 = vector.broadcast %62 : vector<8x1xf32> to vector<8x8xf32>
    %64 = arith.subf %60, %63 : vector<8x8xf32>
    %65 = math.exp %64 : vector<8x8xf32>
    %cst_36 = arith.constant dense<0.000000e+00> : vector<8xf32>
    %66 = vector.multi_reduction <add>, %65, %cst_36 [1] : vector<8x8xf32> to vector<8xf32>
    %67 = vector.shape_cast %66 : vector<8xf32> to vector<8x1xf32>
    %68 = arith.truncf %65 : vector<8x8xf32> to vector<8x8xbf16>
    %cst_37 = arith.constant dense<0.000000e+00> : vector<8x16xf32>
    %69 = tpu.matmul %68, %57, %cst_37 {dimension_numbers = #tpu.dot_dimension_numbers<[1], [0], [0], [1], [0, 0, 1, 1], [], []>} : vector<8x8xbf16>, vector<8x16xbf16>, vector<8x16xf32> -> vector<8x16xf32>
    %70 = tpu.reciprocal %67 {approx = true} : vector<8x1xf32> -> vector<8x1xf32>
    %71 = vector.broadcast %70 : vector<8x1xf32> to vector<8x16xf32>
    %72 = arith.mulf %69, %71 : vector<8x16xf32>
    %73 = arith.truncf %72 : vector<8x16xf32> to vector<8x16xbf16>
    %c0_38 = arith.constant 0 : index
    %c0_39 = arith.constant 0 : index
    %c32_40 = arith.constant 32 : index
    %74 = vector.load %arg3[%c0_38, %c0_39, %c32_40] : memref<1x8x64xbf16, #tpu.memory_space<vmem>>, vector<1x8x16xbf16>
    %75 = vector.shape_cast %74 : vector<1x8x16xbf16> to vector<8x16xbf16>
    %76 = vector.shape_cast %73 : vector<8x16xbf16> to vector<1x8x16xbf16>
    tpu.vector_store %arg3[%c0_38, %c0_39, %c32_40], %76 {strides = array<i32>} : memref<1x8x64xbf16, #tpu.memory_space<vmem>>, vector<1x8x16xbf16>,
    %c0_41 = arith.constant 0 : index
    %c0_42 = arith.constant 0 : index
    %c48 = arith.constant 48 : index
    %77 = vector.load %arg1[%c0_41, %c0_42, %c48] : memref<1x8x192xbf16, #tpu.memory_space<vmem>>, vector<1x8x16xbf16>
    %78 = vector.shape_cast %77 : vector<1x8x16xbf16> to vector<8x16xbf16>
    %c0_43 = arith.constant 0 : index
    %c0_44 = arith.constant 0 : index
    %c112 = arith.constant 112 : index
    %79 = vector.load %arg1[%c0_43, %c0_44, %c112] : memref<1x8x192xbf16, #tpu.memory_space<vmem>>, vector<1x8x16xbf16>
    %80 = vector.shape_cast %79 : vector<1x8x16xbf16> to vector<8x16xbf16>
    %c0_45 = arith.constant 0 : index
    %c0_46 = arith.constant 0 : index
    %c176 = arith.constant 176 : index
    %81 = vector.load %arg1[%c0_45, %c0_46, %c176] : memref<1x8x192xbf16, #tpu.memory_space<vmem>>, vector<1x8x16xbf16>
    %82 = vector.shape_cast %81 : vector<1x8x16xbf16> to vector<8x16xbf16>
    "tpu.trace_start"() <{level = 10 : i32, message = "qd,kd->qk"}> : () -> ()
    %cst_47 = arith.constant dense<0.000000e+00> : vector<8x8xf32>
    %83 = tpu.matmul %78, %80, %cst_47 {dimension_numbers = #tpu.dot_dimension_numbers<[1], [1], [0], [0], [0, 0, 1, 0], [], []>} : vector<8x16xbf16>, vector<8x16xbf16>, vector<8x8xf32> -> vector<8x8xf32>
    "tpu.trace_stop"() : () -> ()
    %84 = vector.broadcast %1 : vector<1x8xf32> to vector<8x8xf32>
    %85 = arith.addf %83, %84 : vector<8x8xf32>
    %cst_48 = arith.constant dense<0xFF800000> : vector<8xf32>
    %86 = vector.multi_reduction <maximumf>, %85, %cst_48 [1] : vector<8x8xf32> to vector<8xf32>
    %87 = vector.shape_cast %86 : vector<8xf32> to vector<8x1xf32>
    %88 = vector.broadcast %87 : vector<8x1xf32> to vector<8x8xf32>
    %89 = arith.subf %85, %88 : vector<8x8xf32>
    %90 = math.exp %89 : vector<8x8xf32>
    %cst_49 = arith.constant dense<0.000000e+00> : vector<8xf32>
    %91 = vector.multi_reduction <add>, %90, %cst_49 [1] : vector<8x8xf32> to vector<8xf32>
    %92 = vector.shape_cast %91 : vector<8xf32> to vector<8x1xf32>
    %93 = arith.truncf %90 : vector<8x8xf32> to vector<8x8xbf16>
    %cst_50 = arith.constant dense<0.000000e+00> : vector<8x16xf32>
    %94 = tpu.matmul %93, %82, %cst_50 {dimension_numbers = #tpu.dot_dimension_numbers<[1], [0], [0], [1], [0, 0, 1, 1], [], []>} : vector<8x8xbf16>, vector<8x16xbf16>, vector<8x16xf32> -> vector<8x16xf32>
    %95 = tpu.reciprocal %92 {approx = true} : vector<8x1xf32> -> vector<8x1xf32>
    %96 = vector.broadcast %95 : vector<8x1xf32> to vector<8x16xf32>
    %97 = arith.mulf %94, %96 : vector<8x16xf32>
    %98 = arith.truncf %97 : vector<8x16xf32> to vector<8x16xbf16>
    %c0_51 = arith.constant 0 : index
    %c0_52 = arith.constant 0 : index
    %c48_53 = arith.constant 48 : index
    %99 = vector.load %arg3[%c0_51, %c0_52, %c48_53] : memref<1x8x64xbf16, #tpu.memory_space<vmem>>, vector<1x8x16xbf16>
    %100 = vector.shape_cast %99 : vector<1x8x16xbf16> to vector<8x16xbf16>
    %101 = vector.shape_cast %98 : vector<8x16xbf16> to vector<1x8x16xbf16>
    tpu.vector_store %arg3[%c0_51, %c0_52, %c48_53], %101 {strides = array<i32>} : memref<1x8x64xbf16, #tpu.memory_space<vmem>>, vector<1x8x16xbf16>,
    return
  }
  func.func @transform_0(%arg0: i32) -> (i32, i32, i32) {
    %c0_i32 = arith.constant 0 : i32
    %c0_i32_0 = arith.constant 0 : i32
    %c0_i32_1 = arith.constant 0 : i32
    return %arg0, %c0_i32, %c0_i32_0 : i32, i32, i32
  }
  func.func @transform_1(%arg0: i32) -> (i32, i32, i32) {
    %c0_i32 = arith.constant 0 : i32
    %c0_i32_0 = arith.constant 0 : i32
    %c0_i32_1 = arith.constant 0 : i32
    return %arg0, %c0_i32, %c0_i32_0 : i32, i32, i32
  }
  func.func @transform_2(%arg0: i32) -> (i32, i32, i32) {
    %c0_i32 = arith.constant 0 : i32
    %c0_i32_0 = arith.constant 0 : i32
    %c0_i32_1 = arith.constant 0 : i32
    return %arg0, %c0_i32, %c0_i32_0 : i32, i32, i32
  }
}

module attributes {stable_mosaic.version = 11 : i64} {
  func.func @_linear_ln_res_kernel(%arg0: i32, %arg1: memref<16x64xbf16, #tpu.memory_space<vmem>>, %arg2: memref<64x64xbf16, #tpu.memory_space<vmem>>, %arg3: memref<1x64xf32, #tpu.memory_space<vmem>>, %arg4: memref<16x64xbf16, #tpu.memory_space<vmem>>, %arg5: memref<1x64xf32, #tpu.memory_space<vmem>>, %arg6: memref<1x64xf32, #tpu.memory_space<vmem>>, %arg7: memref<16x64xbf16, #tpu.memory_space<vmem>>) attributes {dimension_semantics = [#tpu.dimension_semantics<parallel>], iteration_bounds = array<i64: 1>, scalar_prefetch = 0 : i64, scratch_operands = 0 : i64, tpu.core_type = #tpu.core_type<tc>, window_params = [{transform_indices = @transform_0, window_bounds = array<i64: 16, 64>}, {pipeline_mode = #tpu.pipeline_mode<synchronous>, transform_indices = @transform_1, window_bounds = array<i64: 64, 64>}, {pipeline_mode = #tpu.pipeline_mode<synchronous>, transform_indices = @transform_2, window_bounds = array<i64: 1, 64>}, {transform_indices = @transform_3, window_bounds = array<i64: 16, 64>}, {pipeline_mode = #tpu.pipeline_mode<synchronous>, transform_indices = @transform_4, window_bounds = array<i64: 1, 64>}, {pipeline_mode = #tpu.pipeline_mode<synchronous>, transform_indices = @transform_5, window_bounds = array<i64: 1, 64>}, {transform_indices = @transform_6, window_bounds = array<i64: 16, 64>}]} {
    %c0 = arith.constant 0 : index
    %c0_0 = arith.constant 0 : index
    %0 = vector.load %arg1[%c0, %c0_0] : memref<16x64xbf16, #tpu.memory_space<vmem>>, vector<16x64xbf16>
    %c0_1 = arith.constant 0 : index
    %c0_2 = arith.constant 0 : index
    %1 = vector.load %arg2[%c0_1, %c0_2] : memref<64x64xbf16, #tpu.memory_space<vmem>>, vector<64x64xbf16>
    %cst = arith.constant dense<0.000000e+00> : vector<16x64xf32>
    %2 = tpu.matmul %0, %1, %cst {dimension_numbers = #tpu.dot_dimension_numbers<[1], [0], [0], [1], [0, 0, 1, 1], [], []>} : vector<16x64xbf16>, vector<64x64xbf16>, vector<16x64xf32> -> vector<16x64xf32>
    %c0_3 = arith.constant 0 : index
    %c0_4 = arith.constant 0 : index
    %3 = vector.load %arg3[%c0_3, %c0_4] : memref<1x64xf32, #tpu.memory_space<vmem>>, vector<1x64xf32>
    %4 = vector.broadcast %3 : vector<1x64xf32> to vector<16x64xf32>
    %5 = arith.addf %2, %4 : vector<16x64xf32>
    %c0_5 = arith.constant 0 : index
    %c0_6 = arith.constant 0 : index
    %6 = vector.load %arg4[%c0_5, %c0_6] : memref<16x64xbf16, #tpu.memory_space<vmem>>, vector<16x64xbf16>
    %7 = arith.extf %6 : vector<16x64xbf16> to vector<16x64xf32>
    %8 = arith.addf %5, %7 : vector<16x64xf32>
    %cst_7 = arith.constant dense<0.000000e+00> : vector<16xf32>
    %9 = vector.multi_reduction <add>, %8, %cst_7 [1] : vector<16x64xf32> to vector<16xf32>
    %10 = vector.shape_cast %9 : vector<16xf32> to vector<16x1xf32>
    %cst_8 = arith.constant 6.400000e+01 : f32
    %11 = vector.broadcast %cst_8 : f32 to vector<16x1xf32>
    %12 = arith.divf %10, %11 : vector<16x1xf32>
    %13 = vector.broadcast %12 : vector<16x1xf32> to vector<16x64xf32>
    %14 = arith.subf %8, %13 : vector<16x64xf32>
    %15 = arith.mulf %14, %14 : vector<16x64xf32>
    %cst_9 = arith.constant dense<0.000000e+00> : vector<16xf32>
    %16 = vector.multi_reduction <add>, %15, %cst_9 [1] : vector<16x64xf32> to vector<16xf32>
    %17 = vector.shape_cast %16 : vector<16xf32> to vector<16x1xf32>
    %cst_10 = arith.constant 6.400000e+01 : f32
    %18 = vector.broadcast %cst_10 : f32 to vector<16x1xf32>
    %19 = arith.divf %17, %18 : vector<16x1xf32>
    %20 = vector.broadcast %12 : vector<16x1xf32> to vector<16x64xf32>
    %21 = arith.subf %8, %20 : vector<16x64xf32>
    %cst_11 = arith.constant 9.99999996E-13 : f32
    %22 = vector.broadcast %cst_11 : f32 to vector<16x1xf32>
    %23 = arith.addf %19, %22 : vector<16x1xf32>
    %24 = math.rsqrt %23 : vector<16x1xf32>
    %25 = vector.broadcast %24 : vector<16x1xf32> to vector<16x64xf32>
    %26 = arith.mulf %21, %25 : vector<16x64xf32>
    %c0_12 = arith.constant 0 : index
    %c0_13 = arith.constant 0 : index
    %27 = vector.load %arg5[%c0_12, %c0_13] : memref<1x64xf32, #tpu.memory_space<vmem>>, vector<1x64xf32>
    %28 = vector.broadcast %27 : vector<1x64xf32> to vector<16x64xf32>
    %29 = arith.mulf %26, %28 : vector<16x64xf32>
    %c0_14 = arith.constant 0 : index
    %c0_15 = arith.constant 0 : index
    %30 = vector.load %arg6[%c0_14, %c0_15] : memref<1x64xf32, #tpu.memory_space<vmem>>, vector<1x64xf32>
    %31 = vector.broadcast %30 : vector<1x64xf32> to vector<16x64xf32>
    %32 = arith.addf %29, %31 : vector<16x64xf32>
    %33 = arith.truncf %32 : vector<16x64xf32> to vector<16x64xbf16>
    %c0_16 = arith.constant 0 : index
    %c0_17 = arith.constant 0 : index
    %34 = vector.load %arg7[%c0_16, %c0_17] : memref<16x64xbf16, #tpu.memory_space<vmem>>, vector<16x64xbf16>
    tpu.vector_store %arg7[%c0_16, %c0_17], %33 {strides = array<i32>} : memref<16x64xbf16, #tpu.memory_space<vmem>>, vector<16x64xbf16>,
    return
  }
  func.func @transform_0(%arg0: i32) -> (i32, i32) {
    %c0_i32 = arith.constant 0 : i32
    %c0_i32_0 = arith.constant 0 : i32
    return %arg0, %c0_i32 : i32, i32
  }
  func.func @transform_1(%arg0: i32) -> (i32, i32) {
    %c0_i32 = arith.constant 0 : i32
    %c0_i32_0 = arith.constant 0 : i32
    %c0_i32_1 = arith.constant 0 : i32
    return %c0_i32, %c0_i32_0 : i32, i32
  }
  func.func @transform_2(%arg0: i32) -> (i32, i32) {
    %c0_i32 = arith.constant 0 : i32
    %c0_i32_0 = arith.constant 0 : i32
    %c0_i32_1 = arith.constant 0 : i32
    return %c0_i32, %c0_i32_0 : i32, i32
  }
  func.func @transform_3(%arg0: i32) -> (i32, i32) {
    %c0_i32 = arith.constant 0 : i32
    %c0_i32_0 = arith.constant 0 : i32
    return %arg0, %c0_i32 : i32, i32
  }
  func.func @transform_4(%arg0: i32) -> (i32, i32) {
    %c0_i32 = arith.constant 0 : i32
    %c0_i32_0 = arith.constant 0 : i32
    %c0_i32_1 = arith.constant 0 : i32
    return %c0_i32, %c0_i32_0 : i32, i32
  }
  func.func @transform_5(%arg0: i32) -> (i32, i32) {
    %c0_i32 = arith.constant 0 : i32
    %c0_i32_0 = arith.constant 0 : i32
    %c0_i32_1 = arith.constant 0 : i32
    return %c0_i32, %c0_i32_0 : i32, i32
  }
  func.func @transform_6(%arg0: i32) -> (i32, i32) {
    %c0_i32 = arith.constant 0 : i32
    %c0_i32_0 = arith.constant 0 : i32
    return %arg0, %c0_i32 : i32, i32
  }
}

module attributes {stable_mosaic.version = 11 : i64} {
  func.func @_linear_kernel(%arg0: i32, %arg1: memref<16x64xbf16, #tpu.memory_space<vmem>>, %arg2: memref<64x128xbf16, #tpu.memory_space<vmem>>, %arg3: memref<1x128xf32, #tpu.memory_space<vmem>>, %arg4: memref<16x128xbf16, #tpu.memory_space<vmem>>) attributes {dimension_semantics = [#tpu.dimension_semantics<parallel>], iteration_bounds = array<i64: 1>, scalar_prefetch = 0 : i64, scratch_operands = 0 : i64, tpu.core_type = #tpu.core_type<tc>, window_params = [{transform_indices = @transform_0, window_bounds = array<i64: 16, 64>}, {pipeline_mode = #tpu.pipeline_mode<synchronous>, transform_indices = @transform_1, window_bounds = array<i64: 64, 128>}, {pipeline_mode = #tpu.pipeline_mode<synchronous>, transform_indices = @transform_2, window_bounds = array<i64: 1, 128>}, {transform_indices = @transform_3, window_bounds = array<i64: 16, 128>}]} {
    %c0 = arith.constant 0 : index
    %c0_0 = arith.constant 0 : index
    %0 = vector.load %arg1[%c0, %c0_0] : memref<16x64xbf16, #tpu.memory_space<vmem>>, vector<16x64xbf16>
    %c0_1 = arith.constant 0 : index
    %c0_2 = arith.constant 0 : index
    %1 = vector.load %arg2[%c0_1, %c0_2] : memref<64x128xbf16, #tpu.memory_space<vmem>>, vector<64x128xbf16>
    %cst = arith.constant dense<0.000000e+00> : vector<16x128xf32>
    %2 = tpu.matmul %0, %1, %cst {dimension_numbers = #tpu.dot_dimension_numbers<[1], [0], [0], [1], [0, 0, 1, 1], [], []>} : vector<16x64xbf16>, vector<64x128xbf16>, vector<16x128xf32> -> vector<16x128xf32>
    %c0_3 = arith.constant 0 : index
    %c0_4 = arith.constant 0 : index
    %3 = vector.load %arg3[%c0_3, %c0_4] : memref<1x128xf32, #tpu.memory_space<vmem>>, vector<1x128xf32>
    %4 = vector.broadcast %3 : vector<1x128xf32> to vector<16x128xf32>
    %5 = arith.addf %2, %4 : vector<16x128xf32>
    %6 = arith.mulf %5, %5 : vector<16x128xf32>
    %7 = arith.mulf %5, %6 : vector<16x128xf32>
    %cst_5 = arith.constant 4.471500e-02 : f32
    %8 = vector.broadcast %cst_5 : f32 to vector<16x128xf32>
    %9 = arith.mulf %8, %7 : vector<16x128xf32>
    %10 = arith.addf %5, %9 : vector<16x128xf32>
    %cst_6 = arith.constant 0.797884583 : f32
    %11 = vector.broadcast %cst_6 : f32 to vector<16x128xf32>
    %12 = arith.mulf %11, %10 : vector<16x128xf32>
    %13 = math.tanh %12 : vector<16x128xf32>
    %cst_7 = arith.constant 1.000000e+00 : f32
    %14 = vector.broadcast %cst_7 : f32 to vector<16x128xf32>
    %15 = arith.addf %14, %13 : vector<16x128xf32>
    %cst_8 = arith.constant 5.000000e-01 : f32
    %16 = vector.broadcast %cst_8 : f32 to vector<16x128xf32>
    %17 = arith.mulf %16, %15 : vector<16x128xf32>
    %18 = arith.mulf %5, %17 : vector<16x128xf32>
    %19 = arith.truncf %18 : vector<16x128xf32> to vector<16x128xbf16>
    %c0_9 = arith.constant 0 : index
    %c0_10 = arith.constant 0 : index
    %20 = vector.load %arg4[%c0_9, %c0_10] : memref<16x128xbf16, #tpu.memory_space<vmem>>, vector<16x128xbf16>
    tpu.vector_store %arg4[%c0_9, %c0_10], %19 {strides = array<i32>} : memref<16x128xbf16, #tpu.memory_space<vmem>>, vector<16x128xbf16>,
    return
  }
  func.func @transform_0(%arg0: i32) -> (i32, i32) {
    %c0_i32 = arith.constant 0 : i32
    %c0_i32_0 = arith.constant 0 : i32
    return %arg0, %c0_i32 : i32, i32
  }
  func.func @transform_1(%arg0: i32) -> (i32, i32) {
    %c0_i32 = arith.constant 0 : i32
    %c0_i32_0 = arith.constant 0 : i32
    %c0_i32_1 = arith.constant 0 : i32
    return %c0_i32, %c0_i32_0 : i32, i32
  }
  func.func @transform_2(%arg0: i32) -> (i32, i32) {
    %c0_i32 = arith.constant 0 : i32
    %c0_i32_0 = arith.constant 0 : i32
    %c0_i32_1 = arith.constant 0 : i32
    return %c0_i32, %c0_i32_0 : i32, i32
  }
  func.func @transform_3(%arg0: i32) -> (i32, i32) {
    %c0_i32 = arith.constant 0 : i32
    %c0_i32_0 = arith.constant 0 : i32
    return %arg0, %c0_i32 : i32, i32
  }
}

module attributes {stable_mosaic.version = 11 : i64} {
  func.func @_linear_ln_res_kernel(%arg0: i32, %arg1: memref<16x128xbf16, #tpu.memory_space<vmem>>, %arg2: memref<128x64xbf16, #tpu.memory_space<vmem>>, %arg3: memref<1x64xf32, #tpu.memory_space<vmem>>, %arg4: memref<16x64xbf16, #tpu.memory_space<vmem>>, %arg5: memref<1x64xf32, #tpu.memory_space<vmem>>, %arg6: memref<1x64xf32, #tpu.memory_space<vmem>>, %arg7: memref<16x64xbf16, #tpu.memory_space<vmem>>) attributes {dimension_semantics = [#tpu.dimension_semantics<parallel>], iteration_bounds = array<i64: 1>, scalar_prefetch = 0 : i64, scratch_operands = 0 : i64, tpu.core_type = #tpu.core_type<tc>, window_params = [{transform_indices = @transform_0, window_bounds = array<i64: 16, 128>}, {pipeline_mode = #tpu.pipeline_mode<synchronous>, transform_indices = @transform_1, window_bounds = array<i64: 128, 64>}, {pipeline_mode = #tpu.pipeline_mode<synchronous>, transform_indices = @transform_2, window_bounds = array<i64: 1, 64>}, {transform_indices = @transform_3, window_bounds = array<i64: 16, 64>}, {pipeline_mode = #tpu.pipeline_mode<synchronous>, transform_indices = @transform_4, window_bounds = array<i64: 1, 64>}, {pipeline_mode = #tpu.pipeline_mode<synchronous>, transform_indices = @transform_5, window_bounds = array<i64: 1, 64>}, {transform_indices = @transform_6, window_bounds = array<i64: 16, 64>}]} {
    %c0 = arith.constant 0 : index
    %c0_0 = arith.constant 0 : index
    %0 = vector.load %arg1[%c0, %c0_0] : memref<16x128xbf16, #tpu.memory_space<vmem>>, vector<16x128xbf16>
    %c0_1 = arith.constant 0 : index
    %c0_2 = arith.constant 0 : index
    %1 = vector.load %arg2[%c0_1, %c0_2] : memref<128x64xbf16, #tpu.memory_space<vmem>>, vector<128x64xbf16>
    %cst = arith.constant dense<0.000000e+00> : vector<16x64xf32>
    %2 = tpu.matmul %0, %1, %cst {dimension_numbers = #tpu.dot_dimension_numbers<[1], [0], [0], [1], [0, 0, 1, 1], [], []>} : vector<16x128xbf16>, vector<128x64xbf16>, vector<16x64xf32> -> vector<16x64xf32>
    %c0_3 = arith.constant 0 : index
    %c0_4 = arith.constant 0 : index
    %3 = vector.load %arg3[%c0_3, %c0_4] : memref<1x64xf32, #tpu.memory_space<vmem>>, vector<1x64xf32>
    %4 = vector.broadcast %3 : vector<1x64xf32> to vector<16x64xf32>
    %5 = arith.addf %2, %4 : vector<16x64xf32>
    %c0_5 = arith.constant 0 : index
    %c0_6 = arith.constant 0 : index
    %6 = vector.load %arg4[%c0_5, %c0_6] : memref<16x64xbf16, #tpu.memory_space<vmem>>, vector<16x64xbf16>
    %7 = arith.extf %6 : vector<16x64xbf16> to vector<16x64xf32>
    %8 = arith.addf %5, %7 : vector<16x64xf32>
    %cst_7 = arith.constant dense<0.000000e+00> : vector<16xf32>
    %9 = vector.multi_reduction <add>, %8, %cst_7 [1] : vector<16x64xf32> to vector<16xf32>
    %10 = vector.shape_cast %9 : vector<16xf32> to vector<16x1xf32>
    %cst_8 = arith.constant 6.400000e+01 : f32
    %11 = vector.broadcast %cst_8 : f32 to vector<16x1xf32>
    %12 = arith.divf %10, %11 : vector<16x1xf32>
    %13 = vector.broadcast %12 : vector<16x1xf32> to vector<16x64xf32>
    %14 = arith.subf %8, %13 : vector<16x64xf32>
    %15 = arith.mulf %14, %14 : vector<16x64xf32>
    %cst_9 = arith.constant dense<0.000000e+00> : vector<16xf32>
    %16 = vector.multi_reduction <add>, %15, %cst_9 [1] : vector<16x64xf32> to vector<16xf32>
    %17 = vector.shape_cast %16 : vector<16xf32> to vector<16x1xf32>
    %cst_10 = arith.constant 6.400000e+01 : f32
    %18 = vector.broadcast %cst_10 : f32 to vector<16x1xf32>
    %19 = arith.divf %17, %18 : vector<16x1xf32>
    %20 = vector.broadcast %12 : vector<16x1xf32> to vector<16x64xf32>
    %21 = arith.subf %8, %20 : vector<16x64xf32>
    %cst_11 = arith.constant 9.99999996E-13 : f32
    %22 = vector.broadcast %cst_11 : f32 to vector<16x1xf32>
    %23 = arith.addf %19, %22 : vector<16x1xf32>
    %24 = math.rsqrt %23 : vector<16x1xf32>
    %25 = vector.broadcast %24 : vector<16x1xf32> to vector<16x64xf32>
    %26 = arith.mulf %21, %25 : vector<16x64xf32>
    %c0_12 = arith.constant 0 : index
    %c0_13 = arith.constant 0 : index
    %27 = vector.load %arg5[%c0_12, %c0_13] : memref<1x64xf32, #tpu.memory_space<vmem>>, vector<1x64xf32>
    %28 = vector.broadcast %27 : vector<1x64xf32> to vector<16x64xf32>
    %29 = arith.mulf %26, %28 : vector<16x64xf32>
    %c0_14 = arith.constant 0 : index
    %c0_15 = arith.constant 0 : index
    %30 = vector.load %arg6[%c0_14, %c0_15] : memref<1x64xf32, #tpu.memory_space<vmem>>, vector<1x64xf32>
    %31 = vector.broadcast %30 : vector<1x64xf32> to vector<16x64xf32>
    %32 = arith.addf %29, %31 : vector<16x64xf32>
    %33 = arith.truncf %32 : vector<16x64xf32> to vector<16x64xbf16>
    %c0_16 = arith.constant 0 : index
    %c0_17 = arith.constant 0 : index
    %34 = vector.load %arg7[%c0_16, %c0_17] : memref<16x64xbf16, #tpu.memory_space<vmem>>, vector<16x64xbf16>
    tpu.vector_store %arg7[%c0_16, %c0_17], %33 {strides = array<i32>} : memref<16x64xbf16, #tpu.memory_space<vmem>>, vector<16x64xbf16>,
    return
  }
  func.func @transform_0(%arg0: i32) -> (i32, i32) {
    %c0_i32 = arith.constant 0 : i32
    %c0_i32_0 = arith.constant 0 : i32
    return %arg0, %c0_i32 : i32, i32
  }
  func.func @transform_1(%arg0: i32) -> (i32, i32) {
    %c0_i32 = arith.constant 0 : i32
    %c0_i32_0 = arith.constant 0 : i32
    %c0_i32_1 = arith.constant 0 : i32
    return %c0_i32, %c0_i32_0 : i32, i32
  }
  func.func @transform_2(%arg0: i32) -> (i32, i32) {
    %c0_i32 = arith.constant 0 : i32
    %c0_i32_0 = arith.constant 0 : i32
    %c0_i32_1 = arith.constant 0 : i32
    return %c0_i32, %c0_i32_0 : i32, i32
  }
  func.func @transform_3(%arg0: i32) -> (i32, i32) {
    %c0_i32 = arith.constant 0 : i32
    %c0_i32_0 = arith.constant 0 : i32
    return %arg0, %c0_i32 : i32, i32
  }
  func.func @transform_4(%arg0: i32) -> (i32, i32) {
    %c0_i32 = arith.constant 0 : i32
    %c0_i32_0 = arith.constant 0 : i32
    %c0_i32_1 = arith.constant 0 : i32
    return %c0_i32, %c0_i32_0 : i32, i32
  }
  func.func @transform_5(%arg0: i32) -> (i32, i32) {
    %c0_i32 = arith.constant 0 : i32
    %c0_i32_0 = arith.constant 0 : i32
    %c0_i32_1 = arith.constant 0 : i32
    return %c0_i32, %c0_i32_0 : i32, i32
  }
  func.func @transform_6(%arg0: i32) -> (i32, i32) {
    %c0_i32 = arith.constant 0 : i32
    %c0_i32_0 = arith.constant 0 : i32
    return %arg0, %c0_i32 : i32, i32
  }
}

module attributes {stable_mosaic.version = 11 : i64} {
  func.func @_linear_kernel(%arg0: i32, %arg1: memref<16x64xbf16, #tpu.memory_space<vmem>>, %arg2: memref<64x256xbf16, #tpu.memory_space<vmem>>, %arg3: memref<1x256xf32, #tpu.memory_space<vmem>>, %arg4: memref<16x256xf32, #tpu.memory_space<vmem>>) attributes {dimension_semantics = [#tpu.dimension_semantics<parallel>], iteration_bounds = array<i64: 1>, scalar_prefetch = 0 : i64, scratch_operands = 0 : i64, tpu.core_type = #tpu.core_type<tc>, window_params = [{transform_indices = @transform_0, window_bounds = array<i64: 16, 64>}, {pipeline_mode = #tpu.pipeline_mode<synchronous>, transform_indices = @transform_1, window_bounds = array<i64: 64, 256>}, {pipeline_mode = #tpu.pipeline_mode<synchronous>, transform_indices = @transform_2, window_bounds = array<i64: 1, 256>}, {transform_indices = @transform_3, window_bounds = array<i64: 16, 256>}]} {
    %c0 = arith.constant 0 : index
    %c0_0 = arith.constant 0 : index
    %0 = vector.load %arg1[%c0, %c0_0] : memref<16x64xbf16, #tpu.memory_space<vmem>>, vector<16x64xbf16>
    %c0_1 = arith.constant 0 : index
    %c0_2 = arith.constant 0 : index
    %1 = vector.load %arg2[%c0_1, %c0_2] : memref<64x256xbf16, #tpu.memory_space<vmem>>, vector<64x256xbf16>
    %cst = arith.constant dense<0.000000e+00> : vector<16x256xf32>
    %2 = tpu.matmul %0, %1, %cst {dimension_numbers = #tpu.dot_dimension_numbers<[1], [0], [0], [1], [0, 0, 1, 1], [], []>} : vector<16x64xbf16>, vector<64x256xbf16>, vector<16x256xf32> -> vector<16x256xf32>
    %c0_3 = arith.constant 0 : index
    %c0_4 = arith.constant 0 : index
    %3 = vector.load %arg3[%c0_3, %c0_4] : memref<1x256xf32, #tpu.memory_space<vmem>>, vector<1x256xf32>
    %4 = vector.broadcast %3 : vector<1x256xf32> to vector<16x256xf32>
    %5 = arith.addf %2, %4 : vector<16x256xf32>
    %c0_5 = arith.constant 0 : index
    %c0_6 = arith.constant 0 : index
    %6 = vector.load %arg4[%c0_5, %c0_6] : memref<16x256xf32, #tpu.memory_space<vmem>>, vector<16x256xf32>
    tpu.vector_store %arg4[%c0_5, %c0_6], %5 {strides = array<i32>} : memref<16x256xf32, #tpu.memory_space<vmem>>, vector<16x256xf32>,
    return
  }
  func.func @transform_0(%arg0: i32) -> (i32, i32) {
    %c0_i32 = arith.constant 0 : i32
    %c0_i32_0 = arith.constant 0 : i32
    return %arg0, %c0_i32 : i32, i32
  }
  func.func @transform_1(%arg0: i32) -> (i32, i32) {
    %c0_i32 = arith.constant 0 : i32
    %c0_i32_0 = arith.constant 0 : i32
    %c0_i32_1 = arith.constant 0 : i32
    return %c0_i32, %c0_i32_0 : i32, i32
  }
  func.func @transform_2(%arg0: i32) -> (i32, i32) {
    %c0_i32 = arith.constant 0 : i32
    %c0_i32_0 = arith.constant 0 : i32
    %c0_i32_1 = arith.constant 0 : i32
    return %c0_i32, %c0_i32_0 : i32, i32
  }
  func.func @transform_3(%arg0: i32) -> (i32, i32) {
    %c0_i32 = arith.constant 0 : i32
    %c0_i32_0 = arith.constant 0 : i32
    return %arg0, %c0_i32 : i32, i32
  }
}

module attributes {stable_mosaic.version = 11 : i64} {
  func.func @_masked_ce_kernel(%arg0: i32, %arg1: memref<16x128xf32, #tpu.memory_space<vmem>>, %arg2: memref<16x1xi32, #tpu.memory_space<vmem>>, %arg3: memref<16x1xi32, #tpu.memory_space<vmem>>, %arg4: memref<1x1xf32, #tpu.memory_space<vmem>>, %arg5: memref<1x1xf32, #tpu.memory_space<vmem>>, %arg6: memref<1x1xf32, #tpu.memory_space<vmem>>) attributes {dimension_semantics = [#tpu.dimension_semantics<arbitrary>], iteration_bounds = array<i64: 1>, scalar_prefetch = 0 : i64, scratch_operands = 2 : i64, tpu.core_type = #tpu.core_type<tc>, window_params = [{transform_indices = @transform_0, window_bounds = array<i64: 16, 128>}, {transform_indices = @transform_1, window_bounds = array<i64: 16, 1>}, {transform_indices = @transform_2, window_bounds = array<i64: 16, 1>}, {pipeline_mode = #tpu.pipeline_mode<synchronous>, transform_indices = @transform_3, window_bounds = array<i64: 1, 1>}]} {
    %c0_i32 = arith.constant 0 : i32
    %0 = arith.cmpi eq, %arg0, %c0_i32 : i32
    %1 = arith.extui %0 : i1 to i32
    %c0_i32_0 = arith.constant 0 : i32
    %2 = arith.cmpi ne, %1, %c0_i32_0 : i32
    scf.if %2 {
      %cst_21 = arith.constant 0.000000e+00 : f32
      %46 = vector.broadcast %cst_21 : f32 to vector<1x1xf32>
      %c0_22 = arith.constant 0 : index
      %c0_23 = arith.constant 0 : index
      %47 = vector.load %arg5[%c0_22, %c0_23] : memref<1x1xf32, #tpu.memory_space<vmem>>, vector<1x1xf32>
      tpu.vector_store %arg5[%c0_22, %c0_23], %46 {strides = array<i32>} : memref<1x1xf32, #tpu.memory_space<vmem>>, vector<1x1xf32>,
      %cst_24 = arith.constant 0.000000e+00 : f32
      %48 = vector.broadcast %cst_24 : f32 to vector<1x1xf32>
      %c0_25 = arith.constant 0 : index
      %c0_26 = arith.constant 0 : index
      %49 = vector.load %arg6[%c0_25, %c0_26] : memref<1x1xf32, #tpu.memory_space<vmem>>, vector<1x1xf32>
      tpu.vector_store %arg6[%c0_25, %c0_26], %48 {strides = array<i32>} : memref<1x1xf32, #tpu.memory_space<vmem>>, vector<1x1xf32>,
    } else {
    }
    %c0 = arith.constant 0 : index
    %c0_1 = arith.constant 0 : index
    %3 = vector.load %arg1[%c0, %c0_1] : memref<16x128xf32, #tpu.memory_space<vmem>>, vector<16x128xf32>
    %4 = tpu.iota {dimensions = array<i32: 1>} : vector<16x128xi32>
    %c5_i32 = arith.constant 5 : i32
    %5 = vector.broadcast %c5_i32 : i32 to vector<16x128xi32>
    %6 = arith.cmpi slt, %4, %5 : vector<16x128xi32>
    %cst = arith.constant -1.000000e+30 : f32
    %7 = vector.broadcast %cst : f32 to vector<16x128xf32>
    %8 = arith.select %6, %3, %7 : vector<16x128xi1>, vector<16x128xf32>
    %cst_2 = arith.constant dense<0xFF800000> : vector<16xf32>
    %9 = vector.multi_reduction <maximumf>, %8, %cst_2 [1] : vector<16x128xf32> to vector<16xf32>
    %10 = vector.shape_cast %9 : vector<16xf32> to vector<16x1xf32>
    %11 = vector.broadcast %10 : vector<16x1xf32> to vector<16x128xf32>
    %12 = arith.subf %8, %11 : vector<16x128xf32>
    %13 = math.exp %12 : vector<16x128xf32>
    %cst_3 = arith.constant dense<0.000000e+00> : vector<16xf32>
    %14 = vector.multi_reduction <add>, %13, %cst_3 [1] : vector<16x128xf32> to vector<16xf32>
    %15 = vector.shape_cast %14 : vector<16xf32> to vector<16x1xf32>
    %16 = math.log %15 : vector<16x1xf32>
    %17 = arith.addf %10, %16 : vector<16x1xf32>
    %c0_4 = arith.constant 0 : index
    %c0_5 = arith.constant 0 : index
    %18 = vector.load %arg2[%c0_4, %c0_5] : memref<16x1xi32, #tpu.memory_space<vmem>>, vector<16x1xi32>
    %19 = vector.broadcast %18 : vector<16x1xi32> to vector<16x128xi32>
    %20 = arith.cmpi eq, %4, %19 : vector<16x128xi32>
    %21 = arith.extui %20 : vector<16x128xi1> to vector<16x128xi32>
    %22 = arith.sitofp %21 : vector<16x128xi32> to vector<16x128xf32>
    %23 = arith.mulf %8, %22 : vector<16x128xf32>
    %cst_6 = arith.constant dense<0.000000e+00> : vector<16xf32>
    %24 = vector.multi_reduction <add>, %23, %cst_6 [1] : vector<16x128xf32> to vector<16xf32>
    %25 = vector.shape_cast %24 : vector<16xf32> to vector<16x1xf32>
    %26 = arith.subf %17, %25 : vector<16x1xf32>
    %c0_7 = arith.constant 0 : index
    %c0_8 = arith.constant 0 : index
    %27 = vector.load %arg3[%c0_7, %c0_8] : memref<16x1xi32, #tpu.memory_space<vmem>>, vector<16x1xi32>
    %c1_i32 = arith.constant 1 : i32
    %28 = vector.broadcast %c1_i32 : i32 to vector<16x1xi32>
    %29 = arith.cmpi eq, %27, %28 : vector<16x1xi32>
    %30 = arith.extui %29 : vector<16x1xi1> to vector<16x1xi32>
    %31 = arith.sitofp %30 : vector<16x1xi32> to vector<16x1xf32>
    %c0_9 = arith.constant 0 : index
    %c0_10 = arith.constant 0 : index
    %32 = vector.load %arg5[%c0_9, %c0_10] : memref<1x1xf32, #tpu.memory_space<vmem>>, vector<1x1xf32>
    %33 = arith.mulf %26, %31 : vector<16x1xf32>
    %cst_11 = arith.constant dense<0.000000e+00> : vector<1xf32>
    %34 = vector.multi_reduction <add>, %33, %cst_11 [0] : vector<16x1xf32> to vector<1xf32>
    %35 = vector.shape_cast %34 : vector<1xf32> to vector<1x1xf32>
    %36 = arith.addf %32, %35 : vector<1x1xf32>
    %c0_12 = arith.constant 0 : index
    %c0_13 = arith.constant 0 : index
    %37 = vector.load %arg5[%c0_12, %c0_13] : memref<1x1xf32, #tpu.memory_space<vmem>>, vector<1x1xf32>
    tpu.vector_store %arg5[%c0_12, %c0_13], %36 {strides = array<i32>} : memref<1x1xf32, #tpu.memory_space<vmem>>, vector<1x1xf32>,
    %c0_14 = arith.constant 0 : index
    %c0_15 = arith.constant 0 : index
    %38 = vector.load %arg6[%c0_14, %c0_15] : memref<1x1xf32, #tpu.memory_space<vmem>>, vector<1x1xf32>
    %cst_16 = arith.constant dense<0.000000e+00> : vector<1xf32>
    %39 = vector.multi_reduction <add>, %31, %cst_16 [0] : vector<16x1xf32> to vector<1xf32>
    %40 = vector.shape_cast %39 : vector<1xf32> to vector<1x1xf32>
    %41 = arith.addf %38, %40 : vector<1x1xf32>
    %c0_17 = arith.constant 0 : index
    %c0_18 = arith.constant 0 : index
    %42 = vector.load %arg6[%c0_17, %c0_18] : memref<1x1xf32, #tpu.memory_space<vmem>>, vector<1x1xf32>
    tpu.vector_store %arg6[%c0_17, %c0_18], %41 {strides = array<i32>} : memref<1x1xf32, #tpu.memory_space<vmem>>, vector<1x1xf32>,
    %c0_i32_19 = arith.constant 0 : i32
    %43 = arith.cmpi eq, %arg0, %c0_i32_19 : i32
    %44 = arith.extui %43 : i1 to i32
    %c0_i32_20 = arith.constant 0 : i32
    %45 = arith.cmpi ne, %44, %c0_i32_20 : i32
    scf.if %45 {
      %c0_21 = arith.constant 0 : index
      %c0_22 = arith.constant 0 : index
      %46 = vector.load %arg5[%c0_21, %c0_22] : memref<1x1xf32, #tpu.memory_space<vmem>>, vector<1x1xf32>
      %c0_23 = arith.constant 0 : index
      %c0_24 = arith.constant 0 : index
      %47 = vector.load %arg6[%c0_23, %c0_24] : memref<1x1xf32, #tpu.memory_space<vmem>>, vector<1x1xf32>
      %cst_25 = arith.constant 1.000000e+00 : f32
      %48 = vector.broadcast %cst_25 : f32 to vector<1x1xf32>
      %49 = arith.maximumf %47, %48 : vector<1x1xf32>
      %50 = arith.divf %46, %49 : vector<1x1xf32>
      %c0_26 = arith.constant 0 : index
      %c0_27 = arith.constant 0 : index
      %51 = vector.load %arg4[%c0_26, %c0_27] : memref<1x1xf32, #tpu.memory_space<vmem>>, vector<1x1xf32>
      tpu.vector_store %arg4[%c0_26, %c0_27], %50 {strides = array<i32>} : memref<1x1xf32, #tpu.memory_space<vmem>>, vector<1x1xf32>,
    } else {
    }
    return
  }
  func.func @transform_0(%arg0: i32) -> (i32, i32) {
    %c0_i32 = arith.constant 0 : i32
    %c0_i32_0 = arith.constant 0 : i32
    return %arg0, %c0_i32 : i32, i32
  }
  func.func @transform_1(%arg0: i32) -> (i32, i32) {
    %c0_i32 = arith.constant 0 : i32
    %c0_i32_0 = arith.constant 0 : i32
    return %arg0, %c0_i32 : i32, i32
  }
  func.func @transform_2(%arg0: i32) -> (i32, i32) {
    %c0_i32 = arith.constant 0 : i32
    %c0_i32_0 = arith.constant 0 : i32
    return %arg0, %c0_i32 : i32, i32
  }
  func.func @transform_3(%arg0: i32) -> (i32, i32) {
    %c0_i32 = arith.constant 0 : i32
    %c0_i32_0 = arith.constant 0 : i32
    %c0_i32_1 = arith.constant 0 : i32
    return %c0_i32, %c0_i32_0 : i32, i32
  }
}

module attributes {stable_mosaic.version = 11 : i64} {
  func.func @_masked_ce_kernel(%arg0: i32, %arg1: memref<16x128xf32, #tpu.memory_space<vmem>>, %arg2: memref<16x1xi32, #tpu.memory_space<vmem>>, %arg3: memref<16x1xi32, #tpu.memory_space<vmem>>, %arg4: memref<1x1xf32, #tpu.memory_space<vmem>>, %arg5: memref<1x1xf32, #tpu.memory_space<vmem>>, %arg6: memref<1x1xf32, #tpu.memory_space<vmem>>) attributes {dimension_semantics = [#tpu.dimension_semantics<arbitrary>], iteration_bounds = array<i64: 1>, scalar_prefetch = 0 : i64, scratch_operands = 2 : i64, tpu.core_type = #tpu.core_type<tc>, window_params = [{transform_indices = @transform_0, window_bounds = array<i64: 16, 128>}, {transform_indices = @transform_1, window_bounds = array<i64: 16, 1>}, {transform_indices = @transform_2, window_bounds = array<i64: 16, 1>}, {pipeline_mode = #tpu.pipeline_mode<synchronous>, transform_indices = @transform_3, window_bounds = array<i64: 1, 1>}]} {
    %c0_i32 = arith.constant 0 : i32
    %0 = arith.cmpi eq, %arg0, %c0_i32 : i32
    %1 = arith.extui %0 : i1 to i32
    %c0_i32_0 = arith.constant 0 : i32
    %2 = arith.cmpi ne, %1, %c0_i32_0 : i32
    scf.if %2 {
      %cst_21 = arith.constant 0.000000e+00 : f32
      %46 = vector.broadcast %cst_21 : f32 to vector<1x1xf32>
      %c0_22 = arith.constant 0 : index
      %c0_23 = arith.constant 0 : index
      %47 = vector.load %arg5[%c0_22, %c0_23] : memref<1x1xf32, #tpu.memory_space<vmem>>, vector<1x1xf32>
      tpu.vector_store %arg5[%c0_22, %c0_23], %46 {strides = array<i32>} : memref<1x1xf32, #tpu.memory_space<vmem>>, vector<1x1xf32>,
      %cst_24 = arith.constant 0.000000e+00 : f32
      %48 = vector.broadcast %cst_24 : f32 to vector<1x1xf32>
      %c0_25 = arith.constant 0 : index
      %c0_26 = arith.constant 0 : index
      %49 = vector.load %arg6[%c0_25, %c0_26] : memref<1x1xf32, #tpu.memory_space<vmem>>, vector<1x1xf32>
      tpu.vector_store %arg6[%c0_25, %c0_26], %48 {strides = array<i32>} : memref<1x1xf32, #tpu.memory_space<vmem>>, vector<1x1xf32>,
    } else {
    }
    %c0 = arith.constant 0 : index
    %c0_1 = arith.constant 0 : index
    %3 = vector.load %arg1[%c0, %c0_1] : memref<16x128xf32, #tpu.memory_space<vmem>>, vector<16x128xf32>
    %4 = tpu.iota {dimensions = array<i32: 1>} : vector<16x128xi32>
    %c7_i32 = arith.constant 7 : i32
    %5 = vector.broadcast %c7_i32 : i32 to vector<16x128xi32>
    %6 = arith.cmpi slt, %4, %5 : vector<16x128xi32>
    %cst = arith.constant -1.000000e+30 : f32
    %7 = vector.broadcast %cst : f32 to vector<16x128xf32>
    %8 = arith.select %6, %3, %7 : vector<16x128xi1>, vector<16x128xf32>
    %cst_2 = arith.constant dense<0xFF800000> : vector<16xf32>
    %9 = vector.multi_reduction <maximumf>, %8, %cst_2 [1] : vector<16x128xf32> to vector<16xf32>
    %10 = vector.shape_cast %9 : vector<16xf32> to vector<16x1xf32>
    %11 = vector.broadcast %10 : vector<16x1xf32> to vector<16x128xf32>
    %12 = arith.subf %8, %11 : vector<16x128xf32>
    %13 = math.exp %12 : vector<16x128xf32>
    %cst_3 = arith.constant dense<0.000000e+00> : vector<16xf32>
    %14 = vector.multi_reduction <add>, %13, %cst_3 [1] : vector<16x128xf32> to vector<16xf32>
    %15 = vector.shape_cast %14 : vector<16xf32> to vector<16x1xf32>
    %16 = math.log %15 : vector<16x1xf32>
    %17 = arith.addf %10, %16 : vector<16x1xf32>
    %c0_4 = arith.constant 0 : index
    %c0_5 = arith.constant 0 : index
    %18 = vector.load %arg2[%c0_4, %c0_5] : memref<16x1xi32, #tpu.memory_space<vmem>>, vector<16x1xi32>
    %19 = vector.broadcast %18 : vector<16x1xi32> to vector<16x128xi32>
    %20 = arith.cmpi eq, %4, %19 : vector<16x128xi32>
    %21 = arith.extui %20 : vector<16x128xi1> to vector<16x128xi32>
    %22 = arith.sitofp %21 : vector<16x128xi32> to vector<16x128xf32>
    %23 = arith.mulf %8, %22 : vector<16x128xf32>
    %cst_6 = arith.constant dense<0.000000e+00> : vector<16xf32>
    %24 = vector.multi_reduction <add>, %23, %cst_6 [1] : vector<16x128xf32> to vector<16xf32>
    %25 = vector.shape_cast %24 : vector<16xf32> to vector<16x1xf32>
    %26 = arith.subf %17, %25 : vector<16x1xf32>
    %c0_7 = arith.constant 0 : index
    %c0_8 = arith.constant 0 : index
    %27 = vector.load %arg3[%c0_7, %c0_8] : memref<16x1xi32, #tpu.memory_space<vmem>>, vector<16x1xi32>
    %c1_i32 = arith.constant 1 : i32
    %28 = vector.broadcast %c1_i32 : i32 to vector<16x1xi32>
    %29 = arith.cmpi eq, %27, %28 : vector<16x1xi32>
    %30 = arith.extui %29 : vector<16x1xi1> to vector<16x1xi32>
    %31 = arith.sitofp %30 : vector<16x1xi32> to vector<16x1xf32>
    %c0_9 = arith.constant 0 : index
    %c0_10 = arith.constant 0 : index
    %32 = vector.load %arg5[%c0_9, %c0_10] : memref<1x1xf32, #tpu.memory_space<vmem>>, vector<1x1xf32>
    %33 = arith.mulf %26, %31 : vector<16x1xf32>
    %cst_11 = arith.constant dense<0.000000e+00> : vector<1xf32>
    %34 = vector.multi_reduction <add>, %33, %cst_11 [0] : vector<16x1xf32> to vector<1xf32>
    %35 = vector.shape_cast %34 : vector<1xf32> to vector<1x1xf32>
    %36 = arith.addf %32, %35 : vector<1x1xf32>
    %c0_12 = arith.constant 0 : index
    %c0_13 = arith.constant 0 : index
    %37 = vector.load %arg5[%c0_12, %c0_13] : memref<1x1xf32, #tpu.memory_space<vmem>>, vector<1x1xf32>
    tpu.vector_store %arg5[%c0_12, %c0_13], %36 {strides = array<i32>} : memref<1x1xf32, #tpu.memory_space<vmem>>, vector<1x1xf32>,
    %c0_14 = arith.constant 0 : index
    %c0_15 = arith.constant 0 : index
    %38 = vector.load %arg6[%c0_14, %c0_15] : memref<1x1xf32, #tpu.memory_space<vmem>>, vector<1x1xf32>
    %cst_16 = arith.constant dense<0.000000e+00> : vector<1xf32>
    %39 = vector.multi_reduction <add>, %31, %cst_16 [0] : vector<16x1xf32> to vector<1xf32>
    %40 = vector.shape_cast %39 : vector<1xf32> to vector<1x1xf32>
    %41 = arith.addf %38, %40 : vector<1x1xf32>
    %c0_17 = arith.constant 0 : index
    %c0_18 = arith.constant 0 : index
    %42 = vector.load %arg6[%c0_17, %c0_18] : memref<1x1xf32, #tpu.memory_space<vmem>>, vector<1x1xf32>
    tpu.vector_store %arg6[%c0_17, %c0_18], %41 {strides = array<i32>} : memref<1x1xf32, #tpu.memory_space<vmem>>, vector<1x1xf32>,
    %c0_i32_19 = arith.constant 0 : i32
    %43 = arith.cmpi eq, %arg0, %c0_i32_19 : i32
    %44 = arith.extui %43 : i1 to i32
    %c0_i32_20 = arith.constant 0 : i32
    %45 = arith.cmpi ne, %44, %c0_i32_20 : i32
    scf.if %45 {
      %c0_21 = arith.constant 0 : index
      %c0_22 = arith.constant 0 : index
      %46 = vector.load %arg5[%c0_21, %c0_22] : memref<1x1xf32, #tpu.memory_space<vmem>>, vector<1x1xf32>
      %c0_23 = arith.constant 0 : index
      %c0_24 = arith.constant 0 : index
      %47 = vector.load %arg6[%c0_23, %c0_24] : memref<1x1xf32, #tpu.memory_space<vmem>>, vector<1x1xf32>
      %cst_25 = arith.constant 1.000000e+00 : f32
      %48 = vector.broadcast %cst_25 : f32 to vector<1x1xf32>
      %49 = arith.maximumf %47, %48 : vector<1x1xf32>
      %50 = arith.divf %46, %49 : vector<1x1xf32>
      %c0_26 = arith.constant 0 : index
      %c0_27 = arith.constant 0 : index
      %51 = vector.load %arg4[%c0_26, %c0_27] : memref<1x1xf32, #tpu.memory_space<vmem>>, vector<1x1xf32>
      tpu.vector_store %arg4[%c0_26, %c0_27], %50 {strides = array<i32>} : memref<1x1xf32, #tpu.memory_space<vmem>>, vector<1x1xf32>,
    } else {
    }
    return
  }
  func.func @transform_0(%arg0: i32) -> (i32, i32) {
    %c1_i32 = arith.constant 1 : i32
    %c0_i32 = arith.constant 0 : i32
    return %arg0, %c1_i32 : i32, i32
  }
  func.func @transform_1(%arg0: i32) -> (i32, i32) {
    %c0_i32 = arith.constant 0 : i32
    %c0_i32_0 = arith.constant 0 : i32
    return %arg0, %c0_i32 : i32, i32
  }
  func.func @transform_2(%arg0: i32) -> (i32, i32) {
    %c0_i32 = arith.constant 0 : i32
    %c0_i32_0 = arith.constant 0 : i32
    return %arg0, %c0_i32 : i32, i32
  }
  func.func @transform_3(%arg0: i32) -> (i32, i32) {
    %c0_i32 = arith.constant 0 : i32
    %c0_i32_0 = arith.constant 0 : i32
    %c0_i32_1 = arith.constant 0 : i32
    return %c0_i32, %c0_i32_0 : i32, i32
  }
}

</mosaic_0001>

<llo_original>
// kernel: bert_entity_forward.15
$region0: #{bert_entity_forward.15}
  #allocation0 [shape = 'u32[]', space=smem, size = 0x4, offset = 0x4, fixed_abs, tag = 'smem constant byte address 0x4 - core index']
  #allocation1 [shape = 'u32[72,128]{1,0:T(1,128)}', space=vmem, size = 0x9000, scoped, tag = 'internal scratch']
  %s0 = inlined_call_operand.vmem [shape: bf16[16,64], index: 0, kind: input, shape index: {}]
  %s1 = inlined_call_operand.vmem [shape: bf16[64,192], index: 1, kind: input, shape index: {}]
  %s2 = inlined_call_operand.vmem [shape: f32[1,192], index: 2, kind: input, shape index: {}]
  %s3 = inlined_call_operand.vmem [shape: bf16[16,192], index: 3, kind: output, shape index: {}]
  %s4 = sld [smem:[#allocation0]]
  $region22: #{bert_entity_forward.15} parent=0
    _
  %s6 = ssub.s32 1, %s4
  %s7 = scalar_select 0, %s6, %s4
  // Predicated region
  $region2: #{bert_entity_forward.15} parent=0 // pred_check
    _
  $region3: #{bert_entity_forward.15} parent=0 // pred_check_branch
    %9 = sbr.rel (0) target = $region5
  $region4: #{bert_entity_forward.15} parent=0 // pred_region
    _
  $region5: #{bert_entity_forward.15} parent=0 // pred_fallthru
    _
  // Predicated region
  $region6: #{bert_entity_forward.15} parent=0 // pred_check
    _
  $region7: #{bert_entity_forward.15} parent=0 // pred_check_branch
    %11 = sbr.rel (0) target = $region9
  $region8: #{bert_entity_forward.15} parent=0 // pred_region
    _
  $region9: #{bert_entity_forward.15} parent=0 // pred_fallthru
    _
  // Predicated region
  $region10: #{bert_entity_forward.15} parent=0 // pred_check
    _
  $region11: #{bert_entity_forward.15} parent=0 // pred_check_branch
    %13 = sbr.rel (0) target = $region13
  $region12: #{bert_entity_forward.15} parent=0 // pred_region
    _
  $region13: #{bert_entity_forward.15} parent=0 // pred_fallthru
    _
  %v15 = vld [vmem:[%s0] sm:$0xf]
  %v16 = vld [vmem:[%s0 + $0x4] sm:$0xf]
  %v17 = vld [vmem:[%s1] sm:$0xff]
  %v18 = vld [vmem:[%s1 + $0x8] sm:$0xff]
  %v19 = vld [vmem:[%s1 + $0x10] sm:$0xff]
  %v20 = vld [vmem:[%s1 + $0x18] sm:$0xff]
  %v21 = vld [vmem:[%s1 + $0x20] sm:$0xff]
  %v22 = vld [vmem:[%s1 + $0x28] sm:$0xff]
  %v23 = vld [vmem:[%s1 + $0x30] sm:$0xff]
  %v24 = vld [vmem:[%s1 + $0x38] sm:$0xff]
  %v25 = vld [vmem:[%s2] sm:$0x3]
  %v27 = vperm.slane %v25, 0
  %v28 = vperm.slane %v25, 1
  %v33 = vunpack.c.l.b16 %v15
  %v34 = vunpack.c.l.b16 %v16
  %v35 = vpack.c.b16 %v34, %v33
  %v44 = vunpack.c.l.b16 %v17
  %v45 = vunpack.c.h.b16 %v17
  %v46 = vunpack.c.l.b16 %v18
  %v47 = vunpack.c.h.b16 %v18
  %v48 = vunpack.c.l.b16 %v19
  %v49 = vunpack.c.h.b16 %v19
  %v50 = vunpack.c.l.b16 %v20
  %v51 = vunpack.c.h.b16 %v20
  %v52 = vunpack.c.l.b16 %v21
  %v53 = vunpack.c.h.b16 %v21
  %v54 = vunpack.c.l.b16 %v22
  %v55 = vunpack.c.h.b16 %v22
  %v56 = vunpack.c.l.b16 %v23
  %v57 = vunpack.c.h.b16 %v23
  %v58 = vunpack.c.l.b16 %v24
  %v59 = vunpack.c.h.b16 %v24
  %v60 = vpack.c.b16 %v46, %v44
  %v61 = vpack.c.b16 %v47, %v45
  %v62 = vpack.c.b16 %v50, %v48
  %v63 = vpack.c.b16 %v51, %v49
  %v64 = vpack.c.b16 %v54, %v52
  %v65 = vpack.c.b16 %v55, %v53
  %v66 = vpack.c.b16 %v58, %v56
  %v67 = vpack.c.b16 %v59, %v57
  %vm76 = vcmask 523264
  %v78 = vsel %vm76, %v35, 0
  %80 = vmatpush.bf16.msra.mxu0 0
  %81 = vmatpush.bf16.msra.mxu0 0
  %82 = vmatpush.bf16.msra.mxu0 0
  %83 = vmatpush.bf16.msra.mxu0 0
  %84 = vmatpush.bf16.msra.mxu0 %v66
  %85 = vmatpush.bf16.msra.mxu0 %v64
  %86 = vmatpush.bf16.msra.mxu0 %v62
  %87 = vmatpush.bf16.msra.mxu0 %v60
  %88 = vmatmul.bf16.gmra.mxu0 %v78
  %v89 = vpop.f32.mrf.mxu0
  %v90 = vadd.f32 %v27, %v89
  %v91 = vpop.f32.mrf.mxu0
  %v92 = vadd.f32 %v27, %v91
  %93 = vdwg.mxu0
  %94 = vmatpush.bf16.msra.mxu0 0
  %95 = vmatpush.bf16.msra.mxu0 0
  %96 = vmatpush.bf16.msra.mxu0 0
  %97 = vmatpush.bf16.msra.mxu0 0
  %98 = vmatpush.bf16.msra.mxu0 %v67
  %99 = vmatpush.bf16.msra.mxu0 %v65
  %100 = vmatpush.bf16.msra.mxu0 %v63
  %101 = vmatpush.bf16.msra.mxu0 %v61
  %102 = vmatmul.bf16.gmra.mxu0 %v78
  %v103 = vpop.f32.mrf.mxu0
  %v104 = vadd.f32 %v28, %v103
  %v105 = vpop.f32.mrf.mxu0
  %v106 = vadd.f32 %v28, %v105
  %107 = vdwg.mxu0
  %v108 = vpack.c.bf16 %v104, %v90
  %v109 = vpack.c.bf16 %v106, %v92
  %vm110 = vcmask 1043456
  %vm111 = vcmask 523268
  %vm112 = vmor %vm111, %vm110
  %113 = vst.msk [vmem:[%s3] sm:$0xff] %vm112, %v108
  %114 = vst.msk [vmem:[%s3 + $0x8] sm:$0xff] %vm112, %v109
  // Predicated region
  $region14: #{bert_entity_forward.15} parent=0 // pred_check
    _
  $region15: #{bert_entity_forward.15} parent=0 // pred_check_branch
    %116 = sbr.rel (0) target = $region17
  $region16: #{bert_entity_forward.15} parent=0 // pred_region
    _
  $region17: #{bert_entity_forward.15} parent=0 // pred_fallthru
    _
  // Predicated region
  $region18: #{bert_entity_forward.15} parent=0 // pred_check
    _
  $region19: #{bert_entity_forward.15} parent=0 // pred_check_branch
    %118 = sbr.rel (0) target = $region21
  $region20: #{bert_entity_forward.15} parent=0 // pred_region
    _
  $region21: #{bert_entity_forward.15} parent=0 // pred_fallthru
    _

// kernel: bert_entity_forward.17
$region0: #{bert_entity_forward.17}
  #allocation0 [shape = 'u32[]', space=smem, size = 0x4, offset = 0x4, fixed_abs, tag = 'smem constant byte address 0x4 - core index']
  #allocation1 [shape = 'u32[72,128]{1,0:T(1,128)}', space=vmem, size = 0x9000, scoped, tag = 'internal scratch']
  %s0 = inlined_call_operand.vmem [shape: bf16[16,64], index: 0, kind: input, shape index: {}]
  %s1 = inlined_call_operand.vmem [shape: bf16[64,64], index: 1, kind: input, shape index: {}]
  %s2 = inlined_call_operand.vmem [shape: f32[1,64], index: 2, kind: input, shape index: {}]
  %s3 = inlined_call_operand.vmem [shape: bf16[16,64], index: 3, kind: input, shape index: {}]
  %s4 = inlined_call_operand.vmem [shape: f32[1,64], index: 4, kind: input, shape index: {}]
  %s5 = inlined_call_operand.vmem [shape: f32[1,64], index: 5, kind: input, shape index: {}]
  %s6 = inlined_call_operand.vmem [shape: bf16[16,64], index: 6, kind: output, shape index: {}]
  %s7 = sld [smem:[#allocation0]]
  $region34: #{bert_entity_forward.17} parent=0
    _
  %s9 = ssub.s32 1, %s7
  %s10 = scalar_select 0, %s9, %s7
  // Predicated region
  $region2: #{bert_entity_forward.17} parent=0 // pred_check
    _
  $region3: #{bert_entity_forward.17} parent=0 // pred_check_branch
    %12 = sbr.rel (0) target = $region5
  $region4: #{bert_entity_forward.17} parent=0 // pred_region
    _
  $region5: #{bert_entity_forward.17} parent=0 // pred_fallthru
    _
  // Predicated region
  $region6: #{bert_entity_forward.17} parent=0 // pred_check
    _
  $region7: #{bert_entity_forward.17} parent=0 // pred_check_branch
    %14 = sbr.rel (0) target = $region9
  $region8: #{bert_entity_forward.17} parent=0 // pred_region
    _
  $region9: #{bert_entity_forward.17} parent=0 // pred_fallthru
    _
  // Predicated region
  $region10: #{bert_entity_forward.17} parent=0 // pred_check
    _
  $region11: #{bert_entity_forward.17} parent=0 // pred_check_branch
    %16 = sbr.rel (0) target = $region13
  $region12: #{bert_entity_forward.17} parent=0 // pred_region
    _
  $region13: #{bert_entity_forward.17} parent=0 // pred_fallthru
    _
  // Predicated region
  $region14: #{bert_entity_forward.17} parent=0 // pred_check
    _
  $region15: #{bert_entity_forward.17} parent=0 // pred_check_branch
    %18 = sbr.rel (0) target = $region17
  $region16: #{bert_entity_forward.17} parent=0 // pred_region
    _
  $region17: #{bert_entity_forward.17} parent=0 // pred_fallthru
    _
  // Predicated region
  $region18: #{bert_entity_forward.17} parent=0 // pred_check
    _
  $region19: #{bert_entity_forward.17} parent=0 // pred_check_branch
    %20 = sbr.rel (0) target = $region21
  $region20: #{bert_entity_forward.17} parent=0 // pred_region
    _
  $region21: #{bert_entity_forward.17} parent=0 // pred_fallthru
    _
  // Predicated region
  $region22: #{bert_entity_forward.17} parent=0 // pred_check
    _
  $region23: #{bert_entity_forward.17} parent=0 // pred_check_branch
    %22 = sbr.rel (0) target = $region25
  $region24: #{bert_entity_forward.17} parent=0 // pred_region
    _
  $region25: #{bert_entity_forward.17} parent=0 // pred_fallthru
    _
  %v24 = vld [vmem:[%s0] sm:$0xf]
  %v25 = vld [vmem:[%s0 + $0x4] sm:$0xf]
  %v26 = vld [vmem:[%s1] sm:$0xf]
  %v27 = vld [vmem:[%s1 + $0x4] sm:$0xf]
  %v28 = vld [vmem:[%s1 + $0x8] sm:$0xf]
  %v29 = vld [vmem:[%s1 + $0xc] sm:$0xf]
  %v30 = vld [vmem:[%s1 + $0x10] sm:$0xf]
  %v31 = vld [vmem:[%s1 + $0x14] sm:$0xf]
  %v32 = vld [vmem:[%s1 + $0x18] sm:$0xf]
  %v33 = vld [vmem:[%s1 + $0x1c] sm:$0xf]
  %v34 = vld [vmem:[%s2] sm:$0x1]
  %v36 = vperm.slane %v34, 0
  %v40 = vunpack.c.l.b16 %v24
  %v41 = vunpack.c.l.b16 %v25
  %v42 = vpack.c.b16 %v41, %v40
  %v51 = vunpack.c.l.b16 %v26
  %v52 = vunpack.c.l.b16 %v27
  %v53 = vunpack.c.l.b16 %v28
  %v54 = vunpack.c.l.b16 %v29
  %v55 = vunpack.c.l.b16 %v30
  %v56 = vunpack.c.l.b16 %v31
  %v57 = vunpack.c.l.b16 %v32
  %v58 = vunpack.c.l.b16 %v33
  %v59 = vpack.c.b16 %v52, %v51
  %v60 = vpack.c.b16 %v54, %v53
  %v61 = vpack.c.b16 %v56, %v55
  %v62 = vpack.c.b16 %v58, %v57
  %vm67 = vcmask 523264
  %v69 = vsel %vm67, %v42, 0
  %71 = vmatpush.bf16.msra.mxu0 0
  %72 = vmatpush.bf16.msra.mxu0 0
  %73 = vmatpush.bf16.msra.mxu0 0
  %74 = vmatpush.bf16.msra.mxu0 0
  %75 = vmatpush.bf16.msra.mxu0 %v62
  %76 = vmatpush.bf16.msra.mxu0 %v61
  %77 = vmatpush.bf16.msra.mxu0 %v60
  %78 = vmatpush.bf16.msra.mxu0 %v59
  %79 = vmatmul.bf16.gmra.mxu0 %v69
  %v80 = vpop.f32.mrf.mxu0
  %v81 = vadd.f32 %v36, %v80
  %v82 = vpop.f32.mrf.mxu0
  %v83 = vadd.f32 %v36, %v82
  %84 = vdwg.mxu0
  %v85 = vld [vmem:[%s3] sm:$0xf]
  %v86 = vld [vmem:[%s3 + $0x4] sm:$0xf]
  %v87 = vunpack.c.l.bf16 %v85
  %v88 = vunpack.c.l.bf16 %v86
  %v89 = vadd.f32 %v81, %v87
  %v90 = vadd.f32 %v83, %v88
  %v91 = vsel %vm67, %v89, 0.0
  %92 = vadd.xlane.f32.xlu0 %v91
  %v93 = vpop.xlane.xlu0 %92
  %v94 = vsel %vm67, %v90, 0.0
  %95 = vadd.xlane.f32.xlu0 %v94
  %v96 = vpop.xlane.xlu0 %95
  %v97 = vrcp.pop 64.0
  %v98 = vmul.f32 64.0, %v97
  %v99 = vsub.f32 1.0, %v98
  %v100 = vmul.f32 %v97, %v99
  %v101 = vadd.f32 %v97, %v100
  %vm102 = vweird.f32 %v97
  %v103 = vsel %vm102, %v97, %v101
  %v104 = vmul.f32 %v93, %v103
  %v105 = vmul.f32 %v96, %v103
  %v106 = vsub.f32 %v89, %v104
  %v107 = vsub.f32 %v90, %v105
  %v108 = vmul.f32 %v106, %v106
  %v109 = vmul.f32 %v107, %v107
  %v110 = vsel %vm67, %v108, 0.0
  %111 = vadd.xlane.f32.xlu0 %v110
  %v112 = vpop.xlane.xlu0 %111
  %v113 = vsel %vm67, %v109, 0.0
  %114 = vadd.xlane.f32.xlu0 %v113
  %v115 = vpop.xlane.xlu0 %114
  %v116 = vmul.f32 %v112, %v103
  %v117 = vmul.f32 %v115, %v103
  %v118 = vadd.f32 %v116, 1e-12
  %v119 = vadd.f32 %v117, 1e-12
  %v120 = vrsqrt.pop %v118
  %v121 = vmul.f32 %v120, %v118
  %v122 = vmul.f32 %v121, %v120
  %v123 = vmul.f32 0.5, %v122
  %v124 = vsub.f32 1.5, %v123
  %v125 = vmul.f32 %v120, %v124
  %vm126 = vweird.f32 %v118
  %vm127 = vweird.f32 %v120
  %vm128 = vmor %vm126, %vm127
  %v129 = vsel %vm128, %v120, %v125
  %v130 = vrsqrt.pop %v119
  %v131 = vmul.f32 %v130, %v119
  %v132 = vmul.f32 %v131, %v130
  %v133 = vmul.f32 0.5, %v132
  %v134 = vsub.f32 1.5, %v133
  %v135 = vmul.f32 %v130, %v134
  %vm136 = vweird.f32 %v119
  %vm137 = vweird.f32 %v130
  %vm138 = vmor %vm136, %vm137
  %v139 = vsel %vm138, %v130, %v135
  %v140 = vmul.f32 %v106, %v129
  %v141 = vmul.f32 %v107, %v139
  %v142 = vld [vmem:[%s4] sm:$0x1]
  %v144 = vperm.slane %v142, 0
  %v146 = vmul.f32 %v140, %v144
  %v147 = vmul.f32 %v141, %v144
  %v148 = vld [vmem:[%s5] sm:$0x1]
  %v150 = vperm.slane %v148, 0
  %v152 = vadd.f32 %v146, %v150
  %v153 = vadd.f32 %v147, %v150
  %v154 = vpack.c.bf16 %v152, %v152
  %v155 = vpack.c.bf16 %v153, %v153
  %vm156 = vcmask 519168
  %157 = vst.msk [vmem:[%s6] sm:$0xf] %vm156, %v154
  %158 = vst.msk [vmem:[%s6 + $0x4] sm:$0xf] %vm156, %v155
  // Predicated region
  $region26: #{bert_entity_forward.17} parent=0 // pred_check
    _
  $region27: #{bert_entity_forward.17} parent=0 // pred_check_branch
    %160 = sbr.rel (0) target = $region29
  $region28: #{bert_entity_forward.17} parent=0 // pred_region
    _
  $region29: #{bert_entity_forward.17} parent=0 // pred_fallthru
    _
  // Predicated region
  $region30: #{bert_entity_forward.17} parent=0 // pred_check
    _
  $region31: #{bert_entity_forward.17} parent=0 // pred_check_branch
    %162 = sbr.rel (0) target = $region33
  $region32: #{bert_entity_forward.17} parent=0 // pred_region
    _
  $region33: #{bert_entity_forward.17} parent=0 // pred_fallthru
    _

// kernel: bert_entity_forward.14
$region0: #{bert_entity_forward.14}
  #allocation0 [shape = 'u32[]', space=smem, size = 0x4, offset = 0x4, fixed_abs, tag = 'smem constant byte address 0x4 - core index']
  #allocation1 [shape = 'u32[72,128]{1,0:T(1,128)}', space=vmem, size = 0x9000, scoped, tag = 'internal scratch']
  %s0 = inlined_call_operand.vmem [shape: f32[16,64], index: 0, kind: input, shape index: {}]
  %s1 = inlined_call_operand.vmem [shape: f32[1,64], index: 1, kind: input, shape index: {}]
  %s2 = inlined_call_operand.vmem [shape: f32[1,64], index: 2, kind: input, shape index: {}]
  %s3 = inlined_call_operand.vmem [shape: bf16[16,64], index: 3, kind: output, shape index: {}]
  %s4 = sld [smem:[#allocation0]]
  $region22: #{bert_entity_forward.14} parent=0
    _
  %s6 = ssub.s32 1, %s4
  %s7 = scalar_select 0, %s6, %s4
  // Predicated region
  $region2: #{bert_entity_forward.14} parent=0 // pred_check
    _
  $region3: #{bert_entity_forward.14} parent=0 // pred_check_branch
    %9 = sbr.rel (0) target = $region5
  $region4: #{bert_entity_forward.14} parent=0 // pred_region
    _
  $region5: #{bert_entity_forward.14} parent=0 // pred_fallthru
    _
  // Predicated region
  $region6: #{bert_entity_forward.14} parent=0 // pred_check
    _
  $region7: #{bert_entity_forward.14} parent=0 // pred_check_branch
    %11 = sbr.rel (0) target = $region9
  $region8: #{bert_entity_forward.14} parent=0 // pred_region
    _
  $region9: #{bert_entity_forward.14} parent=0 // pred_fallthru
    _
  // Predicated region
  $region10: #{bert_entity_forward.14} parent=0 // pred_check
    _
  $region11: #{bert_entity_forward.14} parent=0 // pred_check_branch
    %13 = sbr.rel (0) target = $region13
  $region12: #{bert_entity_forward.14} parent=0 // pred_region
    _
  $region13: #{bert_entity_forward.14} parent=0 // pred_fallthru
    _
  %v14 = vld [vmem:[%s0] sm:$0xff]
  %v15 = vld [vmem:[%s0 + $0x8] sm:$0xff]
  %vm16 = vcmask 523264
  %v17 = vsel %vm16, %v14, 0.0
  %18 = vadd.xlane.f32.xlu0 %v17
  %v19 = vpop.xlane.xlu0 %18
  %v20 = vsel %vm16, %v15, 0.0
  %21 = vadd.xlane.f32.xlu0 %v20
  %v22 = vpop.xlane.xlu0 %21
  %v23 = vrcp.pop 64.0
  %v24 = vmul.f32 64.0, %v23
  %v25 = vsub.f32 1.0, %v24
  %v26 = vmul.f32 %v23, %v25
  %v27 = vadd.f32 %v23, %v26
  %vm28 = vweird.f32 %v23
  %v29 = vsel %vm28, %v23, %v27
  %v30 = vmul.f32 %v19, %v29
  %v31 = vmul.f32 %v22, %v29
  %v32 = vsub.f32 %v14, %v30
  %v33 = vsub.f32 %v15, %v31
  %v34 = vmul.f32 %v32, %v32
  %v35 = vmul.f32 %v33, %v33
  %v36 = vsel %vm16, %v34, 0.0
  %37 = vadd.xlane.f32.xlu0 %v36
  %v38 = vpop.xlane.xlu0 %37
  %v39 = vsel %vm16, %v35, 0.0
  %40 = vadd.xlane.f32.xlu0 %v39
  %v41 = vpop.xlane.xlu0 %40
  %v42 = vmul.f32 %v38, %v29
  %v43 = vmul.f32 %v41, %v29
  %v44 = vadd.f32 %v42, 1e-12
  %v45 = vadd.f32 %v43, 1e-12
  %v46 = vrsqrt.pop %v44
  %v47 = vmul.f32 %v46, %v44
  %v48 = vmul.f32 %v47, %v46
  %v49 = vmul.f32 0.5, %v48
  %v50 = vsub.f32 1.5, %v49
  %v51 = vmul.f32 %v46, %v50
  %vm52 = vweird.f32 %v44
  %vm53 = vweird.f32 %v46
  %vm54 = vmor %vm52, %vm53
  %v55 = vsel %vm54, %v46, %v51
  %v56 = vrsqrt.pop %v45
  %v57 = vmul.f32 %v56, %v45
  %v58 = vmul.f32 %v57, %v56
  %v59 = vmul.f32 0.5, %v58
  %v60 = vsub.f32 1.5, %v59
  %v61 = vmul.f32 %v56, %v60
  %vm62 = vweird.f32 %v45
  %vm63 = vweird.f32 %v56
  %vm64 = vmor %vm62, %vm63
  %v65 = vsel %vm64, %v56, %v61
  %v66 = vmul.f32 %v32, %v55
  %v67 = vmul.f32 %v33, %v65
  %v68 = vld [vmem:[%s1] sm:$0x1]
  %v70 = vperm.slane %v68, 0
  %v72 = vmul.f32 %v66, %v70
  %v73 = vmul.f32 %v67, %v70
  %v74 = vld [vmem:[%s2] sm:$0x1]
  %v76 = vperm.slane %v74, 0
  %v78 = vadd.f32 %v72, %v76
  %v79 = vadd.f32 %v73, %v76
  %v80 = vpack.c.bf16 %v78, %v78
  %v81 = vpack.c.bf16 %v79, %v79
  %vm82 = vcmask 519168
  %83 = vst.msk [vmem:[%s3] sm:$0xf] %vm82, %v80
  %84 = vst.msk [vmem:[%s3 + $0x4] sm:$0xf] %vm82, %v81
  // Predicated region
  $region14: #{bert_entity_forward.14} parent=0 // pred_check
    _
  $region15: #{bert_entity_forward.14} parent=0 // pred_check_branch
    %86 = sbr.rel (0) target = $region17
  $region16: #{bert_entity_forward.14} parent=0 // pred_region
    _
  $region17: #{bert_entity_forward.14} parent=0 // pred_fallthru
    _
  // Predicated region
  $region18: #{bert_entity_forward.14} parent=0 // pred_check
    _
  $region19: #{bert_entity_forward.14} parent=0 // pred_check_branch
    %88 = sbr.rel (0) target = $region21
  $region20: #{bert_entity_forward.14} parent=0 // pred_region
    _
  $region21: #{bert_entity_forward.14} parent=0 // pred_fallthru
    _

// kernel: bert_entity_forward.16
$region0: #{bert_entity_forward.16}
  #allocation0 [shape = 'u32[]', space=smem, size = 0x4, offset = 0x4, fixed_abs, tag = 'smem constant byte address 0x4 - core index']
  #allocation1 [shape = 'u32[72,128]{1,0:T(1,128)}', space=vmem, size = 0x9000, scoped, tag = 'internal scratch']
  %s0 = inlined_call_operand.vmem [shape: bf16[2,8,192], index: 0, kind: input, shape index: {}]
  %s1 = inlined_call_operand.vmem [shape: f32[2,1,8], index: 1, kind: input, shape index: {}]
  %s2 = inlined_call_operand.vmem [shape: bf16[2,8,64], index: 2, kind: output, shape index: {}]
  %s3 = sld [smem:[#allocation0]]
  $region41: #{bert_entity_forward.16} parent=0
    _
  %s5 = ssub.s32 1, %s3
  %s6 = scalar_select 0, %s5, %s3
  loop: start=0, step=1, limit=4
  $region2: #{bert_entity_forward.16} parent=0 // loop_pre_header
    _
  $region3: #{bert_entity_forward.16} parent=0 // loop_header
    %s8 = sphi 0, %s12
    %p9 = scmp.ge.s32.totalorder %s8, 4
    %s18 = sphi 0, %s20
    %s21 = sphi 0, %s18
    %s22 = sphi 0, %s21
    %s38 = sphi 0, %s22
    %s44 = sphi 0, %s46
    %s47 = sphi 0, %s44
    %s48 = sphi 0, %s47
    %s64 = sphi 0, %s48
    %s70 = sphi 0, %s72
    %s73 = sphi 0, %s70
    %s74 = sphi 0, %s73
    %s90 = sphi 0, %s74
  $region4: #{bert_entity_forward.16} parent=0 // loop_header_branch
    %11 = sbr.rel (%p9) target = $region8
  $region5: #{bert_entity_forward.16} parent=0 // loop_body
    %s13 = ssub.s32 %s8, 1
    %s14 = ssub.s32 %s8, 2
    %s15 = sadd.s32 %s8, 1
    %s16 = ssub.s32 %s8, %s15
    %p17 = scmp.eq.s32.totalorder %s16, 0
    %s19 = sadd.s32 %s18, 1
    %s20 = scalar_select %p17, %s18, %s19
    %p23 = pneg %p17
    %p24 = scmp.eq.s32.totalorder %s8, 1
    %p25 = por %p23, %p24
    %p26 = scmp.ne.s32.totalorder %s18, %s21
    %p27 = scmp.eq.s32.totalorder %s8, 0
    %p28 = por %p26, %p27
    %p29 = scmp.ne.s32.totalorder %s18, %s21
    %p30 = scmp.eq.s32.totalorder %s13, 1
    %p31 = por %p29, %p30
    %p32 = scmp.ne.s32.totalorder %s21, %s22
    %p33 = scmp.eq.s32.totalorder %s13, 0
    %p34 = por %p32, %p33
    %p35 = scmp.ne.s32.totalorder %s21, %s22
    %p36 = scmp.eq.s32.totalorder %s14, 1
    %p37 = por %p35, %p36
    %p39 = scmp.ne.s32.totalorder %s22, %s38
    %p40 = scmp.eq.s32.totalorder %s14, 0
    %p41 = por %p39, %p40
    %s42 = ssub.s32 %s8, %s15
    %p43 = scmp.eq.s32.totalorder %s42, 0
    %s45 = sadd.s32 %s44, 1
    %s46 = scalar_select %p43, %s44, %s45
    %p49 = pneg %p43
    %p50 = scmp.eq.s32.totalorder %s8, 1
    %p51 = por %p49, %p50
    %p52 = scmp.ne.s32.totalorder %s44, %s47
    %p53 = scmp.eq.s32.totalorder %s8, 0
    %p54 = por %p52, %p53
    %p55 = scmp.ne.s32.totalorder %s44, %s47
    %p56 = scmp.eq.s32.totalorder %s13, 1
    %p57 = por %p55, %p56
    %p58 = scmp.ne.s32.totalorder %s47, %s48
    %p59 = scmp.eq.s32.totalorder %s13, 0
    %p60 = por %p58, %p59
    %p61 = scmp.ne.s32.totalorder %s47, %s48
    %p62 = scmp.eq.s32.totalorder %s14, 1
    %p63 = por %p61, %p62
    %p65 = scmp.ne.s32.totalorder %s48, %s64
    %p66 = scmp.eq.s32.totalorder %s14, 0
    %p67 = por %p65, %p66
    %s68 = ssub.s32 %s8, %s15
    %p69 = scmp.eq.s32.totalorder %s68, 0
    %s71 = sadd.s32 %s70, 1
    %s72 = scalar_select %p69, %s70, %s71
    %p75 = pneg %p69
    %p76 = scmp.eq.s32.totalorder %s8, 1
    %p77 = por %p75, %p76
    %p78 = scmp.ne.s32.totalorder %s70, %s73
    %p79 = scmp.eq.s32.totalorder %s8, 0
    %p80 = por %p78, %p79
    %p81 = scmp.ne.s32.totalorder %s70, %s73
    %p82 = scmp.eq.s32.totalorder %s13, 1
    %p83 = por %p81, %p82
    %p84 = scmp.ne.s32.totalorder %s73, %s74
    %p85 = scmp.eq.s32.totalorder %s13, 0
    %p86 = por %p84, %p85
    %p87 = scmp.ne.s32.totalorder %s73, %s74
    %p88 = scmp.eq.s32.totalorder %s14, 1
    %p89 = por %p87, %p88
    %p91 = scmp.ne.s32.totalorder %s74, %s90
    %p92 = scmp.eq.s32.totalorder %s14, 0
    %p93 = por %p91, %p92
    %p94 = scmp.le.s32.totalorder 1, %s8
    %p95 = scmp.lt.s32.totalorder %s8, 3
    %p96 = pnand %p94, %p95
    %p97 = pneg %p96
    // Predicated region
    $region9: #{bert_entity_forward.16} parent=5 // pred_check
      _
    $region10: #{bert_entity_forward.16} parent=5 // pred_check_branch
      %99 = sbr.rel (%p96) target = $region12
    $region11: #{bert_entity_forward.16} parent=5 // pred_region
      %s100 = ssub.s32 %s8, 1
    $region12: #{bert_entity_forward.16} parent=5 // pred_fallthru
      _
    %p101 = scmp.lt.s32.totalorder %s8, 2
    // Predicated region
    $region13: #{bert_entity_forward.16} parent=5 // pred_check
      %p102 = pneg %p101
    $region14: #{bert_entity_forward.16} parent=5 // pred_check_branch
      %104 = sbr.rel (%p102) target = $region16
    $region15: #{bert_entity_forward.16} parent=5 // pred_region
      // Predicated region
      $region17: #{bert_entity_forward.16} parent=15 // pred_check
        %p105 = pneg %p28
      $region18: #{bert_entity_forward.16} parent=15 // pred_check_branch
        %107 = sbr.rel (%p105) target = $region20
      $region19: #{bert_entity_forward.16} parent=15 // pred_region
        %p108 = scmp.lt.s32.totalorder %s8, 1
        %s109 = scalar_select %p108, %s8, 1
        %s110 = smul.addr %s109, 2
        %s111 = smul.addr %s110, 4
        %s112 = scalar_lea.vmem %s0, %s111
      $region20: #{bert_entity_forward.16} parent=15 // pred_fallthru
        _
      // Predicated region
      $region21: #{bert_entity_forward.16} parent=15 // pred_check
        %p113 = pneg %p54
      $region22: #{bert_entity_forward.16} parent=15 // pred_check_branch
        %115 = sbr.rel (%p113) target = $region24
      $region23: #{bert_entity_forward.16} parent=15 // pred_region
        %p116 = scmp.lt.s32.totalorder %s8, 1
        %s117 = scalar_select %p116, %s8, 1
        %s118 = scalar_lea.vmem %s1, %s117
      $region24: #{bert_entity_forward.16} parent=15 // pred_fallthru
        _
    $region16: #{bert_entity_forward.16} parent=5 // pred_fallthru
      _
    %p119 = scmp.le.s32.totalorder 1, %s8
    %p120 = scmp.lt.s32.totalorder %s8, 3
    %p121 = pnand %p119, %p120
    %p122 = pneg %p121
    // Predicated region
    $region25: #{bert_entity_forward.16} parent=5 // pred_check
      _
    $region26: #{bert_entity_forward.16} parent=5 // pred_check_branch
      %124 = sbr.rel (%p121) target = $region28
    $region27: #{bert_entity_forward.16} parent=5 // pred_region
      %s125 = ssub.s32 %s8, 1
      %p126 = scmp.lt.s32.totalorder %s13, 1
      %s127 = scalar_select %p126, %s13, 1
      %s128 = smul.addr %s127, 2
      %s129 = smul.addr %s128, 4
      %s130 = scalar_lea.vmem %s0, %s129
      %p131 = pneg %p34
      %p132 = pneg %p31
      %p133 = scmp.lt.s32.totalorder %s13, 1
      %s134 = scalar_select %p133, %s13, 1
      %s135 = scalar_lea.vmem %s1, %s134
      %p136 = pneg %p60
      %p137 = pneg %p57
      %p138 = pneg %p86
      %p139 = pneg %p83
      %p140 = scmp.lt.s32.totalorder %s13, 1
      %s141 = scalar_select %p140, %s13, 1
      %s142 = smul.addr %s141, 4
      %s143 = scalar_lea.vmem %s2, %s142
      %p144 = scmp.lt.s32.totalorder %s13, 1
      %s145 = scalar_select %p144, %s13, 1
      %s146 = smul.addr %s145, 2
      %s147 = smul.addr %s146, 4
      %s148 = scalar_lea.vmem %s0, %s147
      %p149 = scmp.lt.s32.totalorder %s13, 1
      %s150 = scalar_select %p149, %s13, 1
      %s151 = scalar_lea.vmem %s1, %s150
      %p152 = scmp.lt.s32.totalorder %s13, 1
      %s153 = scalar_select %p152, %s13, 1
      %s154 = smul.addr %s153, 4
      %s155 = scalar_lea.vmem %s2, %s154
      %v157 = vld [vmem:[%s151] sm:$0x1]
      %v158 = vld [vmem:[%s148] sm:$0xf]
      %v159 = vld [vmem:[%s148 + $0x4] sm:$0xf]
      %v161 = vperm.slane %v157, 0
      %v164 = vunpack.c.l.b16 %v158
      %v165 = vpack.c.b16 %v164, %v164
      %166 = vrot.lane.b32.xlu0 %v165, 64
      %v167 = vpop.permute.xlu0 %166
      %vm168 = vcmask 130048
      %v170 = vsel %vm168, %v158, 0
      %v173 = vsel %vm168, %v167, 0
      %175 = vmatpush.bf16.xpose.msra.mxu0 0
      %176 = vmatpush.bf16.xpose.msra.mxu0 0
      %177 = vmatpush.bf16.xpose.msra.mxu0 0
      %178 = vmatpush.bf16.xpose.msra.mxu0 0
      %179 = vmatpush.bf16.xpose.msra.mxu0 0
      %180 = vmatpush.bf16.xpose.msra.mxu0 0
      %181 = vmatpush.bf16.xpose.msra.mxu0 0
      %182 = vmatpush.bf16.xpose.msra.mxu0 %v173
      %183 = vmatmul.bf16.gmra.mxu0 %v170
      %v184 = vpop.f32.mrf.mxu0
      %v185 = vadd.f32 %v161, %v184
      %v186 = vpop.f32.mrf.mxu0
      %187 = vdwg.mxu0
      %vm188 = vcmask 64512
      %v189 = vsel %vm188, %v185, -inf
      %190 = vmax.xlane.f32.xlu0 %v189
      %v191 = vpop.xlane.xlu0 %190
      %v192 = vsub.f32 %v185, %v191
      %v193 = vmul.f32 %v192, 1.442695
      %v194 = vpow.pop %v193
      %v195 = vsel %vm188, %v194, 0.0
      %196 = vadd.xlane.f32.xlu0 %v195
      %v197 = vpop.xlane.xlu0 %196
      %v198 = vpack.c.bf16 %v194, %v194
      %v200 = vsel %vm188, %v198, 0
      %vm202 = vcmask 1043456
      %v204 = vsel %vm202, %v159, 0
      %206 = vmatpush.bf16.msra.mxu0 0
      %207 = vmatpush.bf16.msra.mxu0 0
      %208 = vmatpush.bf16.msra.mxu0 0
      %209 = vmatpush.bf16.msra.mxu0 0
      %210 = vmatpush.bf16.msra.mxu0 0
      %211 = vmatpush.bf16.msra.mxu0 0
      %212 = vmatpush.bf16.msra.mxu0 0
      %213 = vmatpush.bf16.msra.mxu0 %v204
      %214 = vmatmul.bf16.gmra.mxu0 %v200
      %v215 = vpop.f32.mrf.mxu0
      %v216 = vadd.f32 0.0, %v215
      %v217 = vpop.f32.mrf.mxu0
      %218 = vdwg.mxu0
      %v219 = vrcp.pop %v197
      %v220 = vmul.f32 %v216, %v219
      %v221 = vpack.c.bf16 %v220, %v220
      %vm222 = vcmask 125952
      %223 = vst.msk [vmem:[%s155] sm:$0xf] %vm222, %v221
      %v224 = vld [vmem:[%s148] sm:$0xf]
      %v225 = vld [vmem:[%s148 + $0x4] sm:$0xf]
      %v227 = vunpack.c.l.b16 %v224
      %v228 = vpack.c.b16 %v227, %v227
      %229 = vrot.lane.b32.xlu0 %v228, 112
      %v230 = vpop.permute.xlu0 %229
      %231 = vrot.lane.b32.xlu0 %v228, 48
      %v232 = vpop.permute.xlu0 %231
      %v234 = vsel %vm168, %v230, 0
      %v237 = vsel %vm168, %v232, 0
      %239 = vmatpush.bf16.xpose.msra.mxu0 0
      %240 = vmatpush.bf16.xpose.msra.mxu0 0
      %241 = vmatpush.bf16.xpose.msra.mxu0 0
      %242 = vmatpush.bf16.xpose.msra.mxu0 0
      %243 = vmatpush.bf16.xpose.msra.mxu0 0
      %244 = vmatpush.bf16.xpose.msra.mxu0 0
      %245 = vmatpush.bf16.xpose.msra.mxu0 0
      %246 = vmatpush.bf16.xpose.msra.mxu0 %v237
      %247 = vmatmul.bf16.gmra.mxu0 %v234
      %v248 = vpop.f32.mrf.mxu0
      %v249 = vadd.f32 %v161, %v248
      %v250 = vpop.f32.mrf.mxu0
      %251 = vdwg.mxu0
      %v252 = vsel %vm188, %v249, -inf
      %253 = vmax.xlane.f32.xlu0 %v252
      %v254 = vpop.xlane.xlu0 %253
      %v255 = vsub.f32 %v249, %v254
      %v256 = vmul.f32 %v255, 1.442695
      %v257 = vpow.pop %v256
      %v258 = vsel %vm188, %v257, 0.0
      %259 = vadd.xlane.f32.xlu0 %v258
      %v260 = vpop.xlane.xlu0 %259
      %v261 = vpack.c.bf16 %v257, %v257
      %v263 = vunpack.c.l.b16 %v225
      %v264 = vpack.c.b16 %v263, %v263
      %265 = vrot.lane.b32.xlu0 %v264, 112
      %v266 = vpop.permute.xlu0 %265
      %v268 = vsel %vm188, %v261, 0
      %v271 = vsel %vm202, %v266, 0
      %273 = vmatpush.bf16.msra.mxu0 0
      %274 = vmatpush.bf16.msra.mxu0 0
      %275 = vmatpush.bf16.msra.mxu0 0
      %276 = vmatpush.bf16.msra.mxu0 0
      %277 = vmatpush.bf16.msra.mxu0 0
      %278 = vmatpush.bf16.msra.mxu0 0
      %279 = vmatpush.bf16.msra.mxu0 0
      %280 = vmatpush.bf16.msra.mxu0 %v271
      %281 = vmatmul.bf16.gmra.mxu0 %v268
      %v282 = vpop.f32.mrf.mxu0
      %v283 = vadd.f32 0.0, %v282
      %v284 = vpop.f32.mrf.mxu0
      %285 = vdwg.mxu0
      %v286 = vrcp.pop %v260
      %v287 = vmul.f32 %v283, %v286
      %v288 = vpack.c.bf16 %v287, %v287
      %290 = vrot.lane.b32.xlu0 %v288, 16
      %v291 = vpop.permute.xlu0 %290
      %vm293 = vcmask 257152
      %294 = vst.msk [vmem:[%s155] sm:$0xf] %vm293, %v291
      %v295 = vld [vmem:[%s148] sm:$0xf]
      %v296 = vld [vmem:[%s148 + $0x4] sm:$0xf]
      %v298 = vunpack.c.l.b16 %v295
      %v299 = vpack.c.b16 %v298, %v298
      %300 = vrot.lane.b32.xlu0 %v299, 96
      %v301 = vpop.permute.xlu0 %300
      %302 = vrot.lane.b32.xlu0 %v299, 32
      %v303 = vpop.permute.xlu0 %302
      %v305 = vsel %vm168, %v301, 0
      %v308 = vsel %vm168, %v303, 0
      %310 = vmatpush.bf16.xpose.msra.mxu0 0
      %311 = vmatpush.bf16.xpose.msra.mxu0 0
      %312 = vmatpush.bf16.xpose.msra.mxu0 0
      %313 = vmatpush.bf16.xpose.msra.mxu0 0
      %314 = vmatpush.bf16.xpose.msra.mxu0 0
      %315 = vmatpush.bf16.xpose.msra.mxu0 0
      %316 = vmatpush.bf16.xpose.msra.mxu0 0
      %317 = vmatpush.bf16.xpose.msra.mxu0 %v308
      %318 = vmatmul.bf16.gmra.mxu0 %v305
      %v319 = vpop.f32.mrf.mxu0
      %v320 = vadd.f32 %v161, %v319
      %v321 = vpop.f32.mrf.mxu0
      %322 = vdwg.mxu0
      %v323 = vsel %vm188, %v320, -inf
      %324 = vmax.xlane.f32.xlu0 %v323
      %v325 = vpop.xlane.xlu0 %324
      %v326 = vsub.f32 %v320, %v325
      %v327 = vmul.f32 %v326, 1.442695
      %v328 = vpow.pop %v327
      %v329 = vsel %vm188, %v328, 0.0
      %330 = vadd.xlane.f32.xlu0 %v329
      %v331 = vpop.xlane.xlu0 %330
      %v332 = vpack.c.bf16 %v328, %v328
      %v334 = vunpack.c.l.b16 %v296
      %v335 = vpack.c.b16 %v334, %v334
      %336 = vrot.lane.b32.xlu0 %v335, 96
      %v337 = vpop.permute.xlu0 %336
      %v339 = vsel %vm188, %v332, 0
      %v342 = vsel %vm202, %v337, 0
      %344 = vmatpush.bf16.msra.mxu0 0
      %345 = vmatpush.bf16.msra.mxu0 0
      %346 = vmatpush.bf16.msra.mxu0 0
      %347 = vmatpush.bf16.msra.mxu0 0
      %348 = vmatpush.bf16.msra.mxu0 0
      %349 = vmatpush.bf16.msra.mxu0 0
      %350 = vmatpush.bf16.msra.mxu0 0
      %351 = vmatpush.bf16.msra.mxu0 %v342
      %352 = vmatmul.bf16.gmra.mxu0 %v339
      %v353 = vpop.f32.mrf.mxu0
      %v354 = vadd.f32 0.0, %v353
      %v355 = vpop.f32.mrf.mxu0
      %356 = vdwg.mxu0
      %v357 = vrcp.pop %v331
      %v358 = vmul.f32 %v354, %v357
      %v359 = vpack.c.bf16 %v358, %v358
      %361 = vrot.lane.b32.xlu0 %v359, 32
      %v362 = vpop.permute.xlu0 %361
      %vm364 = vcmask 388352
      %365 = vst.msk [vmem:[%s155] sm:$0xf] %vm364, %v362
      %v366 = vld [vmem:[%s148] sm:$0xf]
      %v367 = vld [vmem:[%s148 + $0x4] sm:$0xf]
      %v369 = vunpack.c.l.b16 %v366
      %v370 = vpack.c.b16 %v369, %v369
      %371 = vrot.lane.b32.xlu0 %v370, 80
      %v372 = vpop.permute.xlu0 %371
      %373 = vrot.lane.b32.xlu0 %v370, 16
      %v374 = vpop.permute.xlu0 %373
      %v376 = vsel %vm168, %v372, 0
      %v379 = vsel %vm168, %v374, 0
      %381 = vmatpush.bf16.xpose.msra.mxu0 0
      %382 = vmatpush.bf16.xpose.msra.mxu0 0
      %383 = vmatpush.bf16.xpose.msra.mxu0 0
      %384 = vmatpush.bf16.xpose.msra.mxu0 0
      %385 = vmatpush.bf16.xpose.msra.mxu0 0
      %386 = vmatpush.bf16.xpose.msra.mxu0 0
      %387 = vmatpush.bf16.xpose.msra.mxu0 0
      %388 = vmatpush.bf16.xpose.msra.mxu0 %v379
      %389 = vmatmul.bf16.gmra.mxu0 %v376
      %v390 = vpop.f32.mrf.mxu0
      %v391 = vadd.f32 %v161, %v390
      %v392 = vpop.f32.mrf.mxu0
      %393 = vdwg.mxu0
      %v394 = vsel %vm188, %v391, -inf
      %395 = vmax.xlane.f32.xlu0 %v394
      %v396 = vpop.xlane.xlu0 %395
      %v397 = vsub.f32 %v391, %v396
      %v398 = vmul.f32 %v397, 1.442695
      %v399 = vpow.pop %v398
      %v400 = vsel %vm188, %v399, 0.0
      %401 = vadd.xlane.f32.xlu0 %v400
      %v402 = vpop.xlane.xlu0 %401
      %v403 = vpack.c.bf16 %v399, %v399
      %v405 = vunpack.c.l.b16 %v367
      %v406 = vpack.c.b16 %v405, %v405
      %407 = vrot.lane.b32.xlu0 %v406, 80
      %v408 = vpop.permute.xlu0 %407
      %v410 = vsel %vm188, %v403, 0
      %v413 = vsel %vm202, %v408, 0
      %415 = vmatpush.bf16.msra.mxu0 0
      %416 = vmatpush.bf16.msra.mxu0 0
      %417 = vmatpush.bf16.msra.mxu0 0
      %418 = vmatpush.bf16.msra.mxu0 0
      %419 = vmatpush.bf16.msra.mxu0 0
      %420 = vmatpush.bf16.msra.mxu0 0
      %421 = vmatpush.bf16.msra.mxu0 0
      %422 = vmatpush.bf16.msra.mxu0 %v413
      %423 = vmatmul.bf16.gmra.mxu0 %v410
      %v424 = vpop.f32.mrf.mxu0
      %v425 = vadd.f32 0.0, %v424
      %v426 = vpop.f32.mrf.mxu0
      %427 = vdwg.mxu0
      %v428 = vrcp.pop %v402
      %v429 = vmul.f32 %v425, %v428
      %v430 = vpack.c.bf16 %v429, %v429
      %432 = vrot.lane.b32.xlu0 %v430, 48
      %v433 = vpop.permute.xlu0 %432
      %vm435 = vcmask 519552
      %436 = vst.msk [vmem:[%s155] sm:$0xf] %vm435, %v433
      %p437 = scmp.lt.s32.totalorder %s13, 1
      %s438 = scalar_select %p437, %s13, 1
      %s439 = smul.addr %s438, 4
      %s440 = scalar_lea.vmem %s2, %s439
      // Predicated region
      $region29: #{bert_entity_forward.16} parent=27 // pred_check
        %p441 = pneg %p83
      $region30: #{bert_entity_forward.16} parent=27 // pred_check_branch
        %443 = sbr.rel (%p441) target = $region32
      $region31: #{bert_entity_forward.16} parent=27 // pred_region
        _
      $region32: #{bert_entity_forward.16} parent=27 // pred_fallthru
        _
    $region28: #{bert_entity_forward.16} parent=5 // pred_fallthru
      _
    %p444 = scmp.le.s32.totalorder 2, %s8
    // Predicated region
    $region33: #{bert_entity_forward.16} parent=5 // pred_check
      %p445 = pneg %p444
    $region34: #{bert_entity_forward.16} parent=5 // pred_check_branch
      %447 = sbr.rel (%p445) target = $region36
    $region35: #{bert_entity_forward.16} parent=5 // pred_region
      %s448 = ssub.s32 %s8, 2
      // Predicated region
      $region37: #{bert_entity_forward.16} parent=35 // pred_check
        %p449 = pneg %p89
      $region38: #{bert_entity_forward.16} parent=35 // pred_check_branch
        %451 = sbr.rel (%p449) target = $region40
      $region39: #{bert_entity_forward.16} parent=35 // pred_region
        %p452 = scmp.lt.s32.totalorder %s14, 1
        %s453 = scalar_select %p452, %s14, 1
        %s454 = smul.addr %s453, 4
        %s455 = scalar_lea.vmem %s2, %s454
      $region40: #{bert_entity_forward.16} parent=35 // pred_fallthru
        _
    $region36: #{bert_entity_forward.16} parent=5 // pred_fallthru
      _
  $region6: #{bert_entity_forward.16} parent=0 // loop_footer
    %s12 = sadd.s32 1, %s8
  $region7: #{bert_entity_forward.16} parent=0 // loop_footer_branch
    %7 = sbr.rel target = $region3
  $region8: #{bert_entity_forward.16} parent=0 // loop_exit
    _

// kernel: bert_entity_forward.18
$region0: #{bert_entity_forward.18}
  #allocation0 [shape = 'u32[]', space=smem, size = 0x4, offset = 0x4, fixed_abs, tag = 'smem constant byte address 0x4 - core index']
  #allocation1 [shape = 'u32[72,128]{1,0:T(1,128)}', space=vmem, size = 0x9000, scoped, tag = 'internal scratch']
  %s0 = inlined_call_operand.vmem [shape: bf16[16,64], index: 0, kind: input, shape index: {}]
  %s1 = inlined_call_operand.vmem [shape: bf16[64,128], index: 1, kind: input, shape index: {}]
  %s2 = inlined_call_operand.vmem [shape: f32[1,128], index: 2, kind: input, shape index: {}]
  %s3 = inlined_call_operand.vmem [shape: bf16[16,128], index: 3, kind: output, shape index: {}]
  %s4 = sld [smem:[#allocation0]]
  $region22: #{bert_entity_forward.18} parent=0
    _
  %s6 = ssub.s32 1, %s4
  %s7 = scalar_select 0, %s6, %s4
  // Predicated region
  $region2: #{bert_entity_forward.18} parent=0 // pred_check
    _
  $region3: #{bert_entity_forward.18} parent=0 // pred_check_branch
    %9 = sbr.rel (0) target = $region5
  $region4: #{bert_entity_forward.18} parent=0 // pred_region
    _
  $region5: #{bert_entity_forward.18} parent=0 // pred_fallthru
    _
  // Predicated region
  $region6: #{bert_entity_forward.18} parent=0 // pred_check
    _
  $region7: #{bert_entity_forward.18} parent=0 // pred_check_branch
    %11 = sbr.rel (0) target = $region9
  $region8: #{bert_entity_forward.18} parent=0 // pred_region
    _
  $region9: #{bert_entity_forward.18} parent=0 // pred_fallthru
    _
  // Predicated region
  $region10: #{bert_entity_forward.18} parent=0 // pred_check
    _
  $region11: #{bert_entity_forward.18} parent=0 // pred_check_branch
    %13 = sbr.rel (0) target = $region13
  $region12: #{bert_entity_forward.18} parent=0 // pred_region
    _
  $region13: #{bert_entity_forward.18} parent=0 // pred_fallthru
    _
  %v15 = vld [vmem:[%s0] sm:$0xf]
  %v16 = vld [vmem:[%s0 + $0x4] sm:$0xf]
  %v17 = vld [vmem:[%s1] sm:$0xf]
  %v18 = vld [vmem:[%s1 + $0x4] sm:$0xf]
  %v19 = vld [vmem:[%s1 + $0x8] sm:$0xf]
  %v20 = vld [vmem:[%s1 + $0xc] sm:$0xf]
  %v21 = vld [vmem:[%s1 + $0x10] sm:$0xf]
  %v22 = vld [vmem:[%s1 + $0x14] sm:$0xf]
  %v23 = vld [vmem:[%s1 + $0x18] sm:$0xf]
  %v24 = vld [vmem:[%s1 + $0x1c] sm:$0xf]
  %v25 = vld [vmem:[%s2] sm:$0x1]
  %v27 = vperm.slane %v25, 0
  %v31 = vunpack.c.l.b16 %v15
  %v32 = vunpack.c.l.b16 %v16
  %v33 = vpack.c.b16 %v32, %v31
  %v42 = vunpack.c.l.b16 %v17
  %v43 = vunpack.c.l.b16 %v18
  %v44 = vunpack.c.l.b16 %v19
  %v45 = vunpack.c.l.b16 %v20
  %v46 = vunpack.c.l.b16 %v21
  %v47 = vunpack.c.l.b16 %v22
  %v48 = vunpack.c.l.b16 %v23
  %v49 = vunpack.c.l.b16 %v24
  %v50 = vpack.c.b16 %v43, %v42
  %v51 = vpack.c.b16 %v45, %v44
  %v52 = vpack.c.b16 %v47, %v46
  %v53 = vpack.c.b16 %v49, %v48
  %vm58 = vcmask 523264
  %v60 = vsel %vm58, %v33, 0
  %62 = vmatpush.bf16.msra.mxu0 0
  %63 = vmatpush.bf16.msra.mxu0 0
  %64 = vmatpush.bf16.msra.mxu0 0
  %65 = vmatpush.bf16.msra.mxu0 0
  %66 = vmatpush.bf16.msra.mxu0 %v53
  %67 = vmatpush.bf16.msra.mxu0 %v52
  %68 = vmatpush.bf16.msra.mxu0 %v51
  %69 = vmatpush.bf16.msra.mxu0 %v50
  %70 = vmatmul.bf16.gmra.mxu0 %v60
  %v71 = vpop.f32.mrf.mxu0
  %v72 = vadd.f32 %v27, %v71
  %v73 = vpop.f32.mrf.mxu0
  %v74 = vadd.f32 %v27, %v73
  %75 = vdwg.mxu0
  %v76 = vmul.f32 %v72, %v72
  %v77 = vmul.f32 %v74, %v74
  %v78 = vmul.f32 %v72, %v76
  %v79 = vmul.f32 %v74, %v77
  %v80 = vmul.f32 %v78, 0.044715
  %v81 = vmul.f32 %v79, 0.044715
  %v82 = vadd.f32 %v72, %v80
  %v83 = vadd.f32 %v74, %v81
  %v84 = vmul.f32 %v82, 0.7978846
  %v85 = vmul.f32 %v83, 0.7978846
  %v86 = vtanh.pop %v84
  %v87 = vtanh.pop %v85
  %v88 = vadd.f32 %v86, 1.0
  %v89 = vadd.f32 %v87, 1.0
  %v90 = vmul.f32 %v88, 0.5
  %v91 = vmul.f32 %v89, 0.5
  %v92 = vmul.f32 %v72, %v90
  %v93 = vmul.f32 %v74, %v91
  %v94 = vpack.c.bf16 %v92, %v92
  %v95 = vpack.c.bf16 %v93, %v93
  %96 = vst [vmem:[%s3] sm:$0xf] %v94
  %97 = vst [vmem:[%s3 + $0x4] sm:$0xf] %v95
  // Predicated region
  $region14: #{bert_entity_forward.18} parent=0 // pred_check
    _
  $region15: #{bert_entity_forward.18} parent=0 // pred_check_branch
    %99 = sbr.rel (0) target = $region17
  $region16: #{bert_entity_forward.18} parent=0 // pred_region
    _
  $region17: #{bert_entity_forward.18} parent=0 // pred_fallthru
    _
  // Predicated region
  $region18: #{bert_entity_forward.18} parent=0 // pred_check
    _
  $region19: #{bert_entity_forward.18} parent=0 // pred_check_branch
    %101 = sbr.rel (0) target = $region21
  $region20: #{bert_entity_forward.18} parent=0 // pred_region
    _
  $region21: #{bert_entity_forward.18} parent=0 // pred_fallthru
    _

// kernel: bert_entity_forward.19
$region0: #{bert_entity_forward.19}
  #allocation0 [shape = 'u32[]', space=smem, size = 0x4, offset = 0x4, fixed_abs, tag = 'smem constant byte address 0x4 - core index']
  #allocation1 [shape = 'u32[72,128]{1,0:T(1,128)}', space=vmem, size = 0x9000, scoped, tag = 'internal scratch']
  %s0 = inlined_call_operand.vmem [shape: bf16[16,128], index: 0, kind: input, shape index: {}]
  %s1 = inlined_call_operand.vmem [shape: bf16[128,64], index: 1, kind: input, shape index: {}]
  %s2 = inlined_call_operand.vmem [shape: f32[1,64], index: 2, kind: input, shape index: {}]
  %s3 = inlined_call_operand.vmem [shape: bf16[16,64], index: 3, kind: input, shape index: {}]
  %s4 = inlined_call_operand.vmem [shape: f32[1,64], index: 4, kind: input, shape index: {}]
  %s5 = inlined_call_operand.vmem [shape: f32[1,64], index: 5, kind: input, shape index: {}]
  %s6 = inlined_call_operand.vmem [shape: bf16[16,64], index: 6, kind: output, shape index: {}]
  %s7 = sld [smem:[#allocation0]]
  $region34: #{bert_entity_forward.19} parent=0
    _
  %s9 = ssub.s32 1, %s7
  %s10 = scalar_select 0, %s9, %s7
  // Predicated region
  $region2: #{bert_entity_forward.19} parent=0 // pred_check
    _
  $region3: #{bert_entity_forward.19} parent=0 // pred_check_branch
    %12 = sbr.rel (0) target = $region5
  $region4: #{bert_entity_forward.19} parent=0 // pred_region
    _
  $region5: #{bert_entity_forward.19} parent=0 // pred_fallthru
    _
  // Predicated region
  $region6: #{bert_entity_forward.19} parent=0 // pred_check
    _
  $region7: #{bert_entity_forward.19} parent=0 // pred_check_branch
    %14 = sbr.rel (0) target = $region9
  $region8: #{bert_entity_forward.19} parent=0 // pred_region
    _
  $region9: #{bert_entity_forward.19} parent=0 // pred_fallthru
    _
  // Predicated region
  $region10: #{bert_entity_forward.19} parent=0 // pred_check
    _
  $region11: #{bert_entity_forward.19} parent=0 // pred_check_branch
    %16 = sbr.rel (0) target = $region13
  $region12: #{bert_entity_forward.19} parent=0 // pred_region
    _
  $region13: #{bert_entity_forward.19} parent=0 // pred_fallthru
    _
  // Predicated region
  $region14: #{bert_entity_forward.19} parent=0 // pred_check
    _
  $region15: #{bert_entity_forward.19} parent=0 // pred_check_branch
    %18 = sbr.rel (0) target = $region17
  $region16: #{bert_entity_forward.19} parent=0 // pred_region
    _
  $region17: #{bert_entity_forward.19} parent=0 // pred_fallthru
    _
  // Predicated region
  $region18: #{bert_entity_forward.19} parent=0 // pred_check
    _
  $region19: #{bert_entity_forward.19} parent=0 // pred_check_branch
    %20 = sbr.rel (0) target = $region21
  $region20: #{bert_entity_forward.19} parent=0 // pred_region
    _
  $region21: #{bert_entity_forward.19} parent=0 // pred_fallthru
    _
  // Predicated region
  $region22: #{bert_entity_forward.19} parent=0 // pred_check
    _
  $region23: #{bert_entity_forward.19} parent=0 // pred_check_branch
    %22 = sbr.rel (0) target = $region25
  $region24: #{bert_entity_forward.19} parent=0 // pred_region
    _
  $region25: #{bert_entity_forward.19} parent=0 // pred_fallthru
    _
  %v23 = vld [vmem:[%s0] sm:$0xf]
  %v24 = vld [vmem:[%s0 + $0x4] sm:$0xf]
  %v25 = vld [vmem:[%s1] sm:$0xf]
  %v26 = vld [vmem:[%s1 + $0x4] sm:$0xf]
  %v27 = vld [vmem:[%s1 + $0x8] sm:$0xf]
  %v28 = vld [vmem:[%s1 + $0xc] sm:$0xf]
  %v29 = vld [vmem:[%s1 + $0x10] sm:$0xf]
  %v30 = vld [vmem:[%s1 + $0x14] sm:$0xf]
  %v31 = vld [vmem:[%s1 + $0x18] sm:$0xf]
  %v32 = vld [vmem:[%s1 + $0x1c] sm:$0xf]
  %v33 = vld [vmem:[%s1 + $0x20] sm:$0xf]
  %v34 = vld [vmem:[%s1 + $0x24] sm:$0xf]
  %v35 = vld [vmem:[%s1 + $0x28] sm:$0xf]
  %v36 = vld [vmem:[%s1 + $0x2c] sm:$0xf]
  %v37 = vld [vmem:[%s1 + $0x30] sm:$0xf]
  %v38 = vld [vmem:[%s1 + $0x34] sm:$0xf]
  %v39 = vld [vmem:[%s1 + $0x38] sm:$0xf]
  %v40 = vld [vmem:[%s1 + $0x3c] sm:$0xf]
  %v41 = vld [vmem:[%s2] sm:$0x1]
  %v43 = vperm.slane %v41, 0
  %v47 = vunpack.c.l.b16 %v23
  %v48 = vunpack.c.l.b16 %v24
  %v49 = vpack.c.b16 %v48, %v47
  %v67 = vunpack.c.l.b16 %v25
  %v68 = vunpack.c.l.b16 %v26
  %v69 = vunpack.c.l.b16 %v27
  %v70 = vunpack.c.l.b16 %v28
  %v71 = vunpack.c.l.b16 %v29
  %v72 = vunpack.c.l.b16 %v30
  %v73 = vunpack.c.l.b16 %v31
  %v74 = vunpack.c.l.b16 %v32
  %v75 = vunpack.c.l.b16 %v33
  %v76 = vunpack.c.l.b16 %v34
  %v77 = vunpack.c.l.b16 %v35
  %v78 = vunpack.c.l.b16 %v36
  %v79 = vunpack.c.l.b16 %v37
  %v80 = vunpack.c.l.b16 %v38
  %v81 = vunpack.c.l.b16 %v39
  %v82 = vunpack.c.l.b16 %v40
  %v83 = vpack.c.b16 %v68, %v67
  %v84 = vpack.c.b16 %v70, %v69
  %v85 = vpack.c.b16 %v72, %v71
  %v86 = vpack.c.b16 %v74, %v73
  %v87 = vpack.c.b16 %v76, %v75
  %v88 = vpack.c.b16 %v78, %v77
  %v89 = vpack.c.b16 %v80, %v79
  %v90 = vpack.c.b16 %v82, %v81
  %99 = vmatpush.bf16.msra.mxu0 %v90
  %100 = vmatpush.bf16.msra.mxu0 %v89
  %101 = vmatpush.bf16.msra.mxu0 %v88
  %102 = vmatpush.bf16.msra.mxu0 %v87
  %103 = vmatpush.bf16.msra.mxu0 %v86
  %104 = vmatpush.bf16.msra.mxu0 %v85
  %105 = vmatpush.bf16.msra.mxu0 %v84
  %106 = vmatpush.bf16.msra.mxu0 %v83
  %107 = vmatmul.bf16.gmra.mxu0 %v49
  %v108 = vpop.f32.mrf.mxu0
  %v109 = vadd.f32 %v43, %v108
  %v110 = vpop.f32.mrf.mxu0
  %v111 = vadd.f32 %v43, %v110
  %112 = vdwg.mxu0
  %v113 = vld [vmem:[%s3] sm:$0xf]
  %v114 = vld [vmem:[%s3 + $0x4] sm:$0xf]
  %v115 = vunpack.c.l.bf16 %v113
  %v116 = vunpack.c.l.bf16 %v114
  %v117 = vadd.f32 %v109, %v115
  %v118 = vadd.f32 %v111, %v116
  %vm119 = vcmask 523264
  %v120 = vsel %vm119, %v117, 0.0
  %121 = vadd.xlane.f32.xlu0 %v120
  %v122 = vpop.xlane.xlu0 %121
  %v123 = vsel %vm119, %v118, 0.0
  %124 = vadd.xlane.f32.xlu0 %v123
  %v125 = vpop.xlane.xlu0 %124
  %v126 = vrcp.pop 64.0
  %v127 = vmul.f32 64.0, %v126
  %v128 = vsub.f32 1.0, %v127
  %v129 = vmul.f32 %v126, %v128
  %v130 = vadd.f32 %v126, %v129
  %vm131 = vweird.f32 %v126
  %v132 = vsel %vm131, %v126, %v130
  %v133 = vmul.f32 %v122, %v132
  %v134 = vmul.f32 %v125, %v132
  %v135 = vsub.f32 %v117, %v133
  %v136 = vsub.f32 %v118, %v134
  %v137 = vmul.f32 %v135, %v135
  %v138 = vmul.f32 %v136, %v136
  %v139 = vsel %vm119, %v137, 0.0
  %140 = vadd.xlane.f32.xlu0 %v139
  %v141 = vpop.xlane.xlu0 %140
  %v142 = vsel %vm119, %v138, 0.0
  %143 = vadd.xlane.f32.xlu0 %v142
  %v144 = vpop.xlane.xlu0 %143
  %v145 = vmul.f32 %v141, %v132
  %v146 = vmul.f32 %v144, %v132
  %v147 = vadd.f32 %v145, 1e-12
  %v148 = vadd.f32 %v146, 1e-12
  %v149 = vrsqrt.pop %v147
  %v150 = vmul.f32 %v149, %v147
  %v151 = vmul.f32 %v150, %v149
  %v152 = vmul.f32 0.5, %v151
  %v153 = vsub.f32 1.5, %v152
  %v154 = vmul.f32 %v149, %v153
  %vm155 = vweird.f32 %v147
  %vm156 = vweird.f32 %v149
  %vm157 = vmor %vm155, %vm156
  %v158 = vsel %vm157, %v149, %v154
  %v159 = vrsqrt.pop %v148
  %v160 = vmul.f32 %v159, %v148
  %v161 = vmul.f32 %v160, %v159
  %v162 = vmul.f32 0.5, %v161
  %v163 = vsub.f32 1.5, %v162
  %v164 = vmul.f32 %v159, %v163
  %vm165 = vweird.f32 %v148
  %vm166 = vweird.f32 %v159
  %vm167 = vmor %vm165, %vm166
  %v168 = vsel %vm167, %v159, %v164
  %v169 = vmul.f32 %v135, %v158
  %v170 = vmul.f32 %v136, %v168
  %v171 = vld [vmem:[%s4] sm:$0x1]
  %v173 = vperm.slane %v171, 0
  %v175 = vmul.f32 %v169, %v173
  %v176 = vmul.f32 %v170, %v173
  %v177 = vld [vmem:[%s5] sm:$0x1]
  %v179 = vperm.slane %v177, 0
  %v181 = vadd.f32 %v175, %v179
  %v182 = vadd.f32 %v176, %v179
  %v183 = vpack.c.bf16 %v181, %v181
  %v184 = vpack.c.bf16 %v182, %v182
  %vm185 = vcmask 519168
  %186 = vst.msk [vmem:[%s6] sm:$0xf] %vm185, %v183
  %187 = vst.msk [vmem:[%s6 + $0x4] sm:$0xf] %vm185, %v184
  // Predicated region
  $region26: #{bert_entity_forward.19} parent=0 // pred_check
    _
  $region27: #{bert_entity_forward.19} parent=0 // pred_check_branch
    %189 = sbr.rel (0) target = $region29
  $region28: #{bert_entity_forward.19} parent=0 // pred_region
    _
  $region29: #{bert_entity_forward.19} parent=0 // pred_fallthru
    _
  // Predicated region
  $region30: #{bert_entity_forward.19} parent=0 // pred_check
    _
  $region31: #{bert_entity_forward.19} parent=0 // pred_check_branch
    %191 = sbr.rel (0) target = $region33
  $region32: #{bert_entity_forward.19} parent=0 // pred_region
    _
  $region33: #{bert_entity_forward.19} parent=0 // pred_fallthru
    _

// kernel: bert_entity_forward.25
$region0: #{bert_entity_forward.25}
  #allocation0 [shape = 'u32[]', space=smem, size = 0x4, offset = 0x4, fixed_abs, tag = 'smem constant byte address 0x4 - core index']
  #allocation1 [shape = 'u32[72,128]{1,0:T(1,128)}', space=vmem, size = 0x9000, scoped, tag = 'internal scratch']
  %s0 = inlined_call_operand.vmem [shape: bf16[16,64], index: 0, kind: input, shape index: {}]
  %s1 = inlined_call_operand.vmem [shape: bf16[64,256], index: 1, kind: input, shape index: {}]
  %s2 = inlined_call_operand.vmem [shape: f32[1,256], index: 2, kind: input, shape index: {}]
  %s3 = inlined_call_operand.vmem [shape: f32[16,256], index: 3, kind: output, shape index: {}]
  %s4 = sld [smem:[#allocation0]]
  $region22: #{bert_entity_forward.25} parent=0
    _
  %s6 = ssub.s32 1, %s4
  %s7 = scalar_select 0, %s6, %s4
  // Predicated region
  $region2: #{bert_entity_forward.25} parent=0 // pred_check
    _
  $region3: #{bert_entity_forward.25} parent=0 // pred_check_branch
    %9 = sbr.rel (0) target = $region5
  $region4: #{bert_entity_forward.25} parent=0 // pred_region
    _
  $region5: #{bert_entity_forward.25} parent=0 // pred_fallthru
    _
  // Predicated region
  $region6: #{bert_entity_forward.25} parent=0 // pred_check
    _
  $region7: #{bert_entity_forward.25} parent=0 // pred_check_branch
    %11 = sbr.rel (0) target = $region9
  $region8: #{bert_entity_forward.25} parent=0 // pred_region
    _
  $region9: #{bert_entity_forward.25} parent=0 // pred_fallthru
    _
  // Predicated region
  $region10: #{bert_entity_forward.25} parent=0 // pred_check
    _
  $region11: #{bert_entity_forward.25} parent=0 // pred_check_branch
    %13 = sbr.rel (0) target = $region13
  $region12: #{bert_entity_forward.25} parent=0 // pred_region
    _
  $region13: #{bert_entity_forward.25} parent=0 // pred_fallthru
    _
  %v15 = vld [vmem:[%s0] sm:$0xf]
  %v16 = vld [vmem:[%s0 + $0x4] sm:$0xf]
  %v17 = vld [vmem:[%s1] sm:$0xff]
  %v18 = vld [vmem:[%s1 + $0x8] sm:$0xff]
  %v19 = vld [vmem:[%s1 + $0x10] sm:$0xff]
  %v20 = vld [vmem:[%s1 + $0x18] sm:$0xff]
  %v21 = vld [vmem:[%s1 + $0x20] sm:$0xff]
  %v22 = vld [vmem:[%s1 + $0x28] sm:$0xff]
  %v23 = vld [vmem:[%s1 + $0x30] sm:$0xff]
  %v24 = vld [vmem:[%s1 + $0x38] sm:$0xff]
  %v25 = vld [vmem:[%s2] sm:$0x3]
  %v27 = vperm.slane %v25, 0
  %v28 = vperm.slane %v25, 1
  %v33 = vunpack.c.l.b16 %v15
  %v34 = vunpack.c.l.b16 %v16
  %v35 = vpack.c.b16 %v34, %v33
  %v44 = vunpack.c.l.b16 %v17
  %v45 = vunpack.c.h.b16 %v17
  %v46 = vunpack.c.l.b16 %v18
  %v47 = vunpack.c.h.b16 %v18
  %v48 = vunpack.c.l.b16 %v19
  %v49 = vunpack.c.h.b16 %v19
  %v50 = vunpack.c.l.b16 %v20
  %v51 = vunpack.c.h.b16 %v20
  %v52 = vunpack.c.l.b16 %v21
  %v53 = vunpack.c.h.b16 %v21
  %v54 = vunpack.c.l.b16 %v22
  %v55 = vunpack.c.h.b16 %v22
  %v56 = vunpack.c.l.b16 %v23
  %v57 = vunpack.c.h.b16 %v23
  %v58 = vunpack.c.l.b16 %v24
  %v59 = vunpack.c.h.b16 %v24
  %v60 = vpack.c.b16 %v46, %v44
  %v61 = vpack.c.b16 %v47, %v45
  %v62 = vpack.c.b16 %v50, %v48
  %v63 = vpack.c.b16 %v51, %v49
  %v64 = vpack.c.b16 %v54, %v52
  %v65 = vpack.c.b16 %v55, %v53
  %v66 = vpack.c.b16 %v58, %v56
  %v67 = vpack.c.b16 %v59, %v57
  %vm76 = vcmask 523264
  %v78 = vsel %vm76, %v35, 0
  %80 = vmatpush.bf16.msra.mxu0 0
  %81 = vmatpush.bf16.msra.mxu0 0
  %82 = vmatpush.bf16.msra.mxu0 0
  %83 = vmatpush.bf16.msra.mxu0 0
  %84 = vmatpush.bf16.msra.mxu0 %v66
  %85 = vmatpush.bf16.msra.mxu0 %v64
  %86 = vmatpush.bf16.msra.mxu0 %v62
  %87 = vmatpush.bf16.msra.mxu0 %v60
  %88 = vmatmul.bf16.gmra.mxu0 %v78
  %v89 = vpop.f32.mrf.mxu0
  %v90 = vadd.f32 %v27, %v89
  %v91 = vpop.f32.mrf.mxu0
  %v92 = vadd.f32 %v27, %v91
  %93 = vdwg.mxu0
  %94 = vmatpush.bf16.msra.mxu0 0
  %95 = vmatpush.bf16.msra.mxu0 0
  %96 = vmatpush.bf16.msra.mxu0 0
  %97 = vmatpush.bf16.msra.mxu0 0
  %98 = vmatpush.bf16.msra.mxu0 %v67
  %99 = vmatpush.bf16.msra.mxu0 %v65
  %100 = vmatpush.bf16.msra.mxu0 %v63
  %101 = vmatpush.bf16.msra.mxu0 %v61
  %102 = vmatmul.bf16.gmra.mxu0 %v78
  %v103 = vpop.f32.mrf.mxu0
  %v104 = vadd.f32 %v28, %v103
  %v105 = vpop.f32.mrf.mxu0
  %v106 = vadd.f32 %v28, %v105
  %107 = vdwg.mxu0
  %108 = vst [vmem:[%s3] sm:$0xff] %v90
  %109 = vst [vmem:[%s3 + $0x8] sm:$0xff] %v104
  %110 = vst [vmem:[%s3 + $0x10] sm:$0xff] %v92
  %111 = vst [vmem:[%s3 + $0x18] sm:$0xff] %v106
  // Predicated region
  $region14: #{bert_entity_forward.25} parent=0 // pred_check
    _
  $region15: #{bert_entity_forward.25} parent=0 // pred_check_branch
    %113 = sbr.rel (0) target = $region17
  $region16: #{bert_entity_forward.25} parent=0 // pred_region
    _
  $region17: #{bert_entity_forward.25} parent=0 // pred_fallthru
    _
  // Predicated region
  $region18: #{bert_entity_forward.25} parent=0 // pred_check
    _
  $region19: #{bert_entity_forward.25} parent=0 // pred_check_branch
    %115 = sbr.rel (0) target = $region21
  $region20: #{bert_entity_forward.25} parent=0 // pred_region
    _
  $region21: #{bert_entity_forward.25} parent=0 // pred_fallthru
    _

// kernel: bert_entity_forward.26
$region0: #{bert_entity_forward.26}
  #allocation0 [shape = 'u32[]', space=smem, size = 0x4, offset = 0x4, fixed_abs, tag = 'smem constant byte address 0x4 - core index']
  #allocation1 [shape = 'u32[72,128]{1,0:T(1,128)}', space=vmem, size = 0x9000, scoped, tag = 'internal scratch']
  #allocation2 [shape = 'f32[1,1]{1,0:T(1,128)}', space=vmem, size = 0x200, scoped, tag = 'scratch operand']
  #allocation3 [shape = 'f32[1,1]{1,0:T(1,128)}', space=vmem, size = 0x200, scoped, tag = 'scratch operand']
  %s0 = inlined_call_operand.vmem [shape: f32[16,256], index: 0, kind: input, shape index: {}]
  %s1 = inlined_call_operand.vmem [shape: s32[16,1], index: 1, kind: input, shape index: {}]
  %s2 = inlined_call_operand.vmem [shape: s32[16,1], index: 2, kind: input, shape index: {}]
  %s3 = inlined_call_operand.hbm [shape: f32[1,1], index: 3, kind: output, shape index: {}]
  %s4 = sld [smem:[#allocation0]]
  $region68: #{bert_entity_forward.26} parent=0
    _
  %s6 = ssub.s32 1, %s4
  %s7 = scalar_select 0, %s6, %s4
  $region1: #{bert_entity_forward.26} parent=0
    #allocation4 [shape = 'u8[8192]{0}', space=vmem, size = 0x2000, scoped, tag = 'input window, operand 0, single buffered']
    #allocation5 [shape = 'u8[512]{0}', space=vmem, size = 0x400, scoped, tag = 'output window, operand 0, single buffered']
    #allocation6 [shape = 's32[1]{0}', space=sflag, size = 0x4, scoped, tag = 'scoped memory for bert_entity_forward.26']
    %8 = vsyncpa [#allocation6], 0
    // Predicated region
    $region2: #{bert_entity_forward.26} parent=1 // pred_check
      _
    $region3: #{bert_entity_forward.26} parent=1 // pred_check_branch
      %10 = sbr.rel (0) target = $region5
    $region4: #{bert_entity_forward.26} parent=1 // pred_region
      // Predicated region
      $region6: #{bert_entity_forward.26} parent=4 // pred_check
        _
      $region7: #{bert_entity_forward.26} parent=4 // pred_check_branch
        %12 = sbr.rel (0) target = $region9
      $region8: #{bert_entity_forward.26} parent=4 // pred_region
        // Predicated region
        $region10: #{bert_entity_forward.26} parent=8 // pred_check
          _
        $region11: #{bert_entity_forward.26} parent=8 // pred_check_branch
          %14 = sbr.rel (0) target = $region13
        $region12: #{bert_entity_forward.26} parent=8 // pred_region
          // Predicated region
          $region25: #{bert_entity_forward.26} parent=12 // pred_check
            _
          $region26: #{bert_entity_forward.26} parent=12 // pred_check_branch
            %32 = sbr.rel (0) target = $region28
          $region27: #{bert_entity_forward.26} parent=12 // pred_region
            loop: start=0, step=1, limit=1
            $region29: #{bert_entity_forward.26} parent=27 // loop_pre_header
              _
            $region30: #{bert_entity_forward.26} parent=27 // loop_header
              %s34 = sphi 0, %s38
              %p35 = scmp.ge.s32.totalorder %s34, 1
              %s39 = sphi %s0, %s0
              %s40 = sphi [#allocation4], [#allocation4]
            $region31: #{bert_entity_forward.26} parent=27 // loop_header_branch
              %37 = sbr.rel (%p35) target = $region35
            $region32: #{bert_entity_forward.26} parent=27 // loop_body
              %v41 = vld [vmem:[%s39] sm:$0xff]
              %42 = vst [vmem:[%s40] sm:$0xff] %v41
              %v43 = vld [vmem:[%s39 + $0x10] sm:$0xff]
              %44 = vst [vmem:[%s40 + $0x8] sm:$0xff] %v43
            $region33: #{bert_entity_forward.26} parent=27 // loop_footer
              %s38 = sadd.s32 1, %s34
            $region34: #{bert_entity_forward.26} parent=27 // loop_footer_branch
              %33 = sbr.rel target = $region30
            $region35: #{bert_entity_forward.26} parent=27 // loop_exit
              _
          $region28: #{bert_entity_forward.26} parent=12 // pred_fallthru
            _
          // Predicated region
          $region36: #{bert_entity_forward.26} parent=12 // pred_check
            _
          $region37: #{bert_entity_forward.26} parent=12 // pred_check_branch
            %46 = sbr.rel target = $region39
          $region38: #{bert_entity_forward.26} parent=12 // pred_region
            _
          $region39: #{bert_entity_forward.26} parent=12 // pred_fallthru
            _
        $region13: #{bert_entity_forward.26} parent=8 // pred_fallthru
          _
        // Predicated region
        $region14: #{bert_entity_forward.26} parent=8 // pred_check
          _
        $region15: #{bert_entity_forward.26} parent=8 // pred_check_branch
          %16 = sbr.rel target = $region17
        $region16: #{bert_entity_forward.26} parent=8 // pred_region
          %s18 = ssub.s32 256, 1
          loop: start=0, step=1, limit=1
          $region18: #{bert_entity_forward.26} parent=16 // loop_pre_header
            _
          $region19: #{bert_entity_forward.26} parent=16 // loop_header
            %s20 = sphi 0, %s24
            %p21 = scmp.ge.s32.totalorder %s20, 1
            %s25 = sphi %s0, %s0
            %s26 = sphi [#allocation4], [#allocation4]
          $region20: #{bert_entity_forward.26} parent=16 // loop_header_branch
            %23 = sbr.rel (%p21) target = $region24
          $region21: #{bert_entity_forward.26} parent=16 // loop_body
            %v27 = vld [vmem:[%s25] sm:%s18]
            %28 = vst [vmem:[%s26] sm:%s18] %v27
            %v29 = vld [vmem:[%s25 + $0x10] sm:%s18]
            %30 = vst [vmem:[%s26 + $0x8] sm:%s18] %v29
          $region22: #{bert_entity_forward.26} parent=16 // loop_footer
            %s24 = sadd.s32 1, %s20
          $region23: #{bert_entity_forward.26} parent=16 // loop_footer_branch
            %19 = sbr.rel target = $region19
          $region24: #{bert_entity_forward.26} parent=16 // loop_exit
            _
        $region17: #{bert_entity_forward.26} parent=8 // pred_fallthru
          _
      $region9: #{bert_entity_forward.26} parent=4 // pred_fallthru
        _
      %47 = vnop
    $region5: #{bert_entity_forward.26} parent=1 // pred_fallthru
      _
    // Predicated region
    $region40: #{bert_entity_forward.26} parent=1 // pred_check
      _
    $region41: #{bert_entity_forward.26} parent=1 // pred_check_branch
      %49 = sbr.rel (0) target = $region43
    $region42: #{bert_entity_forward.26} parent=1 // pred_region
      _
    $region43: #{bert_entity_forward.26} parent=1 // pred_fallthru
      _
    // Predicated region
    $region44: #{bert_entity_forward.26} parent=1 // pred_check
      _
    $region45: #{bert_entity_forward.26} parent=1 // pred_check_branch
      %51 = sbr.rel (0) target = $region47
    $region46: #{bert_entity_forward.26} parent=1 // pred_region
      _
    $region47: #{bert_entity_forward.26} parent=1 // pred_fallthru
      _
    // Predicated region
    $region48: #{bert_entity_forward.26} parent=1 // pred_check
      _
    $region49: #{bert_entity_forward.26} parent=1 // pred_check_branch
      %53 = sbr.rel (0) target = $region51
    $region50: #{bert_entity_forward.26} parent=1 // pred_region
      _
    $region51: #{bert_entity_forward.26} parent=1 // pred_fallthru
      _
    %p54 = scmp.eq.s32.totalorder 0, 0
    // Predicated region
    $region52: #{bert_entity_forward.26} parent=1 // pred_check
      %p55 = pneg %p54
    $region53: #{bert_entity_forward.26} parent=1 // pred_check_branch
      %57 = sbr.rel (%p55) target = $region55
    $region54: #{bert_entity_forward.26} parent=1 // pred_region
      %vm58 = vcmask 0
      %59 = vst.msk [vmem:[#allocation2] sm:$0x1] %vm58, 0.0
      %60 = vst.msk [vmem:[#allocation3] sm:$0x1] %vm58, 0.0
    $region55: #{bert_entity_forward.26} parent=1 // pred_fallthru
      _
    %v61 = vld [vmem:[#allocation4] sm:$0xff]
    %v62 = vld [vmem:[#allocation4 + $0x8] sm:$0xff]
    %v63 = vlaneseq
    %v64 = vand.u32 %v63, 127
    %vm65 = vcmp.lt.s32.totalorder %v64, 5
    %v66 = vsel %vm65, %v61, -1e+30
    %v67 = vsel %vm65, %v62, -1e+30
    %68 = vmax.xlane.f32.xlu0 %v66
    %v69 = vpop.xlane.xlu0 %68
    %70 = vmax.xlane.f32.xlu0 %v67
    %v71 = vpop.xlane.xlu0 %70
    %v72 = vsub.f32 %v66, %v69
    %v73 = vsub.f32 %v67, %v71
    %v74 = vmul.f32 %v72, 1.442695
    %v75 = vpow.pop %v74
    %v76 = vmul.f32 %v73, 1.442695
    %v77 = vpow.pop %v76
    %78 = vadd.xlane.f32.xlu0 %v75
    %v79 = vpop.xlane.xlu0 %78
    %80 = vadd.xlane.f32.xlu0 %v77
    %v81 = vpop.xlane.xlu0 %80
    %v82 = vlog2.pop %v79
    %v83 = vmul.f32 %v82, 0.6931472
    %v84 = vlog2.pop %v81
    %v85 = vmul.f32 %v84, 0.6931472
    %v86 = vadd.f32 %v69, %v83
    %v87 = vadd.f32 %v71, %v85
    %v88 = vld [vmem:[%s1] sm:$0xff]
    %v89 = vld [vmem:[%s1 + $0x8] sm:$0xff]
    %90 = vset.pattern.permute.xlu0 0
    %91 = vperm.xlu0 %90, %v88
    %v92 = vpop.permute.xlu0 %91
    %93 = vset.pattern.permute.xlu0 0
    %94 = vperm.xlu0 %93, %v89
    %v95 = vpop.permute.xlu0 %94
    %vm96 = vcmp.eq.s32.totalorder %v64, %v92
    %vm97 = vcmp.eq.s32.totalorder %v64, %v95
    %v98 = vsel %vm96, 1, 0
    %v99 = vsel %vm97, 1, 0
    %v100 = vcvt.s32.f32 %v98
    %v101 = vcvt.s32.f32 %v99
    %v102 = vmul.f32 %v66, %v100
    %v103 = vmul.f32 %v67, %v101
    %104 = vadd.xlane.f32.xlu0 %v102
    %v105 = vpop.xlane.xlu0 %104
    %106 = vadd.xlane.f32.xlu0 %v103
    %v107 = vpop.xlane.xlu0 %106
    %v108 = vsub.f32 %v86, %v105
    %v109 = vsub.f32 %v87, %v107
    %v110 = vld [vmem:[%s2] sm:$0xff]
    %v111 = vld [vmem:[%s2 + $0x8] sm:$0xff]
    %vm112 = vcmp.eq.s32.totalorder %v110, 1
    %vm113 = vcmp.eq.s32.totalorder %v111, 1
    %v114 = vsel %vm112, 1, 0
    %v115 = vsel %vm113, 1, 0
    %v116 = vcvt.s32.f32 %v114
    %v117 = vcvt.s32.f32 %v115
    %v118 = vld [vmem:[#allocation2] sm:$0x1]
    %v119 = vmul.f32 %v108, %v116
    %v120 = vmul.f32 %v109, %v117
    %vm121 = vcmask 7168
    %v122 = vsel %vm121, %v119, 0.0
    %v123 = vsel %vm121, %v120, 0.0
    %v124 = vadd.f32 %v122, %v123
    %v125 = vrot.slane %v124, 4
    %v126 = vadd.f32 %v124, %v125
    %v127 = vrot.slane %v126, 2
    %v128 = vadd.f32 %v126, %v127
    %v129 = vrot.slane %v128, 1
    %v130 = vadd.f32 %v128, %v129
    %v131 = vadd.f32 %v118, %v130
    %vm132 = vcmask 0
    %133 = vst.msk [vmem:[#allocation2] sm:$0x1] %vm132, %v131
    %v134 = vld [vmem:[#allocation3] sm:$0x1]
    %v135 = vsel %vm121, %v116, 0.0
    %v136 = vsel %vm121, %v117, 0.0
    %v137 = vadd.f32 %v135, %v136
    %v138 = vrot.slane %v137, 4
    %v139 = vadd.f32 %v137, %v138
    %v140 = vrot.slane %v139, 2
    %v141 = vadd.f32 %v139, %v140
    %v142 = vrot.slane %v141, 1
    %v143 = vadd.f32 %v141, %v142
    %v144 = vadd.f32 %v134, %v143
    %145 = vst.msk [vmem:[#allocation3] sm:$0x1] %vm132, %v144
    // Predicated region
    $region56: #{bert_entity_forward.26} parent=1 // pred_check
      %p146 = pneg %p54
    $region57: #{bert_entity_forward.26} parent=1 // pred_check_branch
      %148 = sbr.rel (%p146) target = $region59
    $region58: #{bert_entity_forward.26} parent=1 // pred_region
      %v149 = vld [vmem:[#allocation2] sm:$0x1]
      %v150 = vld [vmem:[#allocation3] sm:$0x1]
      %v151 = vmax.f32 %v150, 1.0
      %v152 = vrcp.pop %v151
      %v153 = vmul.f32 %v151, %v152
      %v154 = vsub.f32 1.0, %v153
      %v155 = vmul.f32 %v152, %v154
      %v156 = vadd.f32 %v152, %v155
      %vm157 = vweird.f32 %v151
      %vm158 = vweird.f32 %v152
      %vm159 = vmor %vm157, %vm158
      %v160 = vsel %vm159, %v152, %v156
      %v161 = vand.u32 2147483647, %v151
      %vm162 = vcmp.eq.f32.partialorder %v161, 8.507059e+37
      %v163 = vand.u32 %v151, 2147483648
      %v164 = vor.u32 1.1754944e-38, %v163
      %v165 = vsel %vm162, %v164, %v160
      %v166 = vmul.f32 %v149, %v165
      %167 = vst.msk [vmem:[#allocation5] sm:$0x1] %vm132, %v166
    $region59: #{bert_entity_forward.26} parent=1 // pred_fallthru
      _
    // Predicated region
    $region60: #{bert_entity_forward.26} parent=1 // pred_check
      _
    $region61: #{bert_entity_forward.26} parent=1 // pred_check_branch
      %169 = sbr.rel (0) target = $region63
    $region62: #{bert_entity_forward.26} parent=1 // pred_region
      %171 = vsyncadd [#allocation6], 0
      %s173 = sshll.u32 [#allocation5], 4
      %s174 = int_to_ptr.vmem [resolvable:$true] %s173
      %s175 = sshll.u32 %s3, 4
      %s176 = int_to_ptr.hbm [resolvable:$true] %s175
      %178 = dma.vmem_to_hbm [thread:$0]  %s174, 16, %s176, [#allocation6]
    $region63: #{bert_entity_forward.26} parent=1 // pred_fallthru
      _
    // Predicated region
    $region64: #{bert_entity_forward.26} parent=1 // pred_check
      _
    $region65: #{bert_entity_forward.26} parent=1 // pred_check_branch
      %180 = sbr.rel (0) target = $region67
    $region66: #{bert_entity_forward.26} parent=1 // pred_region
      %182 = dma.done [#allocation6], 16
    $region67: #{bert_entity_forward.26} parent=1 // pred_fallthru
      _
    %183 = vsyncpa [#allocation6], 1

// kernel: bert_entity_forward.27
$region0: #{bert_entity_forward.27}
  #allocation0 [shape = 'u32[]', space=smem, size = 0x4, offset = 0x4, fixed_abs, tag = 'smem constant byte address 0x4 - core index']
  #allocation1 [shape = 'u32[72,128]{1,0:T(1,128)}', space=vmem, size = 0x9000, scoped, tag = 'internal scratch']
  #allocation2 [shape = 'f32[1,1]{1,0:T(1,128)}', space=vmem, size = 0x200, scoped, tag = 'scratch operand']
  #allocation3 [shape = 'f32[1,1]{1,0:T(1,128)}', space=vmem, size = 0x200, scoped, tag = 'scratch operand']
  %s0 = inlined_call_operand.vmem [shape: f32[16,256], index: 0, kind: input, shape index: {}]
  %s1 = inlined_call_operand.vmem [shape: s32[16,1], index: 1, kind: input, shape index: {}]
  %s2 = inlined_call_operand.vmem [shape: s32[16,1], index: 2, kind: input, shape index: {}]
  %s3 = inlined_call_operand.hbm [shape: f32[1,1], index: 3, kind: output, shape index: {}]
  %s4 = sld [smem:[#allocation0]]
  $region68: #{bert_entity_forward.27} parent=0
    _
  %s6 = ssub.s32 1, %s4
  %s7 = scalar_select 0, %s6, %s4
  $region1: #{bert_entity_forward.27} parent=0
    #allocation4 [shape = 'u8[8192]{0}', space=vmem, size = 0x2000, scoped, tag = 'input window, operand 0, single buffered']
    #allocation5 [shape = 'u8[512]{0}', space=vmem, size = 0x400, scoped, tag = 'output window, operand 0, single buffered']
    #allocation6 [shape = 's32[1]{0}', space=sflag, size = 0x4, scoped, tag = 'scoped memory for bert_entity_forward.27']
    %8 = vsyncpa [#allocation6], 0
    // Predicated region
    $region2: #{bert_entity_forward.27} parent=1 // pred_check
      _
    $region3: #{bert_entity_forward.27} parent=1 // pred_check_branch
      %10 = sbr.rel (0) target = $region5
    $region4: #{bert_entity_forward.27} parent=1 // pred_region
      %s11 = scalar_lea.vmem %s0, 8
      // Predicated region
      $region6: #{bert_entity_forward.27} parent=4 // pred_check
        _
      $region7: #{bert_entity_forward.27} parent=4 // pred_check_branch
        %13 = sbr.rel (0) target = $region9
      $region8: #{bert_entity_forward.27} parent=4 // pred_region
        // Predicated region
        $region10: #{bert_entity_forward.27} parent=8 // pred_check
          _
        $region11: #{bert_entity_forward.27} parent=8 // pred_check_branch
          %15 = sbr.rel (0) target = $region13
        $region12: #{bert_entity_forward.27} parent=8 // pred_region
          // Predicated region
          $region25: #{bert_entity_forward.27} parent=12 // pred_check
            _
          $region26: #{bert_entity_forward.27} parent=12 // pred_check_branch
            %33 = sbr.rel (0) target = $region28
          $region27: #{bert_entity_forward.27} parent=12 // pred_region
            loop: start=0, step=1, limit=1
            $region29: #{bert_entity_forward.27} parent=27 // loop_pre_header
              _
            $region30: #{bert_entity_forward.27} parent=27 // loop_header
              %s35 = sphi 0, %s39
              %p36 = scmp.ge.s32.totalorder %s35, 1
              %s40 = sphi %s11, %s11
              %s41 = sphi [#allocation4], [#allocation4]
            $region31: #{bert_entity_forward.27} parent=27 // loop_header_branch
              %38 = sbr.rel (%p36) target = $region35
            $region32: #{bert_entity_forward.27} parent=27 // loop_body
              %v42 = vld [vmem:[%s40] sm:$0xff]
              %43 = vst [vmem:[%s41] sm:$0xff] %v42
              %v44 = vld [vmem:[%s40 + $0x10] sm:$0xff]
              %45 = vst [vmem:[%s41 + $0x8] sm:$0xff] %v44
            $region33: #{bert_entity_forward.27} parent=27 // loop_footer
              %s39 = sadd.s32 1, %s35
            $region34: #{bert_entity_forward.27} parent=27 // loop_footer_branch
              %34 = sbr.rel target = $region30
            $region35: #{bert_entity_forward.27} parent=27 // loop_exit
              _
          $region28: #{bert_entity_forward.27} parent=12 // pred_fallthru
            _
          // Predicated region
          $region36: #{bert_entity_forward.27} parent=12 // pred_check
            _
          $region37: #{bert_entity_forward.27} parent=12 // pred_check_branch
            %47 = sbr.rel target = $region39
          $region38: #{bert_entity_forward.27} parent=12 // pred_region
            _
          $region39: #{bert_entity_forward.27} parent=12 // pred_fallthru
            _
        $region13: #{bert_entity_forward.27} parent=8 // pred_fallthru
          _
        // Predicated region
        $region14: #{bert_entity_forward.27} parent=8 // pred_check
          _
        $region15: #{bert_entity_forward.27} parent=8 // pred_check_branch
          %17 = sbr.rel target = $region17
        $region16: #{bert_entity_forward.27} parent=8 // pred_region
          %s19 = ssub.s32 256, 1
          loop: start=0, step=1, limit=1
          $region18: #{bert_entity_forward.27} parent=16 // loop_pre_header
            _
          $region19: #{bert_entity_forward.27} parent=16 // loop_header
            %s21 = sphi 0, %s25
            %p22 = scmp.ge.s32.totalorder %s21, 1
            %s26 = sphi %s11, %s11
            %s27 = sphi [#allocation4], [#allocation4]
          $region20: #{bert_entity_forward.27} parent=16 // loop_header_branch
            %24 = sbr.rel (%p22) target = $region24
          $region21: #{bert_entity_forward.27} parent=16 // loop_body
            %v28 = vld [vmem:[%s26] sm:%s19]
            %29 = vst [vmem:[%s27] sm:%s19] %v28
            %v30 = vld [vmem:[%s26 + $0x10] sm:%s19]
            %31 = vst [vmem:[%s27 + $0x8] sm:%s19] %v30
          $region22: #{bert_entity_forward.27} parent=16 // loop_footer
            %s25 = sadd.s32 1, %s21
          $region23: #{bert_entity_forward.27} parent=16 // loop_footer_branch
            %20 = sbr.rel target = $region19
          $region24: #{bert_entity_forward.27} parent=16 // loop_exit
            _
        $region17: #{bert_entity_forward.27} parent=8 // pred_fallthru
          _
      $region9: #{bert_entity_forward.27} parent=4 // pred_fallthru
        _
      %48 = vnop
    $region5: #{bert_entity_forward.27} parent=1 // pred_fallthru
      _
    // Predicated region
    $region40: #{bert_entity_forward.27} parent=1 // pred_check
      _
    $region41: #{bert_entity_forward.27} parent=1 // pred_check_branch
      %50 = sbr.rel (0) target = $region43
    $region42: #{bert_entity_forward.27} parent=1 // pred_region
      _
    $region43: #{bert_entity_forward.27} parent=1 // pred_fallthru
      _
    // Predicated region
    $region44: #{bert_entity_forward.27} parent=1 // pred_check
      _
    $region45: #{bert_entity_forward.27} parent=1 // pred_check_branch
      %52 = sbr.rel (0) target = $region47
    $region46: #{bert_entity_forward.27} parent=1 // pred_region
      _
    $region47: #{bert_entity_forward.27} parent=1 // pred_fallthru
      _
    // Predicated region
    $region48: #{bert_entity_forward.27} parent=1 // pred_check
      _
    $region49: #{bert_entity_forward.27} parent=1 // pred_check_branch
      %54 = sbr.rel (0) target = $region51
    $region50: #{bert_entity_forward.27} parent=1 // pred_region
      _
    $region51: #{bert_entity_forward.27} parent=1 // pred_fallthru
      _
    %p55 = scmp.eq.s32.totalorder 0, 0
    // Predicated region
    $region52: #{bert_entity_forward.27} parent=1 // pred_check
      %p56 = pneg %p55
    $region53: #{bert_entity_forward.27} parent=1 // pred_check_branch
      %58 = sbr.rel (%p56) target = $region55
    $region54: #{bert_entity_forward.27} parent=1 // pred_region
      %vm59 = vcmask 0
      %60 = vst.msk [vmem:[#allocation2] sm:$0x1] %vm59, 0.0
      %61 = vst.msk [vmem:[#allocation3] sm:$0x1] %vm59, 0.0
    $region55: #{bert_entity_forward.27} parent=1 // pred_fallthru
      _
    %v62 = vld [vmem:[#allocation4] sm:$0xff]
    %v63 = vld [vmem:[#allocation4 + $0x8] sm:$0xff]
    %v64 = vlaneseq
    %v65 = vand.u32 %v64, 127
    %vm66 = vcmp.lt.s32.totalorder %v65, 7
    %v67 = vsel %vm66, %v62, -1e+30
    %v68 = vsel %vm66, %v63, -1e+30
    %69 = vmax.xlane.f32.xlu0 %v67
    %v70 = vpop.xlane.xlu0 %69
    %71 = vmax.xlane.f32.xlu0 %v68
    %v72 = vpop.xlane.xlu0 %71
    %v73 = vsub.f32 %v67, %v70
    %v74 = vsub.f32 %v68, %v72
    %v75 = vmul.f32 %v73, 1.442695
    %v76 = vpow.pop %v75
    %v77 = vmul.f32 %v74, 1.442695
    %v78 = vpow.pop %v77
    %79 = vadd.xlane.f32.xlu0 %v76
    %v80 = vpop.xlane.xlu0 %79
    %81 = vadd.xlane.f32.xlu0 %v78
    %v82 = vpop.xlane.xlu0 %81
    %v83 = vlog2.pop %v80
    %v84 = vmul.f32 %v83, 0.6931472
    %v85 = vlog2.pop %v82
    %v86 = vmul.f32 %v85, 0.6931472
    %v87 = vadd.f32 %v70, %v84
    %v88 = vadd.f32 %v72, %v86
    %v89 = vld [vmem:[%s1] sm:$0xff]
    %v90 = vld [vmem:[%s1 + $0x8] sm:$0xff]
    %91 = vset.pattern.permute.xlu0 0
    %92 = vperm.xlu0 %91, %v89
    %v93 = vpop.permute.xlu0 %92
    %94 = vset.pattern.permute.xlu0 0
    %95 = vperm.xlu0 %94, %v90
    %v96 = vpop.permute.xlu0 %95
    %vm97 = vcmp.eq.s32.totalorder %v65, %v93
    %vm98 = vcmp.eq.s32.totalorder %v65, %v96
    %v99 = vsel %vm97, 1, 0
    %v100 = vsel %vm98, 1, 0
    %v101 = vcvt.s32.f32 %v99
    %v102 = vcvt.s32.f32 %v100
    %v103 = vmul.f32 %v67, %v101
    %v104 = vmul.f32 %v68, %v102
    %105 = vadd.xlane.f32.xlu0 %v103
    %v106 = vpop.xlane.xlu0 %105
    %107 = vadd.xlane.f32.xlu0 %v104
    %v108 = vpop.xlane.xlu0 %107
    %v109 = vsub.f32 %v87, %v106
    %v110 = vsub.f32 %v88, %v108
    %v111 = vld [vmem:[%s2] sm:$0xff]
    %v112 = vld [vmem:[%s2 + $0x8] sm:$0xff]
    %vm113 = vcmp.eq.s32.totalorder %v111, 1
    %vm114 = vcmp.eq.s32.totalorder %v112, 1
    %v115 = vsel %vm113, 1, 0
    %v116 = vsel %vm114, 1, 0
    %v117 = vcvt.s32.f32 %v115
    %v118 = vcvt.s32.f32 %v116
    %v119 = vld [vmem:[#allocation2] sm:$0x1]
    %v120 = vmul.f32 %v109, %v117
    %v121 = vmul.f32 %v110, %v118
    %vm122 = vcmask 7168
    %v123 = vsel %vm122, %v120, 0.0
    %v124 = vsel %vm122, %v121, 0.0
    %v125 = vadd.f32 %v123, %v124
    %v126 = vrot.slane %v125, 4
    %v127 = vadd.f32 %v125, %v126
    %v128 = vrot.slane %v127, 2
    %v129 = vadd.f32 %v127, %v128
    %v130 = vrot.slane %v129, 1
    %v131 = vadd.f32 %v129, %v130
    %v132 = vadd.f32 %v119, %v131
    %vm133 = vcmask 0
    %134 = vst.msk [vmem:[#allocation2] sm:$0x1] %vm133, %v132
    %v135 = vld [vmem:[#allocation3] sm:$0x1]
    %v136 = vsel %vm122, %v117, 0.0
    %v137 = vsel %vm122, %v118, 0.0
    %v138 = vadd.f32 %v136, %v137
    %v139 = vrot.slane %v138, 4
    %v140 = vadd.f32 %v138, %v139
    %v141 = vrot.slane %v140, 2
    %v142 = vadd.f32 %v140, %v141
    %v143 = vrot.slane %v142, 1
    %v144 = vadd.f32 %v142, %v143
    %v145 = vadd.f32 %v135, %v144
    %146 = vst.msk [vmem:[#allocation3] sm:$0x1] %vm133, %v145
    // Predicated region
    $region56: #{bert_entity_forward.27} parent=1 // pred_check
      %p147 = pneg %p55
    $region57: #{bert_entity_forward.27} parent=1 // pred_check_branch
      %149 = sbr.rel (%p147) target = $region59
    $region58: #{bert_entity_forward.27} parent=1 // pred_region
      %v150 = vld [vmem:[#allocation2] sm:$0x1]
      %v151 = vld [vmem:[#allocation3] sm:$0x1]
      %v152 = vmax.f32 %v151, 1.0
      %v153 = vrcp.pop %v152
      %v154 = vmul.f32 %v152, %v153
      %v155 = vsub.f32 1.0, %v154
      %v156 = vmul.f32 %v153, %v155
      %v157 = vadd.f32 %v153, %v156
      %vm158 = vweird.f32 %v152
      %vm159 = vweird.f32 %v153
      %vm160 = vmor %vm158, %vm159
      %v161 = vsel %vm160, %v153, %v157
      %v162 = vand.u32 2147483647, %v152
      %vm163 = vcmp.eq.f32.partialorder %v162, 8.507059e+37
      %v164 = vand.u32 %v152, 2147483648
      %v165 = vor.u32 1.1754944e-38, %v164
      %v166 = vsel %vm163, %v165, %v161
      %v167 = vmul.f32 %v150, %v166
      %168 = vst.msk [vmem:[#allocation5] sm:$0x1] %vm133, %v167
    $region59: #{bert_entity_forward.27} parent=1 // pred_fallthru
      _
    // Predicated region
    $region60: #{bert_entity_forward.27} parent=1 // pred_check
      _
    $region61: #{bert_entity_forward.27} parent=1 // pred_check_branch
      %170 = sbr.rel (0) target = $region63
    $region62: #{bert_entity_forward.27} parent=1 // pred_region
      %172 = vsyncadd [#allocation6], 0
      %s174 = sshll.u32 [#allocation5], 4
      %s175 = int_to_ptr.vmem [resolvable:$true] %s174
      %s176 = sshll.u32 %s3, 4
      %s177 = int_to_ptr.hbm [resolvable:$true] %s176
      %179 = dma.vmem_to_hbm [thread:$0]  %s175, 16, %s177, [#allocation6]
    $region63: #{bert_entity_forward.27} parent=1 // pred_fallthru
      _
    // Predicated region
    $region64: #{bert_entity_forward.27} parent=1 // pred_check
      _
    $region65: #{bert_entity_forward.27} parent=1 // pred_check_branch
      %181 = sbr.rel (0) target = $region67
    $region66: #{bert_entity_forward.27} parent=1 // pred_region
      %183 = dma.done [#allocation6], 16
    $region67: #{bert_entity_forward.27} parent=1 // pred_fallthru
      _
    %184 = vsyncpa [#allocation6], 1

</llo_original>
